<compile_context>
chip_gen: v7x
topology: tpu7x:2x2x1
jax: 0.10.0
libtpu: 0.0.40
codegen_flags: <defaults>
</compile_context>

<pallas_src>
import jax
import jax.numpy as jnp
from jax import lax
from jax.experimental import pallas as pl
from jax.experimental.pallas import tpu as pltpu

NEG_INF = float("-inf")  # Python float (kernels must not capture jnp array constants)


def _make_kernel(n_real: int, npad: int, k: int, alpha: float):
    """Kernel factory; every closed-over value is a Python scalar."""

    def kernel(h1_ref, h2_ref, h2t_ref, h1t_ref, adj_ref):
        # a[row_block] = nv1_blk @ nv2^T - nv2_blk @ nv1^T
        # bf16 MXU operands (projected + transposed once in the wrapper), f32 accumulation.
        a = (jnp.dot(h1_ref[...], h2t_ref[...], preferred_element_type=jnp.float32)
             - jnp.dot(h2_ref[...], h1t_ref[...], preferred_element_type=jnp.float32))
        adj = jnp.maximum(jnp.tanh(alpha * a), 0.0)           # (TM, Npad), entries >= 0

        # Per-row top-k (statically unrolled; lowest-index tie-break, matching lax.top_k).
        col = lax.broadcasted_iota(jnp.int32, adj.shape, 1)    # hoisted out of the k-loop
        work = jnp.where(col < n_real, adj, NEG_INF)           # padded cols never selected
        out = jnp.zeros_like(adj)                              # accumulate output directly
        for _ in range(k):                                     # k is small & static
            rowmax = jnp.max(work, axis=1, keepdims=True)
            hit = jnp.where(work >= rowmax, col, npad)
            sel = col == jnp.min(hit, axis=1, keepdims=True)   # exactly one column per row
            out = jnp.where(sel, adj, out)                     # == adj * topk_mask
            work = jnp.where(sel, NEG_INF, work)               # remove from contention

        adj_ref[...] = out

    return kernel


def graph_constructor_forward(idx, emb1_w, emb2_w, lin1_w, lin1_b, lin2_w, lin2_b,
                              *, k, alpha, tm=128):
    """JAX wrapper reproducing GraphConstructor.forward (static_feat=None path)."""
    n = int(idx.shape[0])
    dim = int(emb1_w.shape[1])
    alpha = float(alpha)
    k = int(k)
    if k > n:
        raise ValueError(f"top-k k={k} exceeds number of selected nodes n={n}")

    # Lane-dense padding: adjacency extent rounded up to a multiple of 128 (and of TM).
    npad = ((n + 127) // 128) * 128
    tm = min(int(tm), npad)
    assert npad % tm == 0 and tm % 8 == 0

    # --- Hoisted node-vector projections (done ONCE, not per grid step) -----------------
    def node_vec(table, w, b):
        e = table[idx].astype(jnp.float32)                     # embedding gather (JAX glue)
        return jnp.tanh(alpha * (e @ w.T.astype(jnp.float32) + b.astype(jnp.float32)))

    h1 = node_vec(emb1_w, lin1_w, lin1_b)                      # (n, dim) f32
    h2 = node_vec(emb2_w, lin2_w, lin2_b)

    # Zero-pad rows past n so padded adjacency rows/cols are exact zeros, then cast to bf16
    # MXU operands (half the DMA bytes).  Transpose once here so the kernel never does an
    # XLU transpose in the hot loop.
    h1p = jnp.pad(h1, ((0, npad - n), (0, 0))).astype(jnp.bfloat16)   # (Npad, dim)
    h2p = jnp.pad(h2, ((0, npad - n), (0, 0))).astype(jnp.bfloat16)
    h1t = h1p.T                                                        # (dim, Npad)
    h2t = h2p.T

    g = npad // tm
    grid = (g,)

    row_tile = pl.BlockSpec((tm, dim), lambda i: (i, 0))       # per-step LHS row block
    resident = lambda shape: pl.BlockSpec(shape, lambda i: (0, 0))   # constant index_map
    # NOTE: at very large Npad, pass pipeline_mode=pl.Buffered(1) on the resident RHS specs
    # to avoid a useless double buffer; at these shapes it is a few tens of KiB.

    cost = pl.CostEstimate(
        flops=4 * npad * npad * dim,                 # two (Npad x dim) @ (dim x Npad) products
        transcendentals=npad * npad,                 # one tanh per adjacency element
        bytes_accessed=8 * npad * dim + 4 * npad * npad,
    )

    out = pl.pallas_call(
        _make_kernel(n, npad, k, alpha),
        out_shape=jax.ShapeDtypeStruct((npad, npad), jnp.float32),
        grid=grid,
        in_specs=[
            row_tile,                   # nv1 row tile   (LHS of nv1 @ nv2^T)
            row_tile,                   # nv2 row tile   (LHS of nv2 @ nv1^T)
            resident((dim, npad)),      # nv2^T          (resident RHS)
            resident((dim, npad)),      # nv1^T          (resident RHS)
        ],
        out_specs=pl.BlockSpec((tm, npad), lambda i: (i, 0)),   # lane-dense row tile
        compiler_params=pltpu.CompilerParams(
            dimension_semantics=("parallel",)),                 # megacore-shard rows (v7x)
        cost_estimate=cost,
    )(h1p, h2p, h2t, h1t)

    return out[:n, :n]


def _reference_forward(idx, emb1_w, emb2_w, lin1_w, lin1_b, lin2_w, lin2_b, *, k, alpha):
    """Pure-JAX reference mirroring GraphConstructor.forward.

    Mirrors the kernel's mixed precision (f32 projections, bf16 operands for the two big
    matmuls with f32 accumulation); the PyTorch module runs the same graph in f32.
    """
    def node_vec(table, w, b):
        e = table[idx].astype(jnp.float32)
        return jnp.tanh(alpha * (e @ w.T + b))

    nv1 = node_vec(emb1_w, lin1_w, lin1_b)
    nv2 = node_vec(emb2_w, lin2_w, lin2_b)
    nv1b = nv1.astype(jnp.bfloat16)
    nv2b = nv2.astype(jnp.bfloat16)
    a = (jnp.dot(nv1b, nv2b.T, preferred_element_type=jnp.float32)
         - jnp.dot(nv2b, nv1b.T, preferred_element_type=jnp.float32))
    adj = jax.nn.relu(jnp.tanh(alpha * a))
    _, t1 = lax.top_k(adj, k)
    rows = jnp.arange(adj.shape[0])[:, None]
    mask = jnp.zeros_like(adj).at[rows, t1].set(1.0)
    return adj * mask


if __name__ == "__main__":
    # GraphConstructor hyper-parameters (small but realistic for MTGNN traffic graphs).
    nnodes, dim, k, alpha = 256, 32, 8, 3.0
    n_sel = 200                     # idx length -> 200x200 adjacency (padded to 256 inside)

    key = jax.random.PRNGKey(0)
    k1, k2, k3, k4, k5, k6, k7 = jax.random.split(key, 7)

    emb1_w = jax.random.normal(k1, (nnodes, dim), jnp.float32)       # emb1.weight
    emb2_w = jax.random.normal(k2, (nnodes, dim), jnp.float32)       # emb2.weight
    lin1_w = jax.random.normal(k3, (dim, dim), jnp.float32) / dim    # lin1.weight
    lin1_b = jax.random.normal(k4, (dim,), jnp.float32) * 0.1        # lin1.bias
    lin2_w = jax.random.normal(k5, (dim, dim), jnp.float32) / dim    # lin2.weight
    lin2_b = jax.random.normal(k6, (dim,), jnp.float32) * 0.1        # lin2.bias

    idx = jax.random.permutation(k7, nnodes)[:n_sel].astype(jnp.int32)

    out = graph_constructor_forward(idx, emb1_w, emb2_w, lin1_w, lin1_b, lin2_w, lin2_b,
                                    k=k, alpha=alpha)
    out = jax.block_until_ready(out)

    ref = _reference_forward(idx, emb1_w, emb2_w, lin1_w, lin1_b, lin2_w, lin2_b,
                             k=k, alpha=alpha)
    assert out.shape == (n_sel, n_sel)
    # Tolerance absorbs bf16 operand rounding / accumulation-order differences between the
    # XLA reference and the kernel; real selection/shape bugs show up as O(0.1..1) errors.
    assert jnp.allclose(out, ref, atol=5e-3, rtol=5e-3), "mismatch vs reference"

    print("KERNEL_OK")
</pallas_src>

<mosaic_0001>
module attributes {stable_mosaic.version = 11 : i64} {
  func.func @kernel(%arg0: i32, %arg1: memref<128x32xbf16, #tpu.memory_space<vmem>>, %arg2: memref<128x32xbf16, #tpu.memory_space<vmem>>, %arg3: memref<32x256xbf16, #tpu.memory_space<vmem>>, %arg4: memref<32x256xbf16, #tpu.memory_space<vmem>>, %arg5: memref<128x256xf32, #tpu.memory_space<vmem>>) attributes {dimension_semantics = [#tpu.dimension_semantics<parallel>], iteration_bounds = array<i64: 2>, scalar_prefetch = 0 : i64, scratch_operands = 0 : i64, tpu.core_type = #tpu.core_type<tc>, window_params = [{transform_indices = @transform_0, window_bounds = array<i64: 128, 32>}, {transform_indices = @transform_1, window_bounds = array<i64: 128, 32>}, {pipeline_mode = #tpu.pipeline_mode<synchronous>, transform_indices = @transform_2, window_bounds = array<i64: 32, 256>}, {pipeline_mode = #tpu.pipeline_mode<synchronous>, transform_indices = @transform_3, window_bounds = array<i64: 32, 256>}, {transform_indices = @transform_4, window_bounds = array<i64: 128, 256>}]} {
    %c0 = arith.constant 0 : index
    %c0_0 = arith.constant 0 : index
    %0 = vector.load %arg1[%c0, %c0_0] : memref<128x32xbf16, #tpu.memory_space<vmem>>, vector<128x32xbf16>
    %c0_1 = arith.constant 0 : index
    %c0_2 = arith.constant 0 : index
    %1 = vector.load %arg3[%c0_1, %c0_2] : memref<32x256xbf16, #tpu.memory_space<vmem>>, vector<32x256xbf16>
    %cst = arith.constant dense<0.000000e+00> : vector<128x256xf32>
    %2 = tpu.matmul %0, %1, %cst {dimension_numbers = #tpu.dot_dimension_numbers<[1], [0], [0], [1], [0, 0, 1, 1], [], []>} : vector<128x32xbf16>, vector<32x256xbf16>, vector<128x256xf32> -> vector<128x256xf32>
    %c0_3 = arith.constant 0 : index
    %c0_4 = arith.constant 0 : index
    %3 = vector.load %arg2[%c0_3, %c0_4] : memref<128x32xbf16, #tpu.memory_space<vmem>>, vector<128x32xbf16>
    %c0_5 = arith.constant 0 : index
    %c0_6 = arith.constant 0 : index
    %4 = vector.load %arg4[%c0_5, %c0_6] : memref<32x256xbf16, #tpu.memory_space<vmem>>, vector<32x256xbf16>
    %cst_7 = arith.constant dense<0.000000e+00> : vector<128x256xf32>
    %5 = tpu.matmul %3, %4, %cst_7 {dimension_numbers = #tpu.dot_dimension_numbers<[1], [0], [0], [1], [0, 0, 1, 1], [], []>} : vector<128x32xbf16>, vector<32x256xbf16>, vector<128x256xf32> -> vector<128x256xf32>
    %6 = arith.subf %2, %5 : vector<128x256xf32>
    %cst_8 = arith.constant 3.000000e+00 : f32
    %7 = vector.broadcast %cst_8 : f32 to vector<128x256xf32>
    %8 = arith.mulf %7, %6 : vector<128x256xf32>
    %9 = math.tanh %8 : vector<128x256xf32>
    %cst_9 = arith.constant 0.000000e+00 : f32
    %10 = vector.broadcast %cst_9 : f32 to vector<128x256xf32>
    %11 = arith.maximumf %9, %10 : vector<128x256xf32>
    %12 = tpu.iota {dimensions = array<i32: 1>} : vector<128x256xi32>
    %c200_i32 = arith.constant 200 : i32
    %13 = vector.broadcast %c200_i32 : i32 to vector<128x256xi32>
    %14 = arith.cmpi slt, %12, %13 : vector<128x256xi32>
    %cst_10 = arith.constant 0xFF800000 : f32
    %15 = vector.broadcast %cst_10 : f32 to vector<128x256xf32>
    %16 = arith.select %14, %11, %15 : vector<128x256xi1>, vector<128x256xf32>
    %cst_11 = arith.constant 0.000000e+00 : f32
    %17 = vector.broadcast %cst_11 : f32 to vector<128x256xf32>
    %cst_12 = arith.constant dense<0xFF800000> : vector<128xf32>
    %18 = vector.multi_reduction <maximumf>, %16, %cst_12 [1] : vector<128x256xf32> to vector<128xf32>
    %19 = vector.shape_cast %18 : vector<128xf32> to vector<128x1xf32>
    %20 = vector.broadcast %19 : vector<128x1xf32> to vector<128x256xf32>
    %21 = arith.cmpf oge, %16, %20 : vector<128x256xf32>
    %c256_i32 = arith.constant 256 : i32
    %22 = vector.broadcast %c256_i32 : i32 to vector<128x256xi32>
    %23 = arith.select %21, %12, %22 : vector<128x256xi1>, vector<128x256xi32>
    %cst_13 = arith.constant dense<2147483647> : vector<128xi32>
    %24 = vector.multi_reduction <minsi>, %23, %cst_13 [1] : vector<128x256xi32> to vector<128xi32>
    %25 = vector.shape_cast %24 : vector<128xi32> to vector<128x1xi32>
    %26 = vector.broadcast %25 : vector<128x1xi32> to vector<128x256xi32>
    %27 = arith.cmpi eq, %12, %26 : vector<128x256xi32>
    %28 = arith.select %27, %11, %17 : vector<128x256xi1>, vector<128x256xf32>
    %cst_14 = arith.constant 0xFF800000 : f32
    %29 = vector.broadcast %cst_14 : f32 to vector<128x256xf32>
    %30 = arith.select %27, %29, %16 : vector<128x256xi1>, vector<128x256xf32>
    %cst_15 = arith.constant dense<0xFF800000> : vector<128xf32>
    %31 = vector.multi_reduction <maximumf>, %30, %cst_15 [1] : vector<128x256xf32> to vector<128xf32>
    %32 = vector.shape_cast %31 : vector<128xf32> to vector<128x1xf32>
    %33 = vector.broadcast %32 : vector<128x1xf32> to vector<128x256xf32>
    %34 = arith.cmpf oge, %30, %33 : vector<128x256xf32>
    %c256_i32_16 = arith.constant 256 : i32
    %35 = vector.broadcast %c256_i32_16 : i32 to vector<128x256xi32>
    %36 = arith.select %34, %12, %35 : vector<128x256xi1>, vector<128x256xi32>
    %cst_17 = arith.constant dense<2147483647> : vector<128xi32>
    %37 = vector.multi_reduction <minsi>, %36, %cst_17 [1] : vector<128x256xi32> to vector<128xi32>
    %38 = vector.shape_cast %37 : vector<128xi32> to vector<128x1xi32>
    %39 = vector.broadcast %38 : vector<128x1xi32> to vector<128x256xi32>
    %40 = arith.cmpi eq, %12, %39 : vector<128x256xi32>
    %41 = arith.select %40, %11, %28 : vector<128x256xi1>, vector<128x256xf32>
    %cst_18 = arith.constant 0xFF800000 : f32
    %42 = vector.broadcast %cst_18 : f32 to vector<128x256xf32>
    %43 = arith.select %40, %42, %30 : vector<128x256xi1>, vector<128x256xf32>
    %cst_19 = arith.constant dense<0xFF800000> : vector<128xf32>
    %44 = vector.multi_reduction <maximumf>, %43, %cst_19 [1] : vector<128x256xf32> to vector<128xf32>
    %45 = vector.shape_cast %44 : vector<128xf32> to vector<128x1xf32>
    %46 = vector.broadcast %45 : vector<128x1xf32> to vector<128x256xf32>
    %47 = arith.cmpf oge, %43, %46 : vector<128x256xf32>
    %c256_i32_20 = arith.constant 256 : i32
    %48 = vector.broadcast %c256_i32_20 : i32 to vector<128x256xi32>
    %49 = arith.select %47, %12, %48 : vector<128x256xi1>, vector<128x256xi32>
    %cst_21 = arith.constant dense<2147483647> : vector<128xi32>
    %50 = vector.multi_reduction <minsi>, %49, %cst_21 [1] : vector<128x256xi32> to vector<128xi32>
    %51 = vector.shape_cast %50 : vector<128xi32> to vector<128x1xi32>
    %52 = vector.broadcast %51 : vector<128x1xi32> to vector<128x256xi32>
    %53 = arith.cmpi eq, %12, %52 : vector<128x256xi32>
    %54 = arith.select %53, %11, %41 : vector<128x256xi1>, vector<128x256xf32>
    %cst_22 = arith.constant 0xFF800000 : f32
    %55 = vector.broadcast %cst_22 : f32 to vector<128x256xf32>
    %56 = arith.select %53, %55, %43 : vector<128x256xi1>, vector<128x256xf32>
    %cst_23 = arith.constant dense<0xFF800000> : vector<128xf32>
    %57 = vector.multi_reduction <maximumf>, %56, %cst_23 [1] : vector<128x256xf32> to vector<128xf32>
    %58 = vector.shape_cast %57 : vector<128xf32> to vector<128x1xf32>
    %59 = vector.broadcast %58 : vector<128x1xf32> to vector<128x256xf32>
    %60 = arith.cmpf oge, %56, %59 : vector<128x256xf32>
    %c256_i32_24 = arith.constant 256 : i32
    %61 = vector.broadcast %c256_i32_24 : i32 to vector<128x256xi32>
    %62 = arith.select %60, %12, %61 : vector<128x256xi1>, vector<128x256xi32>
    %cst_25 = arith.constant dense<2147483647> : vector<128xi32>
    %63 = vector.multi_reduction <minsi>, %62, %cst_25 [1] : vector<128x256xi32> to vector<128xi32>
    %64 = vector.shape_cast %63 : vector<128xi32> to vector<128x1xi32>
    %65 = vector.broadcast %64 : vector<128x1xi32> to vector<128x256xi32>
    %66 = arith.cmpi eq, %12, %65 : vector<128x256xi32>
    %67 = arith.select %66, %11, %54 : vector<128x256xi1>, vector<128x256xf32>
    %cst_26 = arith.constant 0xFF800000 : f32
    %68 = vector.broadcast %cst_26 : f32 to vector<128x256xf32>
    %69 = arith.select %66, %68, %56 : vector<128x256xi1>, vector<128x256xf32>
    %cst_27 = arith.constant dense<0xFF800000> : vector<128xf32>
    %70 = vector.multi_reduction <maximumf>, %69, %cst_27 [1] : vector<128x256xf32> to vector<128xf32>
    %71 = vector.shape_cast %70 : vector<128xf32> to vector<128x1xf32>
    %72 = vector.broadcast %71 : vector<128x1xf32> to vector<128x256xf32>
    %73 = arith.cmpf oge, %69, %72 : vector<128x256xf32>
    %c256_i32_28 = arith.constant 256 : i32
    %74 = vector.broadcast %c256_i32_28 : i32 to vector<128x256xi32>
    %75 = arith.select %73, %12, %74 : vector<128x256xi1>, vector<128x256xi32>
    %cst_29 = arith.constant dense<2147483647> : vector<128xi32>
    %76 = vector.multi_reduction <minsi>, %75, %cst_29 [1] : vector<128x256xi32> to vector<128xi32>
    %77 = vector.shape_cast %76 : vector<128xi32> to vector<128x1xi32>
    %78 = vector.broadcast %77 : vector<128x1xi32> to vector<128x256xi32>
    %79 = arith.cmpi eq, %12, %78 : vector<128x256xi32>
    %80 = arith.select %79, %11, %67 : vector<128x256xi1>, vector<128x256xf32>
    %cst_30 = arith.constant 0xFF800000 : f32
    %81 = vector.broadcast %cst_30 : f32 to vector<128x256xf32>
    %82 = arith.select %79, %81, %69 : vector<128x256xi1>, vector<128x256xf32>
    %cst_31 = arith.constant dense<0xFF800000> : vector<128xf32>
    %83 = vector.multi_reduction <maximumf>, %82, %cst_31 [1] : vector<128x256xf32> to vector<128xf32>
    %84 = vector.shape_cast %83 : vector<128xf32> to vector<128x1xf32>
    %85 = vector.broadcast %84 : vector<128x1xf32> to vector<128x256xf32>
    %86 = arith.cmpf oge, %82, %85 : vector<128x256xf32>
    %c256_i32_32 = arith.constant 256 : i32
    %87 = vector.broadcast %c256_i32_32 : i32 to vector<128x256xi32>
    %88 = arith.select %86, %12, %87 : vector<128x256xi1>, vector<128x256xi32>
    %cst_33 = arith.constant dense<2147483647> : vector<128xi32>
    %89 = vector.multi_reduction <minsi>, %88, %cst_33 [1] : vector<128x256xi32> to vector<128xi32>
    %90 = vector.shape_cast %89 : vector<128xi32> to vector<128x1xi32>
    %91 = vector.broadcast %90 : vector<128x1xi32> to vector<128x256xi32>
    %92 = arith.cmpi eq, %12, %91 : vector<128x256xi32>
    %93 = arith.select %92, %11, %80 : vector<128x256xi1>, vector<128x256xf32>
    %cst_34 = arith.constant 0xFF800000 : f32
    %94 = vector.broadcast %cst_34 : f32 to vector<128x256xf32>
    %95 = arith.select %92, %94, %82 : vector<128x256xi1>, vector<128x256xf32>
    %cst_35 = arith.constant dense<0xFF800000> : vector<128xf32>
    %96 = vector.multi_reduction <maximumf>, %95, %cst_35 [1] : vector<128x256xf32> to vector<128xf32>
    %97 = vector.shape_cast %96 : vector<128xf32> to vector<128x1xf32>
    %98 = vector.broadcast %97 : vector<128x1xf32> to vector<128x256xf32>
    %99 = arith.cmpf oge, %95, %98 : vector<128x256xf32>
    %c256_i32_36 = arith.constant 256 : i32
    %100 = vector.broadcast %c256_i32_36 : i32 to vector<128x256xi32>
    %101 = arith.select %99, %12, %100 : vector<128x256xi1>, vector<128x256xi32>
    %cst_37 = arith.constant dense<2147483647> : vector<128xi32>
    %102 = vector.multi_reduction <minsi>, %101, %cst_37 [1] : vector<128x256xi32> to vector<128xi32>
    %103 = vector.shape_cast %102 : vector<128xi32> to vector<128x1xi32>
    %104 = vector.broadcast %103 : vector<128x1xi32> to vector<128x256xi32>
    %105 = arith.cmpi eq, %12, %104 : vector<128x256xi32>
    %106 = arith.select %105, %11, %93 : vector<128x256xi1>, vector<128x256xf32>
    %cst_38 = arith.constant 0xFF800000 : f32
    %107 = vector.broadcast %cst_38 : f32 to vector<128x256xf32>
    %108 = arith.select %105, %107, %95 : vector<128x256xi1>, vector<128x256xf32>
    %cst_39 = arith.constant dense<0xFF800000> : vector<128xf32>
    %109 = vector.multi_reduction <maximumf>, %108, %cst_39 [1] : vector<128x256xf32> to vector<128xf32>
    %110 = vector.shape_cast %109 : vector<128xf32> to vector<128x1xf32>
    %111 = vector.broadcast %110 : vector<128x1xf32> to vector<128x256xf32>
    %112 = arith.cmpf oge, %108, %111 : vector<128x256xf32>
    %c256_i32_40 = arith.constant 256 : i32
    %113 = vector.broadcast %c256_i32_40 : i32 to vector<128x256xi32>
    %114 = arith.select %112, %12, %113 : vector<128x256xi1>, vector<128x256xi32>
    %cst_41 = arith.constant dense<2147483647> : vector<128xi32>
    %115 = vector.multi_reduction <minsi>, %114, %cst_41 [1] : vector<128x256xi32> to vector<128xi32>
    %116 = vector.shape_cast %115 : vector<128xi32> to vector<128x1xi32>
    %117 = vector.broadcast %116 : vector<128x1xi32> to vector<128x256xi32>
    %118 = arith.cmpi eq, %12, %117 : vector<128x256xi32>
    %119 = arith.select %118, %11, %106 : vector<128x256xi1>, vector<128x256xf32>
    %c0_42 = arith.constant 0 : index
    %c0_43 = arith.constant 0 : index
    %120 = vector.load %arg5[%c0_42, %c0_43] : memref<128x256xf32, #tpu.memory_space<vmem>>, vector<128x256xf32>
    tpu.vector_store %arg5[%c0_42, %c0_43], %119 {strides = array<i32>} : memref<128x256xf32, #tpu.memory_space<vmem>>, vector<128x256xf32>,
    return
  }
  func.func @transform_0(%arg0: i32) -> (i32, i32) {
    %c0_i32 = arith.constant 0 : i32
    %c0_i32_0 = arith.constant 0 : i32
    return %arg0, %c0_i32 : i32, i32
  }
  func.func @transform_1(%arg0: i32) -> (i32, i32) {
    %c0_i32 = arith.constant 0 : i32
    %c0_i32_0 = arith.constant 0 : i32
    return %arg0, %c0_i32 : i32, i32
  }
  func.func @transform_2(%arg0: i32) -> (i32, i32) {
    %c0_i32 = arith.constant 0 : i32
    %c0_i32_0 = arith.constant 0 : i32
    %c0_i32_1 = arith.constant 0 : i32
    return %c0_i32, %c0_i32_0 : i32, i32
  }
  func.func @transform_3(%arg0: i32) -> (i32, i32) {
    %c0_i32 = arith.constant 0 : i32
    %c0_i32_0 = arith.constant 0 : i32
    %c0_i32_1 = arith.constant 0 : i32
    return %c0_i32, %c0_i32_0 : i32, i32
  }
  func.func @transform_4(%arg0: i32) -> (i32, i32) {
    %c0_i32 = arith.constant 0 : i32
    %c0_i32_0 = arith.constant 0 : i32
    return %arg0, %c0_i32 : i32, i32
  }
}

</mosaic_0001>

<llo_original>
// kernel: tpu_custom_call.1
$region0: #{tpu_custom_call.1}
  #allocation0 [shape = 'u32[]', space=smem, size = 0x4, offset = 0x4, fixed_abs, tag = 'smem constant byte address 0x4 - core index']
  #allocation1 [shape = 'u32[144,128]{1,0:T(1,128)}', space=vmem, size = 0x12000, scoped, tag = 'internal scratch']
  %s0 = inlined_call_operand.vmem [shape: bf16[256,32], index: 0, kind: input, shape index: {}]
  %s1 = inlined_call_operand.vmem [shape: bf16[256,32], index: 1, kind: input, shape index: {}]
  %s2 = inlined_call_operand.vmem [shape: bf16[32,256], index: 2, kind: input, shape index: {}]
  %s3 = inlined_call_operand.vmem [shape: bf16[32,256], index: 3, kind: input, shape index: {}]
  %s4 = inlined_call_operand.hbm [shape: f32[256,256], index: 4, kind: output, shape index: {}]
  %s5 = sld [smem:[#allocation0]]
  $region49: #{tpu_custom_call.1} parent=0
    _
  %s7 = ssub.s32 1, %s5
  %s8 = scalar_select 0, %s7, %s5
  $region1: #{tpu_custom_call.1} parent=0
    #allocation2 [shape = 'u8[262144]{0}', space=vmem, size = 0x40000, scoped, tag = 'output window, operand 0']
    #allocation3 [shape = 's32[2]{0}', space=sflag, size = 0x8, scoped, tag = 'scoped memory for tpu_custom_call.1']
    %9 = vsyncpa [#allocation3], 0
    %s10 = scalar_lea.sflag [#allocation3], 1
    %11 = vsyncpa %s10, 0
    loop: start=0, step=1, limit=4
    $region2: #{tpu_custom_call.1} parent=1 // loop_pre_header
      _
    $region3: #{tpu_custom_call.1} parent=1 // loop_header
      %s13 = sphi 0, %s17
      %p14 = scmp.ge.s32.totalorder %s13, 4
      %s23 = sphi 0, %s25
      %s26 = sphi 0, %s23
      %s27 = sphi 0, %s26
      %s43 = sphi 0, %s27
      %s49 = sphi 0, %s51
      %s52 = sphi 0, %s49
      %s53 = sphi 0, %s52
      %s69 = sphi 0, %s53
      %s73 = sphi 0, %s73
      %s75 = sphi 0, %s73
      %s76 = sphi 0, %s75
      %s90 = sphi 0, %s76
      %s94 = sphi 0, %s94
      %s96 = sphi 0, %s94
      %s97 = sphi 0, %s96
      %s111 = sphi 0, %s97
      %s117 = sphi 0, %s119
      %s120 = sphi 0, %s117
      %s121 = sphi 0, %s120
      %s137 = sphi 0, %s121
    $region4: #{tpu_custom_call.1} parent=1 // loop_header_branch
      %16 = sbr.rel (%p14) target = $region8
    $region5: #{tpu_custom_call.1} parent=1 // loop_body
      %s18 = ssub.s32 %s13, 1
      %s19 = ssub.s32 %s13, 2
      %s20 = sadd.s32 %s13, 1
      %s21 = ssub.s32 %s13, %s20
      %p22 = scmp.eq.s32.totalorder %s21, 0
      %s24 = sadd.s32 %s23, 1
      %s25 = scalar_select %p22, %s23, %s24
      %p28 = pneg %p22
      %p29 = scmp.eq.s32.totalorder %s13, 1
      %p30 = por %p28, %p29
      %p31 = scmp.ne.s32.totalorder %s23, %s26
      %p32 = scmp.eq.s32.totalorder %s13, 0
      %p33 = por %p31, %p32
      %p34 = scmp.ne.s32.totalorder %s23, %s26
      %p35 = scmp.eq.s32.totalorder %s18, 1
      %p36 = por %p34, %p35
      %p37 = scmp.ne.s32.totalorder %s26, %s27
      %p38 = scmp.eq.s32.totalorder %s18, 0
      %p39 = por %p37, %p38
      %p40 = scmp.ne.s32.totalorder %s26, %s27
      %p41 = scmp.eq.s32.totalorder %s19, 1
      %p42 = por %p40, %p41
      %p44 = scmp.ne.s32.totalorder %s27, %s43
      %p45 = scmp.eq.s32.totalorder %s19, 0
      %p46 = por %p44, %p45
      %s47 = ssub.s32 %s13, %s20
      %p48 = scmp.eq.s32.totalorder %s47, 0
      %s50 = sadd.s32 %s49, 1
      %s51 = scalar_select %p48, %s49, %s50
      %p54 = pneg %p48
      %p55 = scmp.eq.s32.totalorder %s13, 1
      %p56 = por %p54, %p55
      %p57 = scmp.ne.s32.totalorder %s49, %s52
      %p58 = scmp.eq.s32.totalorder %s13, 0
      %p59 = por %p57, %p58
      %p60 = scmp.ne.s32.totalorder %s49, %s52
      %p61 = scmp.eq.s32.totalorder %s18, 1
      %p62 = por %p60, %p61
      %p63 = scmp.ne.s32.totalorder %s52, %s53
      %p64 = scmp.eq.s32.totalorder %s18, 0
      %p65 = por %p63, %p64
      %p66 = scmp.ne.s32.totalorder %s52, %s53
      %p67 = scmp.eq.s32.totalorder %s19, 1
      %p68 = por %p66, %p67
      %p70 = scmp.ne.s32.totalorder %s53, %s69
      %p71 = scmp.eq.s32.totalorder %s19, 0
      %p72 = por %p70, %p71
      %s74 = sadd.s32 %s73, 1
      %p77 = scmp.eq.s32.totalorder %s13, 1
      %p78 = scmp.ne.s32.totalorder %s73, %s75
      %p79 = scmp.eq.s32.totalorder %s13, 0
      %p80 = por %p78, %p79
      %p81 = scmp.ne.s32.totalorder %s73, %s75
      %p82 = scmp.eq.s32.totalorder %s18, 1
      %p83 = por %p81, %p82
      %p84 = scmp.ne.s32.totalorder %s75, %s76
      %p85 = scmp.eq.s32.totalorder %s18, 0
      %p86 = por %p84, %p85
      %p87 = scmp.ne.s32.totalorder %s75, %s76
      %p88 = scmp.eq.s32.totalorder %s19, 1
      %p89 = por %p87, %p88
      %p91 = scmp.ne.s32.totalorder %s76, %s90
      %p92 = scmp.eq.s32.totalorder %s19, 0
      %p93 = por %p91, %p92
      %s95 = sadd.s32 %s94, 1
      %p98 = scmp.eq.s32.totalorder %s13, 1
      %p99 = scmp.ne.s32.totalorder %s94, %s96
      %p100 = scmp.eq.s32.totalorder %s13, 0
      %p101 = por %p99, %p100
      %p102 = scmp.ne.s32.totalorder %s94, %s96
      %p103 = scmp.eq.s32.totalorder %s18, 1
      %p104 = por %p102, %p103
      %p105 = scmp.ne.s32.totalorder %s96, %s97
      %p106 = scmp.eq.s32.totalorder %s18, 0
      %p107 = por %p105, %p106
      %p108 = scmp.ne.s32.totalorder %s96, %s97
      %p109 = scmp.eq.s32.totalorder %s19, 1
      %p110 = por %p108, %p109
      %p112 = scmp.ne.s32.totalorder %s97, %s111
      %p113 = scmp.eq.s32.totalorder %s19, 0
      %p114 = por %p112, %p113
      %s115 = ssub.s32 %s13, %s20
      %p116 = scmp.eq.s32.totalorder %s115, 0
      %s118 = sadd.s32 %s117, 1
      %s119 = scalar_select %p116, %s117, %s118
      %p122 = pneg %p116
      %p123 = scmp.eq.s32.totalorder %s13, 1
      %p124 = por %p122, %p123
      %p125 = scmp.ne.s32.totalorder %s117, %s120
      %p126 = scmp.eq.s32.totalorder %s13, 0
      %p127 = por %p125, %p126
      %p128 = scmp.ne.s32.totalorder %s117, %s120
      %p129 = scmp.eq.s32.totalorder %s18, 1
      %p130 = por %p128, %p129
      %p131 = scmp.ne.s32.totalorder %s120, %s121
      %p132 = scmp.eq.s32.totalorder %s18, 0
      %p133 = por %p131, %p132
      %p134 = scmp.ne.s32.totalorder %s120, %s121
      %p135 = scmp.eq.s32.totalorder %s19, 1
      %p136 = por %p134, %p135
      %p138 = scmp.ne.s32.totalorder %s121, %s137
      %p139 = scmp.eq.s32.totalorder %s19, 0
      %p140 = por %p138, %p139
      %p141 = scmp.le.s32.totalorder 1, %s13
      %p142 = scmp.lt.s32.totalorder %s13, 3
      %p143 = pnand %p141, %p142
      %p144 = pneg %p143
      // Predicated region
      $region9: #{tpu_custom_call.1} parent=5 // pred_check
        _
      $region10: #{tpu_custom_call.1} parent=5 // pred_check_branch
        %146 = sbr.rel (%p143) target = $region12
      $region11: #{tpu_custom_call.1} parent=5 // pred_region
        %s147 = ssub.s32 %s13, 1
        // Predicated region
        $region13: #{tpu_custom_call.1} parent=11 // pred_check
          %p148 = pneg %p86
        $region14: #{tpu_custom_call.1} parent=11 // pred_check_branch
          %150 = sbr.rel (%p148) target = $region16
        $region15: #{tpu_custom_call.1} parent=11 // pred_region
          _
        $region16: #{tpu_custom_call.1} parent=11 // pred_fallthru
          _
        // Predicated region
        $region17: #{tpu_custom_call.1} parent=11 // pred_check
          %p151 = pneg %p107
        $region18: #{tpu_custom_call.1} parent=11 // pred_check_branch
          %153 = sbr.rel (%p151) target = $region20
        $region19: #{tpu_custom_call.1} parent=11 // pred_region
          _
        $region20: #{tpu_custom_call.1} parent=11 // pred_fallthru
          _
      $region12: #{tpu_custom_call.1} parent=5 // pred_fallthru
        _
      %p154 = scmp.lt.s32.totalorder %s13, 2
      // Predicated region
      $region21: #{tpu_custom_call.1} parent=5 // pred_check
        %p155 = pneg %p154
      $region22: #{tpu_custom_call.1} parent=5 // pred_check_branch
        %157 = sbr.rel (%p155) target = $region24
      $region23: #{tpu_custom_call.1} parent=5 // pred_region
        // Predicated region
        $region25: #{tpu_custom_call.1} parent=23 // pred_check
          %p158 = pneg %p33
        $region26: #{tpu_custom_call.1} parent=23 // pred_check_branch
          %160 = sbr.rel (%p158) target = $region28
        $region27: #{tpu_custom_call.1} parent=23 // pred_region
          %s161 = smul.u32 16, %s13
          %p162 = scmp.lt.s32.totalorder %s161, 31
          %s163 = scalar_select %p162, %s161, 31
          %s164 = smul.addr %s163, 4
          %s165 = scalar_lea.vmem %s0, %s164
          %s166 = smul.u32 16, %s13
        $region28: #{tpu_custom_call.1} parent=23 // pred_fallthru
          _
        // Predicated region
        $region29: #{tpu_custom_call.1} parent=23 // pred_check
          %p167 = pneg %p59
        $region30: #{tpu_custom_call.1} parent=23 // pred_check_branch
          %169 = sbr.rel (%p167) target = $region32
        $region31: #{tpu_custom_call.1} parent=23 // pred_region
          %s170 = smul.u32 16, %s13
          %p171 = scmp.lt.s32.totalorder %s170, 31
          %s172 = scalar_select %p171, %s170, 31
          %s173 = smul.addr %s172, 4
          %s174 = scalar_lea.vmem %s1, %s173
          %s175 = smul.u32 16, %s13
        $region32: #{tpu_custom_call.1} parent=23 // pred_fallthru
          _
      $region24: #{tpu_custom_call.1} parent=5 // pred_fallthru
        _
      %p176 = scmp.le.s32.totalorder 1, %s13
      %p177 = scmp.lt.s32.totalorder %s13, 3
      %p178 = pnand %p176, %p177
      %p179 = pneg %p178
      // Predicated region
      $region33: #{tpu_custom_call.1} parent=5 // pred_check
        _
      $region34: #{tpu_custom_call.1} parent=5 // pred_check_branch
        %181 = sbr.rel (%p178) target = $region36
      $region35: #{tpu_custom_call.1} parent=5 // pred_region
        %s182 = ssub.s32 %s13, 1
        %s183 = smul.u32 16, %s18
        %p184 = scmp.lt.s32.totalorder %s183, 31
        %s185 = scalar_select %p184, %s183, 31
        %s186 = smul.addr %s185, 4
        %s187 = scalar_lea.vmem %s0, %s186
        %p188 = pneg %p39
        %p189 = pneg %p36
        %s190 = smul.u32 16, %s18
        %p191 = scmp.lt.s32.totalorder %s190, 31
        %s192 = scalar_select %p191, %s190, 31
        %s193 = smul.addr %s192, 4
        %s194 = scalar_lea.vmem %s1, %s193
        %p195 = pneg %p65
        %p196 = pneg %p62
        %p197 = pneg %p86
        %p198 = pneg %p83
        %p199 = pneg %p107
        %p200 = pneg %p104
        %p201 = pneg %p133
        %p202 = pneg %p130
        %s203 = sand.u32 %s120, 1
        %s204 = scalar_lea.sflag [#allocation3], %s203
        %s205 = sand.u32 %s120, 1
        %s206 = smul.addr %s205, 256
        %s207 = scalar_lea.vmem [#allocation2], %s206
        %s208 = smul.u32 16, %s18
        %p209 = scmp.lt.s32.totalorder %s208, 31
        %s210 = scalar_select %p209, %s208, 31
        %s211 = smul.addr %s210, 4
        %s212 = scalar_lea.vmem %s0, %s211
        %s213 = smul.u32 16, %s18
        %s214 = smul.u32 16, %s18
        %p215 = scmp.lt.s32.totalorder %s214, 31
        %s216 = scalar_select %p215, %s214, 31
        %s217 = smul.addr %s216, 4
        %s218 = scalar_lea.vmem %s1, %s217
        %s219 = smul.u32 16, %s18
        %s220 = smul.u32 16, %s18
        %v222 = vld [vmem:[%s212] sm:$0xf]
        %v223 = vld [vmem:[%s212 + $0x4] sm:$0xf]
        %v224 = vld [vmem:[%s212 + $0x8] sm:$0xf]
        %v225 = vld [vmem:[%s212 + $0xc] sm:$0xf]
        %v226 = vld [vmem:[%s212 + $0x10] sm:$0xf]
        %v227 = vld [vmem:[%s212 + $0x14] sm:$0xf]
        %v228 = vld [vmem:[%s212 + $0x18] sm:$0xf]
        %v229 = vld [vmem:[%s212 + $0x1c] sm:$0xf]
        %v230 = vld [vmem:[%s212 + $0x20] sm:$0xf]
        %v231 = vld [vmem:[%s212 + $0x24] sm:$0xf]
        %v232 = vld [vmem:[%s212 + $0x28] sm:$0xf]
        %v233 = vld [vmem:[%s212 + $0x2c] sm:$0xf]
        %v234 = vld [vmem:[%s212 + $0x30] sm:$0xf]
        %v235 = vld [vmem:[%s212 + $0x34] sm:$0xf]
        %v236 = vld [vmem:[%s212 + $0x38] sm:$0xf]
        %v237 = vld [vmem:[%s212 + $0x3c] sm:$0xf]
        %v238 = vld [vmem:[%s2] sm:$0xff]
        %v239 = vld [vmem:[%s2 + $0x8] sm:$0xff]
        %v240 = vld [vmem:[%s2 + $0x10] sm:$0xff]
        %v241 = vld [vmem:[%s2 + $0x18] sm:$0xff]
        %v258 = vunpack.c.l.b16 %v222
        %v259 = vunpack.c.l.b16 %v223
        %v260 = vunpack.c.l.b16 %v224
        %v261 = vunpack.c.l.b16 %v225
        %v262 = vunpack.c.l.b16 %v226
        %v263 = vunpack.c.l.b16 %v227
        %v264 = vunpack.c.l.b16 %v228
        %v265 = vunpack.c.l.b16 %v229
        %v266 = vunpack.c.l.b16 %v230
        %v267 = vunpack.c.l.b16 %v231
        %v268 = vunpack.c.l.b16 %v232
        %v269 = vunpack.c.l.b16 %v233
        %v270 = vunpack.c.l.b16 %v234
        %v271 = vunpack.c.l.b16 %v235
        %v272 = vunpack.c.l.b16 %v236
        %v273 = vunpack.c.l.b16 %v237
        %v274 = vpack.c.b16 %v259, %v258
        %v275 = vpack.c.b16 %v261, %v260
        %v276 = vpack.c.b16 %v263, %v262
        %v277 = vpack.c.b16 %v265, %v264
        %v278 = vpack.c.b16 %v267, %v266
        %v279 = vpack.c.b16 %v269, %v268
        %v280 = vpack.c.b16 %v271, %v270
        %v281 = vpack.c.b16 %v273, %v272
        %v286 = vunpack.c.l.b16 %v238
        %v287 = vunpack.c.h.b16 %v238
        %v288 = vunpack.c.l.b16 %v239
        %v289 = vunpack.c.h.b16 %v239
        %v290 = vunpack.c.l.b16 %v240
        %v291 = vunpack.c.h.b16 %v240
        %v292 = vunpack.c.l.b16 %v241
        %v293 = vunpack.c.h.b16 %v241
        %v294 = vpack.c.b16 %v288, %v286
        %v295 = vpack.c.b16 %v289, %v287
        %v296 = vpack.c.b16 %v292, %v290
        %v297 = vpack.c.b16 %v293, %v291
        %vm302 = vcmask 261120
        %v304 = vsel %vm302, %v274, 0
        %v307 = vsel %vm302, %v275, 0
        %v310 = vsel %vm302, %v276, 0
        %v313 = vsel %vm302, %v277, 0
        %v316 = vsel %vm302, %v278, 0
        %v319 = vsel %vm302, %v279, 0
        %v322 = vsel %vm302, %v280, 0
        %v325 = vsel %vm302, %v281, 0
        %327 = vmatprep.subr.bf16.mxu0 %v295
        %328 = vmatpush1.bf16.msra.mxu0 %v294
        %329 = vmatprep.subr.bf16.mxu0 %v297
        %330 = vmatpush1.bf16.msra.mxu0 %v296
        %331 = vmatprep.subr.bf16.mxu0 0
        %332 = vmatpush1.bf16.msra.mxu0 0
        %333 = vmatprep.subr.bf16.mxu0 0
        %334 = vmatpush1.bf16.msra.mxu0 0
        %335 = vmatprep.subr.bf16.mxu0 0
        %336 = vmatpush1.bf16.msra.mxu0 0
        %337 = vmatprep.subr.bf16.mxu0 0
        %338 = vmatpush1.bf16.msra.mxu0 0
        %339 = vmatprep.subr.bf16.mxu0 0
        %340 = vmatpush1.bf16.msra.mxu0 0
        %341 = vmatprep.subr.bf16.mxu0 0
        %342 = vmatpush1.bf16.msra.mxu0 0
        %343 = vmatprep.subr.bf16.mxu0 0
        %344 = vmatpush1.bf16.msra.mxu0 0
        %345 = vmatprep.subr.bf16.mxu0 0
        %346 = vmatpush1.bf16.msra.mxu0 0
        %347 = vmatprep.subr.bf16.mxu0 0
        %348 = vmatpush1.bf16.msra.mxu0 0
        %349 = vmatprep.subr.bf16.mxu0 0
        %350 = vmatpush1.bf16.msra.mxu0 0
        %351 = vmatprep.subr.bf16.mxu0 0
        %352 = vmatpush1.bf16.msra.mxu0 0
        %353 = vmatprep.subr.bf16.mxu0 0
        %354 = vmatpush1.bf16.msra.mxu0 0
        %355 = vmatprep.subr.bf16.mxu0 0
        %356 = vmatpush1.bf16.msra.mxu0 0
        %357 = vmatprep.subr.bf16.mxu0 0
        %358 = vmatpush1.bf16.msra.mxu0 0
        %359 = vmatprep.mubr.bf16.mxu0 0
        %360 = vmatmul.mubr.bf16.gmra.mrb[0].mxu0 %v304
        %v361 = vpop.f32.mrb[0].mxu0
        %v362 = vadd.f32 0.0, %v361
        %v363 = vpop.f32.mrb[0].mxu0
        %v364 = vadd.f32 0.0, %v363
        %v365 = vpop.f32.mrb[0].mxu0
        %v366 = vadd.f32 0.0, %v365
        %v367 = vpop.f32.mrb[0].mxu0
        %v368 = vadd.f32 0.0, %v367
        %369 = vmatprep.mubr.bf16.mxu0 0
        %370 = vmatmul.mubr.bf16.gmra.mrb[0].mxu0 %v307
        %v371 = vpop.f32.mrb[0].mxu0
        %v372 = vadd.f32 0.0, %v371
        %v373 = vpop.f32.mrb[0].mxu0
        %v374 = vadd.f32 0.0, %v373
        %v375 = vpop.f32.mrb[0].mxu0
        %v376 = vadd.f32 0.0, %v375
        %v377 = vpop.f32.mrb[0].mxu0
        %v378 = vadd.f32 0.0, %v377
        %379 = vmatprep.mubr.bf16.mxu0 0
        %380 = vmatmul.mubr.bf16.gmra.mrb[0].mxu0 %v310
        %v381 = vpop.f32.mrb[0].mxu0
        %v382 = vadd.f32 0.0, %v381
        %v383 = vpop.f32.mrb[0].mxu0
        %v384 = vadd.f32 0.0, %v383
        %v385 = vpop.f32.mrb[0].mxu0
        %v386 = vadd.f32 0.0, %v385
        %v387 = vpop.f32.mrb[0].mxu0
        %v388 = vadd.f32 0.0, %v387
        %389 = vmatprep.mubr.bf16.mxu0 0
        %390 = vmatmul.mubr.bf16.gmra.mrb[0].mxu0 %v313
        %v391 = vpop.f32.mrb[0].mxu0
        %v392 = vadd.f32 0.0, %v391
        %v393 = vpop.f32.mrb[0].mxu0
        %v394 = vadd.f32 0.0, %v393
        %v395 = vpop.f32.mrb[0].mxu0
        %v396 = vadd.f32 0.0, %v395
        %v397 = vpop.f32.mrb[0].mxu0
        %v398 = vadd.f32 0.0, %v397
        %399 = vmatprep.mubr.bf16.mxu0 0
        %400 = vmatmul.mubr.bf16.gmra.mrb[0].mxu0 %v316
        %v401 = vpop.f32.mrb[0].mxu0
        %v402 = vadd.f32 0.0, %v401
        %v403 = vpop.f32.mrb[0].mxu0
        %v404 = vadd.f32 0.0, %v403
        %v405 = vpop.f32.mrb[0].mxu0
        %v406 = vadd.f32 0.0, %v405
        %v407 = vpop.f32.mrb[0].mxu0
        %v408 = vadd.f32 0.0, %v407
        %409 = vmatprep.mubr.bf16.mxu0 0
        %410 = vmatmul.mubr.bf16.gmra.mrb[0].mxu0 %v319
        %v411 = vpop.f32.mrb[0].mxu0
        %v412 = vadd.f32 0.0, %v411
        %v413 = vpop.f32.mrb[0].mxu0
        %v414 = vadd.f32 0.0, %v413
        %v415 = vpop.f32.mrb[0].mxu0
        %v416 = vadd.f32 0.0, %v415
        %v417 = vpop.f32.mrb[0].mxu0
        %v418 = vadd.f32 0.0, %v417
        %419 = vmatprep.mubr.bf16.mxu0 0
        %420 = vmatmul.mubr.bf16.gmra.mrb[0].mxu0 %v322
        %v421 = vpop.f32.mrb[0].mxu0
        %v422 = vadd.f32 0.0, %v421
        %v423 = vpop.f32.mrb[0].mxu0
        %v424 = vadd.f32 0.0, %v423
        %v425 = vpop.f32.mrb[0].mxu0
        %v426 = vadd.f32 0.0, %v425
        %v427 = vpop.f32.mrb[0].mxu0
        %v428 = vadd.f32 0.0, %v427
        %429 = vmatprep.mubr.bf16.mxu0 0
        %430 = vmatmul.mubr.bf16.gmra.mrb[0].mxu0 %v325
        %v431 = vpop.f32.mrb[0].mxu0
        %v432 = vadd.f32 0.0, %v431
        %v433 = vpop.f32.mrb[0].mxu0
        %v434 = vadd.f32 0.0, %v433
        %v435 = vpop.f32.mrb[0].mxu0
        %v436 = vadd.f32 0.0, %v435
        %v437 = vpop.f32.mrb[0].mxu0
        %v438 = vadd.f32 0.0, %v437
        %439 = vdwg.mxu0
        %v440 = vld [vmem:[%s218] sm:$0xf]
        %v441 = vld [vmem:[%s218 + $0x4] sm:$0xf]
        %v442 = vld [vmem:[%s218 + $0x8] sm:$0xf]
        %v443 = vld [vmem:[%s218 + $0xc] sm:$0xf]
        %v444 = vld [vmem:[%s218 + $0x10] sm:$0xf]
        %v445 = vld [vmem:[%s218 + $0x14] sm:$0xf]
        %v446 = vld [vmem:[%s218 + $0x18] sm:$0xf]
        %v447 = vld [vmem:[%s218 + $0x1c] sm:$0xf]
        %v448 = vld [vmem:[%s218 + $0x20] sm:$0xf]
        %v449 = vld [vmem:[%s218 + $0x24] sm:$0xf]
        %v450 = vld [vmem:[%s218 + $0x28] sm:$0xf]
        %v451 = vld [vmem:[%s218 + $0x2c] sm:$0xf]
        %v452 = vld [vmem:[%s218 + $0x30] sm:$0xf]
        %v453 = vld [vmem:[%s218 + $0x34] sm:$0xf]
        %v454 = vld [vmem:[%s218 + $0x38] sm:$0xf]
        %v455 = vld [vmem:[%s218 + $0x3c] sm:$0xf]
        %v456 = vld [vmem:[%s3] sm:$0xff]
        %v457 = vld [vmem:[%s3 + $0x8] sm:$0xff]
        %v458 = vld [vmem:[%s3 + $0x10] sm:$0xff]
        %v459 = vld [vmem:[%s3 + $0x18] sm:$0xff]
        %v476 = vunpack.c.l.b16 %v440
        %v477 = vunpack.c.l.b16 %v441
        %v478 = vunpack.c.l.b16 %v442
        %v479 = vunpack.c.l.b16 %v443
        %v480 = vunpack.c.l.b16 %v444
        %v481 = vunpack.c.l.b16 %v445
        %v482 = vunpack.c.l.b16 %v446
        %v483 = vunpack.c.l.b16 %v447
        %v484 = vunpack.c.l.b16 %v448
        %v485 = vunpack.c.l.b16 %v449
        %v486 = vunpack.c.l.b16 %v450
        %v487 = vunpack.c.l.b16 %v451
        %v488 = vunpack.c.l.b16 %v452
        %v489 = vunpack.c.l.b16 %v453
        %v490 = vunpack.c.l.b16 %v454
        %v491 = vunpack.c.l.b16 %v455
        %v492 = vpack.c.b16 %v477, %v476
        %v493 = vpack.c.b16 %v479, %v478
        %v494 = vpack.c.b16 %v481, %v480
        %v495 = vpack.c.b16 %v483, %v482
        %v496 = vpack.c.b16 %v485, %v484
        %v497 = vpack.c.b16 %v487, %v486
        %v498 = vpack.c.b16 %v489, %v488
        %v499 = vpack.c.b16 %v491, %v490
        %v504 = vunpack.c.l.b16 %v456
        %v505 = vunpack.c.h.b16 %v456
        %v506 = vunpack.c.l.b16 %v457
        %v507 = vunpack.c.h.b16 %v457
        %v508 = vunpack.c.l.b16 %v458
        %v509 = vunpack.c.h.b16 %v458
        %v510 = vunpack.c.l.b16 %v459
        %v511 = vunpack.c.h.b16 %v459
        %v512 = vpack.c.b16 %v506, %v504
        %v513 = vpack.c.b16 %v507, %v505
        %v514 = vpack.c.b16 %v510, %v508
        %v515 = vpack.c.b16 %v511, %v509
        %v521 = vsel %vm302, %v492, 0
        %v524 = vsel %vm302, %v493, 0
        %v527 = vsel %vm302, %v494, 0
        %v530 = vsel %vm302, %v495, 0
        %v533 = vsel %vm302, %v496, 0
        %v536 = vsel %vm302, %v497, 0
        %v539 = vsel %vm302, %v498, 0
        %v542 = vsel %vm302, %v499, 0
        %544 = vmatprep.subr.bf16.mxu0 %v513
        %545 = vmatpush1.bf16.msra.mxu0 %v512
        %546 = vmatprep.subr.bf16.mxu0 %v515
        %547 = vmatpush1.bf16.msra.mxu0 %v514
        %548 = vmatprep.subr.bf16.mxu0 0
        %549 = vmatpush1.bf16.msra.mxu0 0
        %550 = vmatprep.subr.bf16.mxu0 0
        %551 = vmatpush1.bf16.msra.mxu0 0
        %552 = vmatprep.subr.bf16.mxu0 0
        %553 = vmatpush1.bf16.msra.mxu0 0
        %554 = vmatprep.subr.bf16.mxu0 0
        %555 = vmatpush1.bf16.msra.mxu0 0
        %556 = vmatprep.subr.bf16.mxu0 0
        %557 = vmatpush1.bf16.msra.mxu0 0
        %558 = vmatprep.subr.bf16.mxu0 0
        %559 = vmatpush1.bf16.msra.mxu0 0
        %560 = vmatprep.subr.bf16.mxu0 0
        %561 = vmatpush1.bf16.msra.mxu0 0
        %562 = vmatprep.subr.bf16.mxu0 0
        %563 = vmatpush1.bf16.msra.mxu0 0
        %564 = vmatprep.subr.bf16.mxu0 0
        %565 = vmatpush1.bf16.msra.mxu0 0
        %566 = vmatprep.subr.bf16.mxu0 0
        %567 = vmatpush1.bf16.msra.mxu0 0
        %568 = vmatprep.subr.bf16.mxu0 0
        %569 = vmatpush1.bf16.msra.mxu0 0
        %570 = vmatprep.subr.bf16.mxu0 0
        %571 = vmatpush1.bf16.msra.mxu0 0
        %572 = vmatprep.subr.bf16.mxu0 0
        %573 = vmatpush1.bf16.msra.mxu0 0
        %574 = vmatprep.subr.bf16.mxu0 0
        %575 = vmatpush1.bf16.msra.mxu0 0
        %576 = vmatprep.mubr.bf16.mxu0 0
        %577 = vmatmul.mubr.bf16.gmra.mrb[0].mxu0 %v521
        %v578 = vpop.f32.mrb[0].mxu0
        %v579 = vadd.f32 0.0, %v578
        %v580 = vpop.f32.mrb[0].mxu0
        %v581 = vadd.f32 0.0, %v580
        %v582 = vpop.f32.mrb[0].mxu0
        %v583 = vadd.f32 0.0, %v582
        %v584 = vpop.f32.mrb[0].mxu0
        %v585 = vadd.f32 0.0, %v584
        %586 = vmatprep.mubr.bf16.mxu0 0
        %587 = vmatmul.mubr.bf16.gmra.mrb[0].mxu0 %v524
        %v588 = vpop.f32.mrb[0].mxu0
        %v589 = vadd.f32 0.0, %v588
        %v590 = vpop.f32.mrb[0].mxu0
        %v591 = vadd.f32 0.0, %v590
        %v592 = vpop.f32.mrb[0].mxu0
        %v593 = vadd.f32 0.0, %v592
        %v594 = vpop.f32.mrb[0].mxu0
        %v595 = vadd.f32 0.0, %v594
        %596 = vmatprep.mubr.bf16.mxu0 0
        %597 = vmatmul.mubr.bf16.gmra.mrb[0].mxu0 %v527
        %v598 = vpop.f32.mrb[0].mxu0
        %v599 = vadd.f32 0.0, %v598
        %v600 = vpop.f32.mrb[0].mxu0
        %v601 = vadd.f32 0.0, %v600
        %v602 = vpop.f32.mrb[0].mxu0
        %v603 = vadd.f32 0.0, %v602
        %v604 = vpop.f32.mrb[0].mxu0
        %v605 = vadd.f32 0.0, %v604
        %606 = vmatprep.mubr.bf16.mxu0 0
        %607 = vmatmul.mubr.bf16.gmra.mrb[0].mxu0 %v530
        %v608 = vpop.f32.mrb[0].mxu0
        %v609 = vadd.f32 0.0, %v608
        %v610 = vpop.f32.mrb[0].mxu0
        %v611 = vadd.f32 0.0, %v610
        %v612 = vpop.f32.mrb[0].mxu0
        %v613 = vadd.f32 0.0, %v612
        %v614 = vpop.f32.mrb[0].mxu0
        %v615 = vadd.f32 0.0, %v614
        %616 = vmatprep.mubr.bf16.mxu0 0
        %617 = vmatmul.mubr.bf16.gmra.mrb[0].mxu0 %v533
        %v618 = vpop.f32.mrb[0].mxu0
        %v619 = vadd.f32 0.0, %v618
        %v620 = vpop.f32.mrb[0].mxu0
        %v621 = vadd.f32 0.0, %v620
        %v622 = vpop.f32.mrb[0].mxu0
        %v623 = vadd.f32 0.0, %v622
        %v624 = vpop.f32.mrb[0].mxu0
        %v625 = vadd.f32 0.0, %v624
        %626 = vmatprep.mubr.bf16.mxu0 0
        %627 = vmatmul.mubr.bf16.gmra.mrb[0].mxu0 %v536
        %v628 = vpop.f32.mrb[0].mxu0
        %v629 = vadd.f32 0.0, %v628
        %v630 = vpop.f32.mrb[0].mxu0
        %v631 = vadd.f32 0.0, %v630
        %v632 = vpop.f32.mrb[0].mxu0
        %v633 = vadd.f32 0.0, %v632
        %v634 = vpop.f32.mrb[0].mxu0
        %v635 = vadd.f32 0.0, %v634
        %636 = vmatprep.mubr.bf16.mxu0 0
        %637 = vmatmul.mubr.bf16.gmra.mrb[0].mxu0 %v539
        %v638 = vpop.f32.mrb[0].mxu0
        %v639 = vadd.f32 0.0, %v638
        %v640 = vpop.f32.mrb[0].mxu0
        %v641 = vadd.f32 0.0, %v640
        %v642 = vpop.f32.mrb[0].mxu0
        %v643 = vadd.f32 0.0, %v642
        %v644 = vpop.f32.mrb[0].mxu0
        %v645 = vadd.f32 0.0, %v644
        %646 = vmatprep.mubr.bf16.mxu0 0
        %647 = vmatmul.mubr.bf16.gmra.mrb[0].mxu0 %v542
        %v648 = vpop.f32.mrb[0].mxu0
        %v649 = vadd.f32 0.0, %v648
        %v650 = vpop.f32.mrb[0].mxu0
        %v651 = vadd.f32 0.0, %v650
        %v652 = vpop.f32.mrb[0].mxu0
        %v653 = vadd.f32 0.0, %v652
        %v654 = vpop.f32.mrb[0].mxu0
        %v655 = vadd.f32 0.0, %v654
        %656 = vdwg.mxu0
        %v657 = vsub.f32 %v362, %v579
        %v658 = vsub.f32 %v364, %v581
        %v659 = vsub.f32 %v366, %v583
        %v660 = vsub.f32 %v368, %v585
        %v661 = vsub.f32 %v372, %v589
        %v662 = vsub.f32 %v374, %v591
        %v663 = vsub.f32 %v376, %v593
        %v664 = vsub.f32 %v378, %v595
        %v665 = vsub.f32 %v382, %v599
        %v666 = vsub.f32 %v384, %v601
        %v667 = vsub.f32 %v386, %v603
        %v668 = vsub.f32 %v388, %v605
        %v669 = vsub.f32 %v392, %v609
        %v670 = vsub.f32 %v394, %v611
        %v671 = vsub.f32 %v396, %v613
        %v672 = vsub.f32 %v398, %v615
        %v673 = vsub.f32 %v402, %v619
        %v674 = vsub.f32 %v404, %v621
        %v675 = vsub.f32 %v406, %v623
        %v676 = vsub.f32 %v408, %v625
        %v677 = vsub.f32 %v412, %v629
        %v678 = vsub.f32 %v414, %v631
        %v679 = vsub.f32 %v416, %v633
        %v680 = vsub.f32 %v418, %v635
        %v681 = vsub.f32 %v422, %v639
        %v682 = vsub.f32 %v424, %v641
        %v683 = vsub.f32 %v426, %v643
        %v684 = vsub.f32 %v428, %v645
        %v685 = vsub.f32 %v432, %v649
        %v686 = vsub.f32 %v434, %v651
        %v687 = vsub.f32 %v436, %v653
        %v688 = vsub.f32 %v438, %v655
        %v689 = vmul.f32 %v657, 3.0
        %v690 = vmul.f32 %v658, 3.0
        %v691 = vmul.f32 %v659, 3.0
        %v692 = vmul.f32 %v660, 3.0
        %v693 = vmul.f32 %v661, 3.0
        %v694 = vmul.f32 %v662, 3.0
        %v695 = vmul.f32 %v663, 3.0
        %v696 = vmul.f32 %v664, 3.0
        %v697 = vmul.f32 %v665, 3.0
        %v698 = vmul.f32 %v666, 3.0
        %v699 = vmul.f32 %v667, 3.0
        %v700 = vmul.f32 %v668, 3.0
        %v701 = vmul.f32 %v669, 3.0
        %v702 = vmul.f32 %v670, 3.0
        %v703 = vmul.f32 %v671, 3.0
        %v704 = vmul.f32 %v672, 3.0
        %v705 = vmul.f32 %v673, 3.0
        %v706 = vmul.f32 %v674, 3.0
        %v707 = vmul.f32 %v675, 3.0
        %v708 = vmul.f32 %v676, 3.0
        %v709 = vmul.f32 %v677, 3.0
        %v710 = vmul.f32 %v678, 3.0
        %v711 = vmul.f32 %v679, 3.0
        %v712 = vmul.f32 %v680, 3.0
        %v713 = vmul.f32 %v681, 3.0
        %v714 = vmul.f32 %v682, 3.0
        %v715 = vmul.f32 %v683, 3.0
        %v716 = vmul.f32 %v684, 3.0
        %v717 = vmul.f32 %v685, 3.0
        %v718 = vmul.f32 %v686, 3.0
        %v719 = vmul.f32 %v687, 3.0
        %v720 = vmul.f32 %v688, 3.0
        %v721 = vtanh.pop %v689
        %v722 = vtanh.pop %v690
        %v723 = vtanh.pop %v691
        %v724 = vtanh.pop %v692
        %v725 = vtanh.pop %v693
        %v726 = vtanh.pop %v694
        %v727 = vtanh.pop %v695
        %v728 = vtanh.pop %v696
        %v729 = vtanh.pop %v697
        %v730 = vtanh.pop %v698
        %v731 = vtanh.pop %v699
        %v732 = vtanh.pop %v700
        %v733 = vtanh.pop %v701
        %v734 = vtanh.pop %v702
        %v735 = vtanh.pop %v703
        %v736 = vtanh.pop %v704
        %v737 = vtanh.pop %v705
        %v738 = vtanh.pop %v706
        %v739 = vtanh.pop %v707
        %v740 = vtanh.pop %v708
        %v741 = vtanh.pop %v709
        %v742 = vtanh.pop %v710
        %v743 = vtanh.pop %v711
        %v744 = vtanh.pop %v712
        %v745 = vtanh.pop %v713
        %v746 = vtanh.pop %v714
        %v747 = vtanh.pop %v715
        %v748 = vtanh.pop %v716
        %v749 = vtanh.pop %v717
        %v750 = vtanh.pop %v718
        %v751 = vtanh.pop %v719
        %v752 = vtanh.pop %v720
        %v753 = vmax.f32 %v721, 0.0
        %v754 = vmax.f32 %v722, 0.0
        %v755 = vmax.f32 %v723, 0.0
        %v756 = vmax.f32 %v724, 0.0
        %v757 = vmax.f32 %v725, 0.0
        %v758 = vmax.f32 %v726, 0.0
        %v759 = vmax.f32 %v727, 0.0
        %v760 = vmax.f32 %v728, 0.0
        %v761 = vmax.f32 %v729, 0.0
        %v762 = vmax.f32 %v730, 0.0
        %v763 = vmax.f32 %v731, 0.0
        %v764 = vmax.f32 %v732, 0.0
        %v765 = vmax.f32 %v733, 0.0
        %v766 = vmax.f32 %v734, 0.0
        %v767 = vmax.f32 %v735, 0.0
        %v768 = vmax.f32 %v736, 0.0
        %v769 = vmax.f32 %v737, 0.0
        %v770 = vmax.f32 %v738, 0.0
        %v771 = vmax.f32 %v739, 0.0
        %v772 = vmax.f32 %v740, 0.0
        %v773 = vmax.f32 %v741, 0.0
        %v774 = vmax.f32 %v742, 0.0
        %v775 = vmax.f32 %v743, 0.0
        %v776 = vmax.f32 %v744, 0.0
        %v777 = vmax.f32 %v745, 0.0
        %v778 = vmax.f32 %v746, 0.0
        %v779 = vmax.f32 %v747, 0.0
        %v780 = vmax.f32 %v748, 0.0
        %v781 = vmax.f32 %v749, 0.0
        %v782 = vmax.f32 %v750, 0.0
        %v783 = vmax.f32 %v751, 0.0
        %v784 = vmax.f32 %v752, 0.0
        %v785 = vlaneseq
        %v786 = vand.u32 %v785, 127
        %v787 = vadd.s32 %v786, 128
        %vm788 = vcmp.lt.s32.totalorder %v786, 200
        %vm789 = vcmp.lt.s32.totalorder %v787, 200
        %v790 = vsel %vm788, %v753, -inf
        %v791 = vsel %vm789, %v754, -inf
        %v792 = vsel %vm788, %v755, -inf
        %v793 = vsel %vm789, %v756, -inf
        %v794 = vsel %vm788, %v757, -inf
        %v795 = vsel %vm789, %v758, -inf
        %v796 = vsel %vm788, %v759, -inf
        %v797 = vsel %vm789, %v760, -inf
        %v798 = vsel %vm788, %v761, -inf
        %v799 = vsel %vm789, %v762, -inf
        %v800 = vsel %vm788, %v763, -inf
        %v801 = vsel %vm789, %v764, -inf
        %v802 = vsel %vm788, %v765, -inf
        %v803 = vsel %vm789, %v766, -inf
        %v804 = vsel %vm788, %v767, -inf
        %v805 = vsel %vm789, %v768, -inf
        %v806 = vsel %vm788, %v769, -inf
        %v807 = vsel %vm789, %v770, -inf
        %v808 = vsel %vm788, %v771, -inf
        %v809 = vsel %vm789, %v772, -inf
        %v810 = vsel %vm788, %v773, -inf
        %v811 = vsel %vm789, %v774, -inf
        %v812 = vsel %vm788, %v775, -inf
        %v813 = vsel %vm789, %v776, -inf
        %v814 = vsel %vm788, %v777, -inf
        %v815 = vsel %vm789, %v778, -inf
        %v816 = vsel %vm788, %v779, -inf
        %v817 = vsel %vm789, %v780, -inf
        %v818 = vsel %vm788, %v781, -inf
        %v819 = vsel %vm789, %v782, -inf
        %v820 = vsel %vm788, %v783, -inf
        %v821 = vsel %vm789, %v784, -inf
        %v822 = vmax.f32 %v790, %v791
        %823 = vmax.xlane.f32.xlu0 %v822
        %v824 = vpop.xlane.xlu0 %823
        %v825 = vmax.f32 %v792, %v793
        %826 = vmax.xlane.f32.xlu0 %v825
        %v827 = vpop.xlane.xlu0 %826
        %v828 = vmax.f32 %v794, %v795
        %829 = vmax.xlane.f32.xlu0 %v828
        %v830 = vpop.xlane.xlu0 %829
        %v831 = vmax.f32 %v796, %v797
        %832 = vmax.xlane.f32.xlu0 %v831
        %v833 = vpop.xlane.xlu0 %832
        %v834 = vmax.f32 %v798, %v799
        %835 = vmax.xlane.f32.xlu0 %v834
        %v836 = vpop.xlane.xlu0 %835
        %v837 = vmax.f32 %v800, %v801
        %838 = vmax.xlane.f32.xlu0 %v837
        %v839 = vpop.xlane.xlu0 %838
        %v840 = vmax.f32 %v802, %v803
        %841 = vmax.xlane.f32.xlu0 %v840
        %v842 = vpop.xlane.xlu0 %841
        %v843 = vmax.f32 %v804, %v805
        %844 = vmax.xlane.f32.xlu0 %v843
        %v845 = vpop.xlane.xlu0 %844
        %v846 = vmax.f32 %v806, %v807
        %847 = vmax.xlane.f32.xlu0 %v846
        %v848 = vpop.xlane.xlu0 %847
        %v849 = vmax.f32 %v808, %v809
        %850 = vmax.xlane.f32.xlu0 %v849
        %v851 = vpop.xlane.xlu0 %850
        %v852 = vmax.f32 %v810, %v811
        %853 = vmax.xlane.f32.xlu0 %v852
        %v854 = vpop.xlane.xlu0 %853
        %v855 = vmax.f32 %v812, %v813
        %856 = vmax.xlane.f32.xlu0 %v855
        %v857 = vpop.xlane.xlu0 %856
        %v858 = vmax.f32 %v814, %v815
        %859 = vmax.xlane.f32.xlu0 %v858
        %v860 = vpop.xlane.xlu0 %859
        %v861 = vmax.f32 %v816, %v817
        %862 = vmax.xlane.f32.xlu0 %v861
        %v863 = vpop.xlane.xlu0 %862
        %v864 = vmax.f32 %v818, %v819
        %865 = vmax.xlane.f32.xlu0 %v864
        %v866 = vpop.xlane.xlu0 %865
        %v867 = vmax.f32 %v820, %v821
        %868 = vmax.xlane.f32.xlu0 %v867
        %v869 = vpop.xlane.xlu0 %868
        %vm870 = vcmp.ge.f32.partialorder %v790, %v824
        %vm871 = vcmp.ge.f32.partialorder %v791, %v824
        %vm872 = vcmp.ge.f32.partialorder %v792, %v827
        %vm873 = vcmp.ge.f32.partialorder %v793, %v827
        %vm874 = vcmp.ge.f32.partialorder %v794, %v830
        %vm875 = vcmp.ge.f32.partialorder %v795, %v830
        %vm876 = vcmp.ge.f32.partialorder %v796, %v833
        %vm877 = vcmp.ge.f32.partialorder %v797, %v833
        %vm878 = vcmp.ge.f32.partialorder %v798, %v836
        %vm879 = vcmp.ge.f32.partialorder %v799, %v836
        %vm880 = vcmp.ge.f32.partialorder %v800, %v839
        %vm881 = vcmp.ge.f32.partialorder %v801, %v839
        %vm882 = vcmp.ge.f32.partialorder %v802, %v842
        %vm883 = vcmp.ge.f32.partialorder %v803, %v842
        %vm884 = vcmp.ge.f32.partialorder %v804, %v845
        %vm885 = vcmp.ge.f32.partialorder %v805, %v845
        %vm886 = vcmp.ge.f32.partialorder %v806, %v848
        %vm887 = vcmp.ge.f32.partialorder %v807, %v848
        %vm888 = vcmp.ge.f32.partialorder %v808, %v851
        %vm889 = vcmp.ge.f32.partialorder %v809, %v851
        %vm890 = vcmp.ge.f32.partialorder %v810, %v854
        %vm891 = vcmp.ge.f32.partialorder %v811, %v854
        %vm892 = vcmp.ge.f32.partialorder %v812, %v857
        %vm893 = vcmp.ge.f32.partialorder %v813, %v857
        %vm894 = vcmp.ge.f32.partialorder %v814, %v860
        %vm895 = vcmp.ge.f32.partialorder %v815, %v860
        %vm896 = vcmp.ge.f32.partialorder %v816, %v863
        %vm897 = vcmp.ge.f32.partialorder %v817, %v863
        %vm898 = vcmp.ge.f32.partialorder %v818, %v866
        %vm899 = vcmp.ge.f32.partialorder %v819, %v866
        %vm900 = vcmp.ge.f32.partialorder %v820, %v869
        %vm901 = vcmp.ge.f32.partialorder %v821, %v869
        %v902 = vsel %vm870, %v786, 256
        %v903 = vsel %vm871, %v787, 256
        %v904 = vsel %vm872, %v786, 256
        %v905 = vsel %vm873, %v787, 256
        %v906 = vsel %vm874, %v786, 256
        %v907 = vsel %vm875, %v787, 256
        %v908 = vsel %vm876, %v786, 256
        %v909 = vsel %vm877, %v787, 256
        %v910 = vsel %vm878, %v786, 256
        %v911 = vsel %vm879, %v787, 256
        %v912 = vsel %vm880, %v786, 256
        %v913 = vsel %vm881, %v787, 256
        %v914 = vsel %vm882, %v786, 256
        %v915 = vsel %vm883, %v787, 256
        %v916 = vsel %vm884, %v786, 256
        %v917 = vsel %vm885, %v787, 256
        %v918 = vsel %vm886, %v786, 256
        %v919 = vsel %vm887, %v787, 256
        %v920 = vsel %vm888, %v786, 256
        %v921 = vsel %vm889, %v787, 256
        %v922 = vsel %vm890, %v786, 256
        %v923 = vsel %vm891, %v787, 256
        %v924 = vsel %vm892, %v786, 256
        %v925 = vsel %vm893, %v787, 256
        %v926 = vsel %vm894, %v786, 256
        %v927 = vsel %vm895, %v787, 256
        %v928 = vsel %vm896, %v786, 256
        %v929 = vsel %vm897, %v787, 256
        %v930 = vsel %vm898, %v786, 256
        %v931 = vsel %vm899, %v787, 256
        %v932 = vsel %vm900, %v786, 256
        %v933 = vsel %vm901, %v787, 256
        %vm934 = vcmp.lt.s32.totalorder %v902, %v903
        %v935 = vsel %vm934, %v902, %v903
        %v936 = vand.u32 %v935, 65535
        %v937 = vshra.s32 %v935, 16
        %v938 = vcvt.s32.f32 %v936
        %v939 = vcvt.s32.f32 %v937
        %940 = vmin.xlane.f32.xlu0 %v939
        %v941 = vpop.xlane.xlu0 %940
        %vm942 = vcmp.eq.f32.partialorder %v939, %v941
        %v943 = vsel %vm942, %v938, inf
        %944 = vmin.xlane.f32.xlu0 %v943
        %v945 = vpop.xlane.xlu0 %944
        %v946 = vcvt.f32.s32 %v945
        %v947 = vcvt.f32.s32 %v941
        %v948 = vshll.u32 %v947, 16
        %v949 = vadd.s32 %v948, %v946
        %vm950 = vcmp.lt.s32.totalorder %v904, %v905
        %v951 = vsel %vm950, %v904, %v905
        %v952 = vand.u32 %v951, 65535
        %v953 = vshra.s32 %v951, 16
        %v954 = vcvt.s32.f32 %v952
        %v955 = vcvt.s32.f32 %v953
        %956 = vmin.xlane.f32.xlu0 %v955
        %v957 = vpop.xlane.xlu0 %956
        %vm958 = vcmp.eq.f32.partialorder %v955, %v957
        %v959 = vsel %vm958, %v954, inf
        %960 = vmin.xlane.f32.xlu0 %v959
        %v961 = vpop.xlane.xlu0 %960
        %v962 = vcvt.f32.s32 %v961
        %v963 = vcvt.f32.s32 %v957
        %v964 = vshll.u32 %v963, 16
        %v965 = vadd.s32 %v964, %v962
        %vm966 = vcmp.lt.s32.totalorder %v906, %v907
        %v967 = vsel %vm966, %v906, %v907
        %v968 = vand.u32 %v967, 65535
        %v969 = vshra.s32 %v967, 16
        %v970 = vcvt.s32.f32 %v968
        %v971 = vcvt.s32.f32 %v969
        %972 = vmin.xlane.f32.xlu0 %v971
        %v973 = vpop.xlane.xlu0 %972
        %vm974 = vcmp.eq.f32.partialorder %v971, %v973
        %v975 = vsel %vm974, %v970, inf
        %976 = vmin.xlane.f32.xlu0 %v975
        %v977 = vpop.xlane.xlu0 %976
        %v978 = vcvt.f32.s32 %v977
        %v979 = vcvt.f32.s32 %v973
        %v980 = vshll.u32 %v979, 16
        %v981 = vadd.s32 %v980, %v978
        %vm982 = vcmp.lt.s32.totalorder %v908, %v909
        %v983 = vsel %vm982, %v908, %v909
        %v984 = vand.u32 %v983, 65535
        %v985 = vshra.s32 %v983, 16
        %v986 = vcvt.s32.f32 %v984
        %v987 = vcvt.s32.f32 %v985
        %988 = vmin.xlane.f32.xlu0 %v987
        %v989 = vpop.xlane.xlu0 %988
        %vm990 = vcmp.eq.f32.partialorder %v987, %v989
        %v991 = vsel %vm990, %v986, inf
        %992 = vmin.xlane.f32.xlu0 %v991
        %v993 = vpop.xlane.xlu0 %992
        %v994 = vcvt.f32.s32 %v993
        %v995 = vcvt.f32.s32 %v989
        %v996 = vshll.u32 %v995, 16
        %v997 = vadd.s32 %v996, %v994
        %vm998 = vcmp.lt.s32.totalorder %v910, %v911
        %v999 = vsel %vm998, %v910, %v911
        %v1000 = vand.u32 %v999, 65535
        %v1001 = vshra.s32 %v999, 16
        %v1002 = vcvt.s32.f32 %v1000
        %v1003 = vcvt.s32.f32 %v1001
        %1004 = vmin.xlane.f32.xlu0 %v1003
        %v1005 = vpop.xlane.xlu0 %1004
        %vm1006 = vcmp.eq.f32.partialorder %v1003, %v1005
        %v1007 = vsel %vm1006, %v1002, inf
        %1008 = vmin.xlane.f32.xlu0 %v1007
        %v1009 = vpop.xlane.xlu0 %1008
        %v1010 = vcvt.f32.s32 %v1009
        %v1011 = vcvt.f32.s32 %v1005
        %v1012 = vshll.u32 %v1011, 16
        %v1013 = vadd.s32 %v1012, %v1010
        %vm1014 = vcmp.lt.s32.totalorder %v912, %v913
        %v1015 = vsel %vm1014, %v912, %v913
        %v1016 = vand.u32 %v1015, 65535
        %v1017 = vshra.s32 %v1015, 16
        %v1018 = vcvt.s32.f32 %v1016
        %v1019 = vcvt.s32.f32 %v1017
        %1020 = vmin.xlane.f32.xlu0 %v1019
        %v1021 = vpop.xlane.xlu0 %1020
        %vm1022 = vcmp.eq.f32.partialorder %v1019, %v1021
        %v1023 = vsel %vm1022, %v1018, inf
        %1024 = vmin.xlane.f32.xlu0 %v1023
        %v1025 = vpop.xlane.xlu0 %1024
        %v1026 = vcvt.f32.s32 %v1025
        %v1027 = vcvt.f32.s32 %v1021
        %v1028 = vshll.u32 %v1027, 16
        %v1029 = vadd.s32 %v1028, %v1026
        %vm1030 = vcmp.lt.s32.totalorder %v914, %v915
        %v1031 = vsel %vm1030, %v914, %v915
        %v1032 = vand.u32 %v1031, 65535
        %v1033 = vshra.s32 %v1031, 16
        %v1034 = vcvt.s32.f32 %v1032
        %v1035 = vcvt.s32.f32 %v1033
        %1036 = vmin.xlane.f32.xlu0 %v1035
        %v1037 = vpop.xlane.xlu0 %1036
        %vm1038 = vcmp.eq.f32.partialorder %v1035, %v1037
        %v1039 = vsel %vm1038, %v1034, inf
        %1040 = vmin.xlane.f32.xlu0 %v1039
        %v1041 = vpop.xlane.xlu0 %1040
        %v1042 = vcvt.f32.s32 %v1041
        %v1043 = vcvt.f32.s32 %v1037
        %v1044 = vshll.u32 %v1043, 16
        %v1045 = vadd.s32 %v1044, %v1042
        %vm1046 = vcmp.lt.s32.totalorder %v916, %v917
        %v1047 = vsel %vm1046, %v916, %v917
        %v1048 = vand.u32 %v1047, 65535
        %v1049 = vshra.s32 %v1047, 16
        %v1050 = vcvt.s32.f32 %v1048
        %v1051 = vcvt.s32.f32 %v1049
        %1052 = vmin.xlane.f32.xlu0 %v1051
        %v1053 = vpop.xlane.xlu0 %1052
        %vm1054 = vcmp.eq.f32.partialorder %v1051, %v1053
        %v1055 = vsel %vm1054, %v1050, inf
        %1056 = vmin.xlane.f32.xlu0 %v1055
        %v1057 = vpop.xlane.xlu0 %1056
        %v1058 = vcvt.f32.s32 %v1057
        %v1059 = vcvt.f32.s32 %v1053
        %v1060 = vshll.u32 %v1059, 16
        %v1061 = vadd.s32 %v1060, %v1058
        %vm1062 = vcmp.lt.s32.totalorder %v918, %v919
        %v1063 = vsel %vm1062, %v918, %v919
        %v1064 = vand.u32 %v1063, 65535
        %v1065 = vshra.s32 %v1063, 16
        %v1066 = vcvt.s32.f32 %v1064
        %v1067 = vcvt.s32.f32 %v1065
        %1068 = vmin.xlane.f32.xlu0 %v1067
        %v1069 = vpop.xlane.xlu0 %1068
        %vm1070 = vcmp.eq.f32.partialorder %v1067, %v1069
        %v1071 = vsel %vm1070, %v1066, inf
        %1072 = vmin.xlane.f32.xlu0 %v1071
        %v1073 = vpop.xlane.xlu0 %1072
        %v1074 = vcvt.f32.s32 %v1073
        %v1075 = vcvt.f32.s32 %v1069
        %v1076 = vshll.u32 %v1075, 16
        %v1077 = vadd.s32 %v1076, %v1074
        %vm1078 = vcmp.lt.s32.totalorder %v920, %v921
        %v1079 = vsel %vm1078, %v920, %v921
        %v1080 = vand.u32 %v1079, 65535
        %v1081 = vshra.s32 %v1079, 16
        %v1082 = vcvt.s32.f32 %v1080
        %v1083 = vcvt.s32.f32 %v1081
        %1084 = vmin.xlane.f32.xlu0 %v1083
        %v1085 = vpop.xlane.xlu0 %1084
        %vm1086 = vcmp.eq.f32.partialorder %v1083, %v1085
        %v1087 = vsel %vm1086, %v1082, inf
        %1088 = vmin.xlane.f32.xlu0 %v1087
        %v1089 = vpop.xlane.xlu0 %1088
        %v1090 = vcvt.f32.s32 %v1089
        %v1091 = vcvt.f32.s32 %v1085
        %v1092 = vshll.u32 %v1091, 16
        %v1093 = vadd.s32 %v1092, %v1090
        %vm1094 = vcmp.lt.s32.totalorder %v922, %v923
        %v1095 = vsel %vm1094, %v922, %v923
        %v1096 = vand.u32 %v1095, 65535
        %v1097 = vshra.s32 %v1095, 16
        %v1098 = vcvt.s32.f32 %v1096
        %v1099 = vcvt.s32.f32 %v1097
        %1100 = vmin.xlane.f32.xlu0 %v1099
        %v1101 = vpop.xlane.xlu0 %1100
        %vm1102 = vcmp.eq.f32.partialorder %v1099, %v1101
        %v1103 = vsel %vm1102, %v1098, inf
        %1104 = vmin.xlane.f32.xlu0 %v1103
        %v1105 = vpop.xlane.xlu0 %1104
        %v1106 = vcvt.f32.s32 %v1105
        %v1107 = vcvt.f32.s32 %v1101
        %v1108 = vshll.u32 %v1107, 16
        %v1109 = vadd.s32 %v1108, %v1106
        %vm1110 = vcmp.lt.s32.totalorder %v924, %v925
        %v1111 = vsel %vm1110, %v924, %v925
        %v1112 = vand.u32 %v1111, 65535
        %v1113 = vshra.s32 %v1111, 16
        %v1114 = vcvt.s32.f32 %v1112
        %v1115 = vcvt.s32.f32 %v1113
        %1116 = vmin.xlane.f32.xlu0 %v1115
        %v1117 = vpop.xlane.xlu0 %1116
        %vm1118 = vcmp.eq.f32.partialorder %v1115, %v1117
        %v1119 = vsel %vm1118, %v1114, inf
        %1120 = vmin.xlane.f32.xlu0 %v1119
        %v1121 = vpop.xlane.xlu0 %1120
        %v1122 = vcvt.f32.s32 %v1121
        %v1123 = vcvt.f32.s32 %v1117
        %v1124 = vshll.u32 %v1123, 16
        %v1125 = vadd.s32 %v1124, %v1122
        %vm1126 = vcmp.lt.s32.totalorder %v926, %v927
        %v1127 = vsel %vm1126, %v926, %v927
        %v1128 = vand.u32 %v1127, 65535
        %v1129 = vshra.s32 %v1127, 16
        %v1130 = vcvt.s32.f32 %v1128
        %v1131 = vcvt.s32.f32 %v1129
        %1132 = vmin.xlane.f32.xlu0 %v1131
        %v1133 = vpop.xlane.xlu0 %1132
        %vm1134 = vcmp.eq.f32.partialorder %v1131, %v1133
        %v1135 = vsel %vm1134, %v1130, inf
        %1136 = vmin.xlane.f32.xlu0 %v1135
        %v1137 = vpop.xlane.xlu0 %1136
        %v1138 = vcvt.f32.s32 %v1137
        %v1139 = vcvt.f32.s32 %v1133
        %v1140 = vshll.u32 %v1139, 16
        %v1141 = vadd.s32 %v1140, %v1138
        %vm1142 = vcmp.lt.s32.totalorder %v928, %v929
        %v1143 = vsel %vm1142, %v928, %v929
        %v1144 = vand.u32 %v1143, 65535
        %v1145 = vshra.s32 %v1143, 16
        %v1146 = vcvt.s32.f32 %v1144
        %v1147 = vcvt.s32.f32 %v1145
        %1148 = vmin.xlane.f32.xlu0 %v1147
        %v1149 = vpop.xlane.xlu0 %1148
        %vm1150 = vcmp.eq.f32.partialorder %v1147, %v1149
        %v1151 = vsel %vm1150, %v1146, inf
        %1152 = vmin.xlane.f32.xlu0 %v1151
        %v1153 = vpop.xlane.xlu0 %1152
        %v1154 = vcvt.f32.s32 %v1153
        %v1155 = vcvt.f32.s32 %v1149
        %v1156 = vshll.u32 %v1155, 16
        %v1157 = vadd.s32 %v1156, %v1154
        %vm1158 = vcmp.lt.s32.totalorder %v930, %v931
        %v1159 = vsel %vm1158, %v930, %v931
        %v1160 = vand.u32 %v1159, 65535
        %v1161 = vshra.s32 %v1159, 16
        %v1162 = vcvt.s32.f32 %v1160
        %v1163 = vcvt.s32.f32 %v1161
        %1164 = vmin.xlane.f32.xlu0 %v1163
        %v1165 = vpop.xlane.xlu0 %1164
        %vm1166 = vcmp.eq.f32.partialorder %v1163, %v1165
        %v1167 = vsel %vm1166, %v1162, inf
        %1168 = vmin.xlane.f32.xlu0 %v1167
        %v1169 = vpop.xlane.xlu0 %1168
        %v1170 = vcvt.f32.s32 %v1169
        %v1171 = vcvt.f32.s32 %v1165
        %v1172 = vshll.u32 %v1171, 16
        %v1173 = vadd.s32 %v1172, %v1170
        %vm1174 = vcmp.lt.s32.totalorder %v932, %v933
        %v1175 = vsel %vm1174, %v932, %v933
        %v1176 = vand.u32 %v1175, 65535
        %v1177 = vshra.s32 %v1175, 16
        %v1178 = vcvt.s32.f32 %v1176
        %v1179 = vcvt.s32.f32 %v1177
        %1180 = vmin.xlane.f32.xlu0 %v1179
        %v1181 = vpop.xlane.xlu0 %1180
        %vm1182 = vcmp.eq.f32.partialorder %v1179, %v1181
        %v1183 = vsel %vm1182, %v1178, inf
        %1184 = vmin.xlane.f32.xlu0 %v1183
        %v1185 = vpop.xlane.xlu0 %1184
        %v1186 = vcvt.f32.s32 %v1185
        %v1187 = vcvt.f32.s32 %v1181
        %v1188 = vshll.u32 %v1187, 16
        %v1189 = vadd.s32 %v1188, %v1186
        %vm1190 = vcmp.eq.s32.totalorder %v786, %v949
        %vm1191 = vcmp.eq.s32.totalorder %v787, %v949
        %vm1192 = vcmp.eq.s32.totalorder %v786, %v965
        %vm1193 = vcmp.eq.s32.totalorder %v787, %v965
        %vm1194 = vcmp.eq.s32.totalorder %v786, %v981
        %vm1195 = vcmp.eq.s32.totalorder %v787, %v981
        %vm1196 = vcmp.eq.s32.totalorder %v786, %v997
        %vm1197 = vcmp.eq.s32.totalorder %v787, %v997
        %vm1198 = vcmp.eq.s32.totalorder %v786, %v1013
        %vm1199 = vcmp.eq.s32.totalorder %v787, %v1013
        %vm1200 = vcmp.eq.s32.totalorder %v786, %v1029
        %vm1201 = vcmp.eq.s32.totalorder %v787, %v1029
        %vm1202 = vcmp.eq.s32.totalorder %v786, %v1045
        %vm1203 = vcmp.eq.s32.totalorder %v787, %v1045
        %vm1204 = vcmp.eq.s32.totalorder %v786, %v1061
        %vm1205 = vcmp.eq.s32.totalorder %v787, %v1061
        %vm1206 = vcmp.eq.s32.totalorder %v786, %v1077
        %vm1207 = vcmp.eq.s32.totalorder %v787, %v1077
        %vm1208 = vcmp.eq.s32.totalorder %v786, %v1093
        %vm1209 = vcmp.eq.s32.totalorder %v787, %v1093
        %vm1210 = vcmp.eq.s32.totalorder %v786, %v1109
        %vm1211 = vcmp.eq.s32.totalorder %v787, %v1109
        %vm1212 = vcmp.eq.s32.totalorder %v786, %v1125
        %vm1213 = vcmp.eq.s32.totalorder %v787, %v1125
        %vm1214 = vcmp.eq.s32.totalorder %v786, %v1141
        %vm1215 = vcmp.eq.s32.totalorder %v787, %v1141
        %vm1216 = vcmp.eq.s32.totalorder %v786, %v1157
        %vm1217 = vcmp.eq.s32.totalorder %v787, %v1157
        %vm1218 = vcmp.eq.s32.totalorder %v786, %v1173
        %vm1219 = vcmp.eq.s32.totalorder %v787, %v1173
        %vm1220 = vcmp.eq.s32.totalorder %v786, %v1189
        %vm1221 = vcmp.eq.s32.totalorder %v787, %v1189
        %v1222 = vsel %vm1190, %v753, 0.0
        %v1223 = vsel %vm1191, %v754, 0.0
        %v1224 = vsel %vm1192, %v755, 0.0
        %v1225 = vsel %vm1193, %v756, 0.0
        %v1226 = vsel %vm1194, %v757, 0.0
        %v1227 = vsel %vm1195, %v758, 0.0
        %v1228 = vsel %vm1196, %v759, 0.0
        %v1229 = vsel %vm1197, %v760, 0.0
        %v1230 = vsel %vm1198, %v761, 0.0
        %v1231 = vsel %vm1199, %v762, 0.0
        %v1232 = vsel %vm1200, %v763, 0.0
        %v1233 = vsel %vm1201, %v764, 0.0
        %v1234 = vsel %vm1202, %v765, 0.0
        %v1235 = vsel %vm1203, %v766, 0.0
        %v1236 = vsel %vm1204, %v767, 0.0
        %v1237 = vsel %vm1205, %v768, 0.0
        %v1238 = vsel %vm1206, %v769, 0.0
        %v1239 = vsel %vm1207, %v770, 0.0
        %v1240 = vsel %vm1208, %v771, 0.0
        %v1241 = vsel %vm1209, %v772, 0.0
        %v1242 = vsel %vm1210, %v773, 0.0
        %v1243 = vsel %vm1211, %v774, 0.0
        %v1244 = vsel %vm1212, %v775, 0.0
        %v1245 = vsel %vm1213, %v776, 0.0
        %v1246 = vsel %vm1214, %v777, 0.0
        %v1247 = vsel %vm1215, %v778, 0.0
        %v1248 = vsel %vm1216, %v779, 0.0
        %v1249 = vsel %vm1217, %v780, 0.0
        %v1250 = vsel %vm1218, %v781, 0.0
        %v1251 = vsel %vm1219, %v782, 0.0
        %v1252 = vsel %vm1220, %v783, 0.0
        %v1253 = vsel %vm1221, %v784, 0.0
        %v1254 = vsel %vm1190, -inf, %v790
        %v1255 = vsel %vm1191, -inf, %v791
        %v1256 = vsel %vm1192, -inf, %v792
        %v1257 = vsel %vm1193, -inf, %v793
        %v1258 = vsel %vm1194, -inf, %v794
        %v1259 = vsel %vm1195, -inf, %v795
        %v1260 = vsel %vm1196, -inf, %v796
        %v1261 = vsel %vm1197, -inf, %v797
        %v1262 = vsel %vm1198, -inf, %v798
        %v1263 = vsel %vm1199, -inf, %v799
        %v1264 = vsel %vm1200, -inf, %v800
        %v1265 = vsel %vm1201, -inf, %v801
        %v1266 = vsel %vm1202, -inf, %v802
        %v1267 = vsel %vm1203, -inf, %v803
        %v1268 = vsel %vm1204, -inf, %v804
        %v1269 = vsel %vm1205, -inf, %v805
        %v1270 = vsel %vm1206, -inf, %v806
        %v1271 = vsel %vm1207, -inf, %v807
        %v1272 = vsel %vm1208, -inf, %v808
        %v1273 = vsel %vm1209, -inf, %v809
        %v1274 = vsel %vm1210, -inf, %v810
        %v1275 = vsel %vm1211, -inf, %v811
        %v1276 = vsel %vm1212, -inf, %v812
        %v1277 = vsel %vm1213, -inf, %v813
        %v1278 = vsel %vm1214, -inf, %v814
        %v1279 = vsel %vm1215, -inf, %v815
        %v1280 = vsel %vm1216, -inf, %v816
        %v1281 = vsel %vm1217, -inf, %v817
        %v1282 = vsel %vm1218, -inf, %v818
        %v1283 = vsel %vm1219, -inf, %v819
        %v1284 = vsel %vm1220, -inf, %v820
        %v1285 = vsel %vm1221, -inf, %v821
        %v1286 = vmax.f32 %v1254, %v1255
        %1287 = vmax.xlane.f32.xlu0 %v1286
        %v1288 = vpop.xlane.xlu0 %1287
        %v1289 = vmax.f32 %v1256, %v1257
        %1290 = vmax.xlane.f32.xlu0 %v1289
        %v1291 = vpop.xlane.xlu0 %1290
        %v1292 = vmax.f32 %v1258, %v1259
        %1293 = vmax.xlane.f32.xlu0 %v1292
        %v1294 = vpop.xlane.xlu0 %1293
        %v1295 = vmax.f32 %v1260, %v1261
        %1296 = vmax.xlane.f32.xlu0 %v1295
        %v1297 = vpop.xlane.xlu0 %1296
        %v1298 = vmax.f32 %v1262, %v1263
        %1299 = vmax.xlane.f32.xlu0 %v1298
        %v1300 = vpop.xlane.xlu0 %1299
        %v1301 = vmax.f32 %v1264, %v1265
        %1302 = vmax.xlane.f32.xlu0 %v1301
        %v1303 = vpop.xlane.xlu0 %1302
        %v1304 = vmax.f32 %v1266, %v1267
        %1305 = vmax.xlane.f32.xlu0 %v1304
        %v1306 = vpop.xlane.xlu0 %1305
        %v1307 = vmax.f32 %v1268, %v1269
        %1308 = vmax.xlane.f32.xlu0 %v1307
        %v1309 = vpop.xlane.xlu0 %1308
        %v1310 = vmax.f32 %v1270, %v1271
        %1311 = vmax.xlane.f32.xlu0 %v1310
        %v1312 = vpop.xlane.xlu0 %1311
        %v1313 = vmax.f32 %v1272, %v1273
        %1314 = vmax.xlane.f32.xlu0 %v1313
        %v1315 = vpop.xlane.xlu0 %1314
        %v1316 = vmax.f32 %v1274, %v1275
        %1317 = vmax.xlane.f32.xlu0 %v1316
        %v1318 = vpop.xlane.xlu0 %1317
        %v1319 = vmax.f32 %v1276, %v1277
        %1320 = vmax.xlane.f32.xlu0 %v1319
        %v1321 = vpop.xlane.xlu0 %1320
        %v1322 = vmax.f32 %v1278, %v1279
        %1323 = vmax.xlane.f32.xlu0 %v1322
        %v1324 = vpop.xlane.xlu0 %1323
        %v1325 = vmax.f32 %v1280, %v1281
        %1326 = vmax.xlane.f32.xlu0 %v1325
        %v1327 = vpop.xlane.xlu0 %1326
        %v1328 = vmax.f32 %v1282, %v1283
        %1329 = vmax.xlane.f32.xlu0 %v1328
        %v1330 = vpop.xlane.xlu0 %1329
        %v1331 = vmax.f32 %v1284, %v1285
        %1332 = vmax.xlane.f32.xlu0 %v1331
        %v1333 = vpop.xlane.xlu0 %1332
        %vm1334 = vcmp.ge.f32.partialorder %v1254, %v1288
        %vm1335 = vcmp.ge.f32.partialorder %v1255, %v1288
        %vm1336 = vcmp.ge.f32.partialorder %v1256, %v1291
        %vm1337 = vcmp.ge.f32.partialorder %v1257, %v1291
        %vm1338 = vcmp.ge.f32.partialorder %v1258, %v1294
        %vm1339 = vcmp.ge.f32.partialorder %v1259, %v1294
        %vm1340 = vcmp.ge.f32.partialorder %v1260, %v1297
        %vm1341 = vcmp.ge.f32.partialorder %v1261, %v1297
        %vm1342 = vcmp.ge.f32.partialorder %v1262, %v1300
        %vm1343 = vcmp.ge.f32.partialorder %v1263, %v1300
        %vm1344 = vcmp.ge.f32.partialorder %v1264, %v1303
        %vm1345 = vcmp.ge.f32.partialorder %v1265, %v1303
        %vm1346 = vcmp.ge.f32.partialorder %v1266, %v1306
        %vm1347 = vcmp.ge.f32.partialorder %v1267, %v1306
        %vm1348 = vcmp.ge.f32.partialorder %v1268, %v1309
        %vm1349 = vcmp.ge.f32.partialorder %v1269, %v1309
        %vm1350 = vcmp.ge.f32.partialorder %v1270, %v1312
        %vm1351 = vcmp.ge.f32.partialorder %v1271, %v1312
        %vm1352 = vcmp.ge.f32.partialorder %v1272, %v1315
        %vm1353 = vcmp.ge.f32.partialorder %v1273, %v1315
        %vm1354 = vcmp.ge.f32.partialorder %v1274, %v1318
        %vm1355 = vcmp.ge.f32.partialorder %v1275, %v1318
        %vm1356 = vcmp.ge.f32.partialorder %v1276, %v1321
        %vm1357 = vcmp.ge.f32.partialorder %v1277, %v1321
        %vm1358 = vcmp.ge.f32.partialorder %v1278, %v1324
        %vm1359 = vcmp.ge.f32.partialorder %v1279, %v1324
        %vm1360 = vcmp.ge.f32.partialorder %v1280, %v1327
        %vm1361 = vcmp.ge.f32.partialorder %v1281, %v1327
        %vm1362 = vcmp.ge.f32.partialorder %v1282, %v1330
        %vm1363 = vcmp.ge.f32.partialorder %v1283, %v1330
        %vm1364 = vcmp.ge.f32.partialorder %v1284, %v1333
        %vm1365 = vcmp.ge.f32.partialorder %v1285, %v1333
        %v1366 = vsel %vm1334, %v786, 256
        %v1367 = vsel %vm1335, %v787, 256
        %v1368 = vsel %vm1336, %v786, 256
        %v1369 = vsel %vm1337, %v787, 256
        %v1370 = vsel %vm1338, %v786, 256
        %v1371 = vsel %vm1339, %v787, 256
        %v1372 = vsel %vm1340, %v786, 256
        %v1373 = vsel %vm1341, %v787, 256
        %v1374 = vsel %vm1342, %v786, 256
        %v1375 = vsel %vm1343, %v787, 256
        %v1376 = vsel %vm1344, %v786, 256
        %v1377 = vsel %vm1345, %v787, 256
        %v1378 = vsel %vm1346, %v786, 256
        %v1379 = vsel %vm1347, %v787, 256
        %v1380 = vsel %vm1348, %v786, 256
        %v1381 = vsel %vm1349, %v787, 256
        %v1382 = vsel %vm1350, %v786, 256
        %v1383 = vsel %vm1351, %v787, 256
        %v1384 = vsel %vm1352, %v786, 256
        %v1385 = vsel %vm1353, %v787, 256
        %v1386 = vsel %vm1354, %v786, 256
        %v1387 = vsel %vm1355, %v787, 256
        %v1388 = vsel %vm1356, %v786, 256
        %v1389 = vsel %vm1357, %v787, 256
        %v1390 = vsel %vm1358, %v786, 256
        %v1391 = vsel %vm1359, %v787, 256
        %v1392 = vsel %vm1360, %v786, 256
        %v1393 = vsel %vm1361, %v787, 256
        %v1394 = vsel %vm1362, %v786, 256
        %v1395 = vsel %vm1363, %v787, 256
        %v1396 = vsel %vm1364, %v786, 256
        %v1397 = vsel %vm1365, %v787, 256
        %vm1398 = vcmp.lt.s32.totalorder %v1366, %v1367
        %v1399 = vsel %vm1398, %v1366, %v1367
        %v1400 = vand.u32 %v1399, 65535
        %v1401 = vshra.s32 %v1399, 16
        %v1402 = vcvt.s32.f32 %v1400
        %v1403 = vcvt.s32.f32 %v1401
        %1404 = vmin.xlane.f32.xlu0 %v1403
        %v1405 = vpop.xlane.xlu0 %1404
        %vm1406 = vcmp.eq.f32.partialorder %v1403, %v1405
        %v1407 = vsel %vm1406, %v1402, inf
        %1408 = vmin.xlane.f32.xlu0 %v1407
        %v1409 = vpop.xlane.xlu0 %1408
        %v1410 = vcvt.f32.s32 %v1409
        %v1411 = vcvt.f32.s32 %v1405
        %v1412 = vshll.u32 %v1411, 16
        %v1413 = vadd.s32 %v1412, %v1410
        %vm1414 = vcmp.lt.s32.totalorder %v1368, %v1369
        %v1415 = vsel %vm1414, %v1368, %v1369
        %v1416 = vand.u32 %v1415, 65535
        %v1417 = vshra.s32 %v1415, 16
        %v1418 = vcvt.s32.f32 %v1416
        %v1419 = vcvt.s32.f32 %v1417
        %1420 = vmin.xlane.f32.xlu0 %v1419
        %v1421 = vpop.xlane.xlu0 %1420
        %vm1422 = vcmp.eq.f32.partialorder %v1419, %v1421
        %v1423 = vsel %vm1422, %v1418, inf
        %1424 = vmin.xlane.f32.xlu0 %v1423
        %v1425 = vpop.xlane.xlu0 %1424
        %v1426 = vcvt.f32.s32 %v1425
        %v1427 = vcvt.f32.s32 %v1421
        %v1428 = vshll.u32 %v1427, 16
        %v1429 = vadd.s32 %v1428, %v1426
        %vm1430 = vcmp.lt.s32.totalorder %v1370, %v1371
        %v1431 = vsel %vm1430, %v1370, %v1371
        %v1432 = vand.u32 %v1431, 65535
        %v1433 = vshra.s32 %v1431, 16
        %v1434 = vcvt.s32.f32 %v1432
        %v1435 = vcvt.s32.f32 %v1433
        %1436 = vmin.xlane.f32.xlu0 %v1435
        %v1437 = vpop.xlane.xlu0 %1436
        %vm1438 = vcmp.eq.f32.partialorder %v1435, %v1437
        %v1439 = vsel %vm1438, %v1434, inf
        %1440 = vmin.xlane.f32.xlu0 %v1439
        %v1441 = vpop.xlane.xlu0 %1440
        %v1442 = vcvt.f32.s32 %v1441
        %v1443 = vcvt.f32.s32 %v1437
        %v1444 = vshll.u32 %v1443, 16
        %v1445 = vadd.s32 %v1444, %v1442
        %vm1446 = vcmp.lt.s32.totalorder %v1372, %v1373
        %v1447 = vsel %vm1446, %v1372, %v1373
        %v1448 = vand.u32 %v1447, 65535
        %v1449 = vshra.s32 %v1447, 16
        %v1450 = vcvt.s32.f32 %v1448
        %v1451 = vcvt.s32.f32 %v1449
        %1452 = vmin.xlane.f32.xlu0 %v1451
        %v1453 = vpop.xlane.xlu0 %1452
        %vm1454 = vcmp.eq.f32.partialorder %v1451, %v1453
        %v1455 = vsel %vm1454, %v1450, inf
        %1456 = vmin.xlane.f32.xlu0 %v1455
        %v1457 = vpop.xlane.xlu0 %1456
        %v1458 = vcvt.f32.s32 %v1457
        %v1459 = vcvt.f32.s32 %v1453
        %v1460 = vshll.u32 %v1459, 16
        %v1461 = vadd.s32 %v1460, %v1458
        %vm1462 = vcmp.lt.s32.totalorder %v1374, %v1375
        %v1463 = vsel %vm1462, %v1374, %v1375
        %v1464 = vand.u32 %v1463, 65535
        %v1465 = vshra.s32 %v1463, 16
        %v1466 = vcvt.s32.f32 %v1464
        %v1467 = vcvt.s32.f32 %v1465
        %1468 = vmin.xlane.f32.xlu0 %v1467
        %v1469 = vpop.xlane.xlu0 %1468
        %vm1470 = vcmp.eq.f32.partialorder %v1467, %v1469
        %v1471 = vsel %vm1470, %v1466, inf
        %1472 = vmin.xlane.f32.xlu0 %v1471
        %v1473 = vpop.xlane.xlu0 %1472
        %v1474 = vcvt.f32.s32 %v1473
        %v1475 = vcvt.f32.s32 %v1469
        %v1476 = vshll.u32 %v1475, 16
        %v1477 = vadd.s32 %v1476, %v1474
        %vm1478 = vcmp.lt.s32.totalorder %v1376, %v1377
        %v1479 = vsel %vm1478, %v1376, %v1377
        %v1480 = vand.u32 %v1479, 65535
        %v1481 = vshra.s32 %v1479, 16
        %v1482 = vcvt.s32.f32 %v1480
        %v1483 = vcvt.s32.f32 %v1481
        %1484 = vmin.xlane.f32.xlu0 %v1483
        %v1485 = vpop.xlane.xlu0 %1484
        %vm1486 = vcmp.eq.f32.partialorder %v1483, %v1485
        %v1487 = vsel %vm1486, %v1482, inf
        %1488 = vmin.xlane.f32.xlu0 %v1487
        %v1489 = vpop.xlane.xlu0 %1488
        %v1490 = vcvt.f32.s32 %v1489
        %v1491 = vcvt.f32.s32 %v1485
        %v1492 = vshll.u32 %v1491, 16
        %v1493 = vadd.s32 %v1492, %v1490
        %vm1494 = vcmp.lt.s32.totalorder %v1378, %v1379
        %v1495 = vsel %vm1494, %v1378, %v1379
        %v1496 = vand.u32 %v1495, 65535
        %v1497 = vshra.s32 %v1495, 16
        %v1498 = vcvt.s32.f32 %v1496
        %v1499 = vcvt.s32.f32 %v1497
        %1500 = vmin.xlane.f32.xlu0 %v1499
        %v1501 = vpop.xlane.xlu0 %1500
        %vm1502 = vcmp.eq.f32.partialorder %v1499, %v1501
        %v1503 = vsel %vm1502, %v1498, inf
        %1504 = vmin.xlane.f32.xlu0 %v1503
        %v1505 = vpop.xlane.xlu0 %1504
        %v1506 = vcvt.f32.s32 %v1505
        %v1507 = vcvt.f32.s32 %v1501
        %v1508 = vshll.u32 %v1507, 16
        %v1509 = vadd.s32 %v1508, %v1506
        %vm1510 = vcmp.lt.s32.totalorder %v1380, %v1381
        %v1511 = vsel %vm1510, %v1380, %v1381
        %v1512 = vand.u32 %v1511, 65535
        %v1513 = vshra.s32 %v1511, 16
        %v1514 = vcvt.s32.f32 %v1512
        %v1515 = vcvt.s32.f32 %v1513
        %1516 = vmin.xlane.f32.xlu0 %v1515
        %v1517 = vpop.xlane.xlu0 %1516
        %vm1518 = vcmp.eq.f32.partialorder %v1515, %v1517
        %v1519 = vsel %vm1518, %v1514, inf
        %1520 = vmin.xlane.f32.xlu0 %v1519
        %v1521 = vpop.xlane.xlu0 %1520
        %v1522 = vcvt.f32.s32 %v1521
        %v1523 = vcvt.f32.s32 %v1517
        %v1524 = vshll.u32 %v1523, 16
        %v1525 = vadd.s32 %v1524, %v1522
        %vm1526 = vcmp.lt.s32.totalorder %v1382, %v1383
        %v1527 = vsel %vm1526, %v1382, %v1383
        %v1528 = vand.u32 %v1527, 65535
        %v1529 = vshra.s32 %v1527, 16
        %v1530 = vcvt.s32.f32 %v1528
        %v1531 = vcvt.s32.f32 %v1529
        %1532 = vmin.xlane.f32.xlu0 %v1531
        %v1533 = vpop.xlane.xlu0 %1532
        %vm1534 = vcmp.eq.f32.partialorder %v1531, %v1533
        %v1535 = vsel %vm1534, %v1530, inf
        %1536 = vmin.xlane.f32.xlu0 %v1535
        %v1537 = vpop.xlane.xlu0 %1536
        %v1538 = vcvt.f32.s32 %v1537
        %v1539 = vcvt.f32.s32 %v1533
        %v1540 = vshll.u32 %v1539, 16
        %v1541 = vadd.s32 %v1540, %v1538
        %vm1542 = vcmp.lt.s32.totalorder %v1384, %v1385
        %v1543 = vsel %vm1542, %v1384, %v1385
        %v1544 = vand.u32 %v1543, 65535
        %v1545 = vshra.s32 %v1543, 16
        %v1546 = vcvt.s32.f32 %v1544
        %v1547 = vcvt.s32.f32 %v1545
        %1548 = vmin.xlane.f32.xlu0 %v1547
        %v1549 = vpop.xlane.xlu0 %1548
        %vm1550 = vcmp.eq.f32.partialorder %v1547, %v1549
        %v1551 = vsel %vm1550, %v1546, inf
        %1552 = vmin.xlane.f32.xlu0 %v1551
        %v1553 = vpop.xlane.xlu0 %1552
        %v1554 = vcvt.f32.s32 %v1553
        %v1555 = vcvt.f32.s32 %v1549
        %v1556 = vshll.u32 %v1555, 16
        %v1557 = vadd.s32 %v1556, %v1554
        %vm1558 = vcmp.lt.s32.totalorder %v1386, %v1387
        %v1559 = vsel %vm1558, %v1386, %v1387
        %v1560 = vand.u32 %v1559, 65535
        %v1561 = vshra.s32 %v1559, 16
        %v1562 = vcvt.s32.f32 %v1560
        %v1563 = vcvt.s32.f32 %v1561
        %1564 = vmin.xlane.f32.xlu0 %v1563
        %v1565 = vpop.xlane.xlu0 %1564
        %vm1566 = vcmp.eq.f32.partialorder %v1563, %v1565
        %v1567 = vsel %vm1566, %v1562, inf
        %1568 = vmin.xlane.f32.xlu0 %v1567
        %v1569 = vpop.xlane.xlu0 %1568
        %v1570 = vcvt.f32.s32 %v1569
        %v1571 = vcvt.f32.s32 %v1565
        %v1572 = vshll.u32 %v1571, 16
        %v1573 = vadd.s32 %v1572, %v1570
        %vm1574 = vcmp.lt.s32.totalorder %v1388, %v1389
        %v1575 = vsel %vm1574, %v1388, %v1389
        %v1576 = vand.u32 %v1575, 65535
        %v1577 = vshra.s32 %v1575, 16
        %v1578 = vcvt.s32.f32 %v1576
        %v1579 = vcvt.s32.f32 %v1577
        %1580 = vmin.xlane.f32.xlu0 %v1579
        %v1581 = vpop.xlane.xlu0 %1580
        %vm1582 = vcmp.eq.f32.partialorder %v1579, %v1581
        %v1583 = vsel %vm1582, %v1578, inf
        %1584 = vmin.xlane.f32.xlu0 %v1583
        %v1585 = vpop.xlane.xlu0 %1584
        %v1586 = vcvt.f32.s32 %v1585
        %v1587 = vcvt.f32.s32 %v1581
        %v1588 = vshll.u32 %v1587, 16
        %v1589 = vadd.s32 %v1588, %v1586
        %vm1590 = vcmp.lt.s32.totalorder %v1390, %v1391
        %v1591 = vsel %vm1590, %v1390, %v1391
        %v1592 = vand.u32 %v1591, 65535
        %v1593 = vshra.s32 %v1591, 16
        %v1594 = vcvt.s32.f32 %v1592
        %v1595 = vcvt.s32.f32 %v1593
        %1596 = vmin.xlane.f32.xlu0 %v1595
        %v1597 = vpop.xlane.xlu0 %1596
        %vm1598 = vcmp.eq.f32.partialorder %v1595, %v1597
        %v1599 = vsel %vm1598, %v1594, inf
        %1600 = vmin.xlane.f32.xlu0 %v1599
        %v1601 = vpop.xlane.xlu0 %1600
        %v1602 = vcvt.f32.s32 %v1601
        %v1603 = vcvt.f32.s32 %v1597
        %v1604 = vshll.u32 %v1603, 16
        %v1605 = vadd.s32 %v1604, %v1602
        %vm1606 = vcmp.lt.s32.totalorder %v1392, %v1393
        %v1607 = vsel %vm1606, %v1392, %v1393
        %v1608 = vand.u32 %v1607, 65535
        %v1609 = vshra.s32 %v1607, 16
        %v1610 = vcvt.s32.f32 %v1608
        %v1611 = vcvt.s32.f32 %v1609
        %1612 = vmin.xlane.f32.xlu0 %v1611
        %v1613 = vpop.xlane.xlu0 %1612
        %vm1614 = vcmp.eq.f32.partialorder %v1611, %v1613
        %v1615 = vsel %vm1614, %v1610, inf
        %1616 = vmin.xlane.f32.xlu0 %v1615
        %v1617 = vpop.xlane.xlu0 %1616
        %v1618 = vcvt.f32.s32 %v1617
        %v1619 = vcvt.f32.s32 %v1613
        %v1620 = vshll.u32 %v1619, 16
        %v1621 = vadd.s32 %v1620, %v1618
        %vm1622 = vcmp.lt.s32.totalorder %v1394, %v1395
        %v1623 = vsel %vm1622, %v1394, %v1395
        %v1624 = vand.u32 %v1623, 65535
        %v1625 = vshra.s32 %v1623, 16
        %v1626 = vcvt.s32.f32 %v1624
        %v1627 = vcvt.s32.f32 %v1625
        %1628 = vmin.xlane.f32.xlu0 %v1627
        %v1629 = vpop.xlane.xlu0 %1628
        %vm1630 = vcmp.eq.f32.partialorder %v1627, %v1629
        %v1631 = vsel %vm1630, %v1626, inf
        %1632 = vmin.xlane.f32.xlu0 %v1631
        %v1633 = vpop.xlane.xlu0 %1632
        %v1634 = vcvt.f32.s32 %v1633
        %v1635 = vcvt.f32.s32 %v1629
        %v1636 = vshll.u32 %v1635, 16
        %v1637 = vadd.s32 %v1636, %v1634
        %vm1638 = vcmp.lt.s32.totalorder %v1396, %v1397
        %v1639 = vsel %vm1638, %v1396, %v1397
        %v1640 = vand.u32 %v1639, 65535
        %v1641 = vshra.s32 %v1639, 16
        %v1642 = vcvt.s32.f32 %v1640
        %v1643 = vcvt.s32.f32 %v1641
        %1644 = vmin.xlane.f32.xlu0 %v1643
        %v1645 = vpop.xlane.xlu0 %1644
        %vm1646 = vcmp.eq.f32.partialorder %v1643, %v1645
        %v1647 = vsel %vm1646, %v1642, inf
        %1648 = vmin.xlane.f32.xlu0 %v1647
        %v1649 = vpop.xlane.xlu0 %1648
        %v1650 = vcvt.f32.s32 %v1649
        %v1651 = vcvt.f32.s32 %v1645
        %v1652 = vshll.u32 %v1651, 16
        %v1653 = vadd.s32 %v1652, %v1650
        %vm1654 = vcmp.eq.s32.totalorder %v786, %v1413
        %vm1655 = vcmp.eq.s32.totalorder %v787, %v1413
        %vm1656 = vcmp.eq.s32.totalorder %v786, %v1429
        %vm1657 = vcmp.eq.s32.totalorder %v787, %v1429
        %vm1658 = vcmp.eq.s32.totalorder %v786, %v1445
        %vm1659 = vcmp.eq.s32.totalorder %v787, %v1445
        %vm1660 = vcmp.eq.s32.totalorder %v786, %v1461
        %vm1661 = vcmp.eq.s32.totalorder %v787, %v1461
        %vm1662 = vcmp.eq.s32.totalorder %v786, %v1477
        %vm1663 = vcmp.eq.s32.totalorder %v787, %v1477
        %vm1664 = vcmp.eq.s32.totalorder %v786, %v1493
        %vm1665 = vcmp.eq.s32.totalorder %v787, %v1493
        %vm1666 = vcmp.eq.s32.totalorder %v786, %v1509
        %vm1667 = vcmp.eq.s32.totalorder %v787, %v1509
        %vm1668 = vcmp.eq.s32.totalorder %v786, %v1525
        %vm1669 = vcmp.eq.s32.totalorder %v787, %v1525
        %vm1670 = vcmp.eq.s32.totalorder %v786, %v1541
        %vm1671 = vcmp.eq.s32.totalorder %v787, %v1541
        %vm1672 = vcmp.eq.s32.totalorder %v786, %v1557
        %vm1673 = vcmp.eq.s32.totalorder %v787, %v1557
        %vm1674 = vcmp.eq.s32.totalorder %v786, %v1573
        %vm1675 = vcmp.eq.s32.totalorder %v787, %v1573
        %vm1676 = vcmp.eq.s32.totalorder %v786, %v1589
        %vm1677 = vcmp.eq.s32.totalorder %v787, %v1589
        %vm1678 = vcmp.eq.s32.totalorder %v786, %v1605
        %vm1679 = vcmp.eq.s32.totalorder %v787, %v1605
        %vm1680 = vcmp.eq.s32.totalorder %v786, %v1621
        %vm1681 = vcmp.eq.s32.totalorder %v787, %v1621
        %vm1682 = vcmp.eq.s32.totalorder %v786, %v1637
        %vm1683 = vcmp.eq.s32.totalorder %v787, %v1637
        %vm1684 = vcmp.eq.s32.totalorder %v786, %v1653
        %vm1685 = vcmp.eq.s32.totalorder %v787, %v1653
        %v1686 = vsel %vm1654, %v753, %v1222
        %v1687 = vsel %vm1655, %v754, %v1223
        %v1688 = vsel %vm1656, %v755, %v1224
        %v1689 = vsel %vm1657, %v756, %v1225
        %v1690 = vsel %vm1658, %v757, %v1226
        %v1691 = vsel %vm1659, %v758, %v1227
        %v1692 = vsel %vm1660, %v759, %v1228
        %v1693 = vsel %vm1661, %v760, %v1229
        %v1694 = vsel %vm1662, %v761, %v1230
        %v1695 = vsel %vm1663, %v762, %v1231
        %v1696 = vsel %vm1664, %v763, %v1232
        %v1697 = vsel %vm1665, %v764, %v1233
        %v1698 = vsel %vm1666, %v765, %v1234
        %v1699 = vsel %vm1667, %v766, %v1235
        %v1700 = vsel %vm1668, %v767, %v1236
        %v1701 = vsel %vm1669, %v768, %v1237
        %v1702 = vsel %vm1670, %v769, %v1238
        %v1703 = vsel %vm1671, %v770, %v1239
        %v1704 = vsel %vm1672, %v771, %v1240
        %v1705 = vsel %vm1673, %v772, %v1241
        %v1706 = vsel %vm1674, %v773, %v1242
        %v1707 = vsel %vm1675, %v774, %v1243
        %v1708 = vsel %vm1676, %v775, %v1244
        %v1709 = vsel %vm1677, %v776, %v1245
        %v1710 = vsel %vm1678, %v777, %v1246
        %v1711 = vsel %vm1679, %v778, %v1247
        %v1712 = vsel %vm1680, %v779, %v1248
        %v1713 = vsel %vm1681, %v780, %v1249
        %v1714 = vsel %vm1682, %v781, %v1250
        %v1715 = vsel %vm1683, %v782, %v1251
        %v1716 = vsel %vm1684, %v783, %v1252
        %v1717 = vsel %vm1685, %v784, %v1253
        %v1718 = vsel %vm1654, -inf, %v1254
        %v1719 = vsel %vm1655, -inf, %v1255
        %v1720 = vsel %vm1656, -inf, %v1256
        %v1721 = vsel %vm1657, -inf, %v1257
        %v1722 = vsel %vm1658, -inf, %v1258
        %v1723 = vsel %vm1659, -inf, %v1259
        %v1724 = vsel %vm1660, -inf, %v1260
        %v1725 = vsel %vm1661, -inf, %v1261
        %v1726 = vsel %vm1662, -inf, %v1262
        %v1727 = vsel %vm1663, -inf, %v1263
        %v1728 = vsel %vm1664, -inf, %v1264
        %v1729 = vsel %vm1665, -inf, %v1265
        %v1730 = vsel %vm1666, -inf, %v1266
        %v1731 = vsel %vm1667, -inf, %v1267
        %v1732 = vsel %vm1668, -inf, %v1268
        %v1733 = vsel %vm1669, -inf, %v1269
        %v1734 = vsel %vm1670, -inf, %v1270
        %v1735 = vsel %vm1671, -inf, %v1271
        %v1736 = vsel %vm1672, -inf, %v1272
        %v1737 = vsel %vm1673, -inf, %v1273
        %v1738 = vsel %vm1674, -inf, %v1274
        %v1739 = vsel %vm1675, -inf, %v1275
        %v1740 = vsel %vm1676, -inf, %v1276
        %v1741 = vsel %vm1677, -inf, %v1277
        %v1742 = vsel %vm1678, -inf, %v1278
        %v1743 = vsel %vm1679, -inf, %v1279
        %v1744 = vsel %vm1680, -inf, %v1280
        %v1745 = vsel %vm1681, -inf, %v1281
        %v1746 = vsel %vm1682, -inf, %v1282
        %v1747 = vsel %vm1683, -inf, %v1283
        %v1748 = vsel %vm1684, -inf, %v1284
        %v1749 = vsel %vm1685, -inf, %v1285
        %v1750 = vmax.f32 %v1718, %v1719
        %1751 = vmax.xlane.f32.xlu0 %v1750
        %v1752 = vpop.xlane.xlu0 %1751
        %v1753 = vmax.f32 %v1720, %v1721
        %1754 = vmax.xlane.f32.xlu0 %v1753
        %v1755 = vpop.xlane.xlu0 %1754
        %v1756 = vmax.f32 %v1722, %v1723
        %1757 = vmax.xlane.f32.xlu0 %v1756
        %v1758 = vpop.xlane.xlu0 %1757
        %v1759 = vmax.f32 %v1724, %v1725
        %1760 = vmax.xlane.f32.xlu0 %v1759
        %v1761 = vpop.xlane.xlu0 %1760
        %v1762 = vmax.f32 %v1726, %v1727
        %1763 = vmax.xlane.f32.xlu0 %v1762
        %v1764 = vpop.xlane.xlu0 %1763
        %v1765 = vmax.f32 %v1728, %v1729
        %1766 = vmax.xlane.f32.xlu0 %v1765
        %v1767 = vpop.xlane.xlu0 %1766
        %v1768 = vmax.f32 %v1730, %v1731
        %1769 = vmax.xlane.f32.xlu0 %v1768
        %v1770 = vpop.xlane.xlu0 %1769
        %v1771 = vmax.f32 %v1732, %v1733
        %1772 = vmax.xlane.f32.xlu0 %v1771
        %v1773 = vpop.xlane.xlu0 %1772
        %v1774 = vmax.f32 %v1734, %v1735
        %1775 = vmax.xlane.f32.xlu0 %v1774
        %v1776 = vpop.xlane.xlu0 %1775
        %v1777 = vmax.f32 %v1736, %v1737
        %1778 = vmax.xlane.f32.xlu0 %v1777
        %v1779 = vpop.xlane.xlu0 %1778
        %v1780 = vmax.f32 %v1738, %v1739
        %1781 = vmax.xlane.f32.xlu0 %v1780
        %v1782 = vpop.xlane.xlu0 %1781
        %v1783 = vmax.f32 %v1740, %v1741
        %1784 = vmax.xlane.f32.xlu0 %v1783
        %v1785 = vpop.xlane.xlu0 %1784
        %v1786 = vmax.f32 %v1742, %v1743
        %1787 = vmax.xlane.f32.xlu0 %v1786
        %v1788 = vpop.xlane.xlu0 %1787
        %v1789 = vmax.f32 %v1744, %v1745
        %1790 = vmax.xlane.f32.xlu0 %v1789
        %v1791 = vpop.xlane.xlu0 %1790
        %v1792 = vmax.f32 %v1746, %v1747
        %1793 = vmax.xlane.f32.xlu0 %v1792
        %v1794 = vpop.xlane.xlu0 %1793
        %v1795 = vmax.f32 %v1748, %v1749
        %1796 = vmax.xlane.f32.xlu0 %v1795
        %v1797 = vpop.xlane.xlu0 %1796
        %vm1798 = vcmp.ge.f32.partialorder %v1718, %v1752
        %vm1799 = vcmp.ge.f32.partialorder %v1719, %v1752
        %vm1800 = vcmp.ge.f32.partialorder %v1720, %v1755
        %vm1801 = vcmp.ge.f32.partialorder %v1721, %v1755
        %vm1802 = vcmp.ge.f32.partialorder %v1722, %v1758
        %vm1803 = vcmp.ge.f32.partialorder %v1723, %v1758
        %vm1804 = vcmp.ge.f32.partialorder %v1724, %v1761
        %vm1805 = vcmp.ge.f32.partialorder %v1725, %v1761
        %vm1806 = vcmp.ge.f32.partialorder %v1726, %v1764
        %vm1807 = vcmp.ge.f32.partialorder %v1727, %v1764
        %vm1808 = vcmp.ge.f32.partialorder %v1728, %v1767
        %vm1809 = vcmp.ge.f32.partialorder %v1729, %v1767
        %vm1810 = vcmp.ge.f32.partialorder %v1730, %v1770
        %vm1811 = vcmp.ge.f32.partialorder %v1731, %v1770
        %vm1812 = vcmp.ge.f32.partialorder %v1732, %v1773
        %vm1813 = vcmp.ge.f32.partialorder %v1733, %v1773
        %vm1814 = vcmp.ge.f32.partialorder %v1734, %v1776
        %vm1815 = vcmp.ge.f32.partialorder %v1735, %v1776
        %vm1816 = vcmp.ge.f32.partialorder %v1736, %v1779
        %vm1817 = vcmp.ge.f32.partialorder %v1737, %v1779
        %vm1818 = vcmp.ge.f32.partialorder %v1738, %v1782
        %vm1819 = vcmp.ge.f32.partialorder %v1739, %v1782
        %vm1820 = vcmp.ge.f32.partialorder %v1740, %v1785
        %vm1821 = vcmp.ge.f32.partialorder %v1741, %v1785
        %vm1822 = vcmp.ge.f32.partialorder %v1742, %v1788
        %vm1823 = vcmp.ge.f32.partialorder %v1743, %v1788
        %vm1824 = vcmp.ge.f32.partialorder %v1744, %v1791
        %vm1825 = vcmp.ge.f32.partialorder %v1745, %v1791
        %vm1826 = vcmp.ge.f32.partialorder %v1746, %v1794
        %vm1827 = vcmp.ge.f32.partialorder %v1747, %v1794
        %vm1828 = vcmp.ge.f32.partialorder %v1748, %v1797
        %vm1829 = vcmp.ge.f32.partialorder %v1749, %v1797
        %v1830 = vsel %vm1798, %v786, 256
        %v1831 = vsel %vm1799, %v787, 256
        %v1832 = vsel %vm1800, %v786, 256
        %v1833 = vsel %vm1801, %v787, 256
        %v1834 = vsel %vm1802, %v786, 256
        %v1835 = vsel %vm1803, %v787, 256
        %v1836 = vsel %vm1804, %v786, 256
        %v1837 = vsel %vm1805, %v787, 256
        %v1838 = vsel %vm1806, %v786, 256
        %v1839 = vsel %vm1807, %v787, 256
        %v1840 = vsel %vm1808, %v786, 256
        %v1841 = vsel %vm1809, %v787, 256
        %v1842 = vsel %vm1810, %v786, 256
        %v1843 = vsel %vm1811, %v787, 256
        %v1844 = vsel %vm1812, %v786, 256
        %v1845 = vsel %vm1813, %v787, 256
        %v1846 = vsel %vm1814, %v786, 256
        %v1847 = vsel %vm1815, %v787, 256
        %v1848 = vsel %vm1816, %v786, 256
        %v1849 = vsel %vm1817, %v787, 256
        %v1850 = vsel %vm1818, %v786, 256
        %v1851 = vsel %vm1819, %v787, 256
        %v1852 = vsel %vm1820, %v786, 256
        %v1853 = vsel %vm1821, %v787, 256
        %v1854 = vsel %vm1822, %v786, 256
        %v1855 = vsel %vm1823, %v787, 256
        %v1856 = vsel %vm1824, %v786, 256
        %v1857 = vsel %vm1825, %v787, 256
        %v1858 = vsel %vm1826, %v786, 256
        %v1859 = vsel %vm1827, %v787, 256
        %v1860 = vsel %vm1828, %v786, 256
        %v1861 = vsel %vm1829, %v787, 256
        %vm1862 = vcmp.lt.s32.totalorder %v1830, %v1831
        %v1863 = vsel %vm1862, %v1830, %v1831
        %v1864 = vand.u32 %v1863, 65535
        %v1865 = vshra.s32 %v1863, 16
        %v1866 = vcvt.s32.f32 %v1864
        %v1867 = vcvt.s32.f32 %v1865
        %1868 = vmin.xlane.f32.xlu0 %v1867
        %v1869 = vpop.xlane.xlu0 %1868
        %vm1870 = vcmp.eq.f32.partialorder %v1867, %v1869
        %v1871 = vsel %vm1870, %v1866, inf
        %1872 = vmin.xlane.f32.xlu0 %v1871
        %v1873 = vpop.xlane.xlu0 %1872
        %v1874 = vcvt.f32.s32 %v1873
        %v1875 = vcvt.f32.s32 %v1869
        %v1876 = vshll.u32 %v1875, 16
        %v1877 = vadd.s32 %v1876, %v1874
        %vm1878 = vcmp.lt.s32.totalorder %v1832, %v1833
        %v1879 = vsel %vm1878, %v1832, %v1833
        %v1880 = vand.u32 %v1879, 65535
        %v1881 = vshra.s32 %v1879, 16
        %v1882 = vcvt.s32.f32 %v1880
        %v1883 = vcvt.s32.f32 %v1881
        %1884 = vmin.xlane.f32.xlu0 %v1883
        %v1885 = vpop.xlane.xlu0 %1884
        %vm1886 = vcmp.eq.f32.partialorder %v1883, %v1885
        %v1887 = vsel %vm1886, %v1882, inf
        %1888 = vmin.xlane.f32.xlu0 %v1887
        %v1889 = vpop.xlane.xlu0 %1888
        %v1890 = vcvt.f32.s32 %v1889
        %v1891 = vcvt.f32.s32 %v1885
        %v1892 = vshll.u32 %v1891, 16
        %v1893 = vadd.s32 %v1892, %v1890
        %vm1894 = vcmp.lt.s32.totalorder %v1834, %v1835
        %v1895 = vsel %vm1894, %v1834, %v1835
        %v1896 = vand.u32 %v1895, 65535
        %v1897 = vshra.s32 %v1895, 16
        %v1898 = vcvt.s32.f32 %v1896
        %v1899 = vcvt.s32.f32 %v1897
        %1900 = vmin.xlane.f32.xlu0 %v1899
        %v1901 = vpop.xlane.xlu0 %1900
        %vm1902 = vcmp.eq.f32.partialorder %v1899, %v1901
        %v1903 = vsel %vm1902, %v1898, inf
        %1904 = vmin.xlane.f32.xlu0 %v1903
        %v1905 = vpop.xlane.xlu0 %1904
        %v1906 = vcvt.f32.s32 %v1905
        %v1907 = vcvt.f32.s32 %v1901
        %v1908 = vshll.u32 %v1907, 16
        %v1909 = vadd.s32 %v1908, %v1906
        %vm1910 = vcmp.lt.s32.totalorder %v1836, %v1837
        %v1911 = vsel %vm1910, %v1836, %v1837
        %v1912 = vand.u32 %v1911, 65535
        %v1913 = vshra.s32 %v1911, 16
        %v1914 = vcvt.s32.f32 %v1912
        %v1915 = vcvt.s32.f32 %v1913
        %1916 = vmin.xlane.f32.xlu0 %v1915
        %v1917 = vpop.xlane.xlu0 %1916
        %vm1918 = vcmp.eq.f32.partialorder %v1915, %v1917
        %v1919 = vsel %vm1918, %v1914, inf
        %1920 = vmin.xlane.f32.xlu0 %v1919
        %v1921 = vpop.xlane.xlu0 %1920
        %v1922 = vcvt.f32.s32 %v1921
        %v1923 = vcvt.f32.s32 %v1917
        %v1924 = vshll.u32 %v1923, 16
        %v1925 = vadd.s32 %v1924, %v1922
        %vm1926 = vcmp.lt.s32.totalorder %v1838, %v1839
        %v1927 = vsel %vm1926, %v1838, %v1839
        %v1928 = vand.u32 %v1927, 65535
        %v1929 = vshra.s32 %v1927, 16
        %v1930 = vcvt.s32.f32 %v1928
        %v1931 = vcvt.s32.f32 %v1929
        %1932 = vmin.xlane.f32.xlu0 %v1931
        %v1933 = vpop.xlane.xlu0 %1932
        %vm1934 = vcmp.eq.f32.partialorder %v1931, %v1933
        %v1935 = vsel %vm1934, %v1930, inf
        %1936 = vmin.xlane.f32.xlu0 %v1935
        %v1937 = vpop.xlane.xlu0 %1936
        %v1938 = vcvt.f32.s32 %v1937
        %v1939 = vcvt.f32.s32 %v1933
        %v1940 = vshll.u32 %v1939, 16
        %v1941 = vadd.s32 %v1940, %v1938
        %vm1942 = vcmp.lt.s32.totalorder %v1840, %v1841
        %v1943 = vsel %vm1942, %v1840, %v1841
        %v1944 = vand.u32 %v1943, 65535
        %v1945 = vshra.s32 %v1943, 16
        %v1946 = vcvt.s32.f32 %v1944
        %v1947 = vcvt.s32.f32 %v1945
        %1948 = vmin.xlane.f32.xlu0 %v1947
        %v1949 = vpop.xlane.xlu0 %1948
        %vm1950 = vcmp.eq.f32.partialorder %v1947, %v1949
        %v1951 = vsel %vm1950, %v1946, inf
        %1952 = vmin.xlane.f32.xlu0 %v1951
        %v1953 = vpop.xlane.xlu0 %1952
        %v1954 = vcvt.f32.s32 %v1953
        %v1955 = vcvt.f32.s32 %v1949
        %v1956 = vshll.u32 %v1955, 16
        %v1957 = vadd.s32 %v1956, %v1954
        %vm1958 = vcmp.lt.s32.totalorder %v1842, %v1843
        %v1959 = vsel %vm1958, %v1842, %v1843
        %v1960 = vand.u32 %v1959, 65535
        %v1961 = vshra.s32 %v1959, 16
        %v1962 = vcvt.s32.f32 %v1960
        %v1963 = vcvt.s32.f32 %v1961
        %1964 = vmin.xlane.f32.xlu0 %v1963
        %v1965 = vpop.xlane.xlu0 %1964
        %vm1966 = vcmp.eq.f32.partialorder %v1963, %v1965
        %v1967 = vsel %vm1966, %v1962, inf
        %1968 = vmin.xlane.f32.xlu0 %v1967
        %v1969 = vpop.xlane.xlu0 %1968
        %v1970 = vcvt.f32.s32 %v1969
        %v1971 = vcvt.f32.s32 %v1965
        %v1972 = vshll.u32 %v1971, 16
        %v1973 = vadd.s32 %v1972, %v1970
        %vm1974 = vcmp.lt.s32.totalorder %v1844, %v1845
        %v1975 = vsel %vm1974, %v1844, %v1845
        %v1976 = vand.u32 %v1975, 65535
        %v1977 = vshra.s32 %v1975, 16
        %v1978 = vcvt.s32.f32 %v1976
        %v1979 = vcvt.s32.f32 %v1977
        %1980 = vmin.xlane.f32.xlu0 %v1979
        %v1981 = vpop.xlane.xlu0 %1980
        %vm1982 = vcmp.eq.f32.partialorder %v1979, %v1981
        %v1983 = vsel %vm1982, %v1978, inf
        %1984 = vmin.xlane.f32.xlu0 %v1983
        %v1985 = vpop.xlane.xlu0 %1984
        %v1986 = vcvt.f32.s32 %v1985
        %v1987 = vcvt.f32.s32 %v1981
        %v1988 = vshll.u32 %v1987, 16
        %v1989 = vadd.s32 %v1988, %v1986
        %vm1990 = vcmp.lt.s32.totalorder %v1846, %v1847
        %v1991 = vsel %vm1990, %v1846, %v1847
        %v1992 = vand.u32 %v1991, 65535
        %v1993 = vshra.s32 %v1991, 16
        %v1994 = vcvt.s32.f32 %v1992
        %v1995 = vcvt.s32.f32 %v1993
        %1996 = vmin.xlane.f32.xlu0 %v1995
        %v1997 = vpop.xlane.xlu0 %1996
        %vm1998 = vcmp.eq.f32.partialorder %v1995, %v1997
        %v1999 = vsel %vm1998, %v1994, inf
        %2000 = vmin.xlane.f32.xlu0 %v1999
        %v2001 = vpop.xlane.xlu0 %2000
        %v2002 = vcvt.f32.s32 %v2001
        %v2003 = vcvt.f32.s32 %v1997
        %v2004 = vshll.u32 %v2003, 16
        %v2005 = vadd.s32 %v2004, %v2002
        %vm2006 = vcmp.lt.s32.totalorder %v1848, %v1849
        %v2007 = vsel %vm2006, %v1848, %v1849
        %v2008 = vand.u32 %v2007, 65535
        %v2009 = vshra.s32 %v2007, 16
        %v2010 = vcvt.s32.f32 %v2008
        %v2011 = vcvt.s32.f32 %v2009
        %2012 = vmin.xlane.f32.xlu0 %v2011
        %v2013 = vpop.xlane.xlu0 %2012
        %vm2014 = vcmp.eq.f32.partialorder %v2011, %v2013
        %v2015 = vsel %vm2014, %v2010, inf
        %2016 = vmin.xlane.f32.xlu0 %v2015
        %v2017 = vpop.xlane.xlu0 %2016
        %v2018 = vcvt.f32.s32 %v2017
        %v2019 = vcvt.f32.s32 %v2013
        %v2020 = vshll.u32 %v2019, 16
        %v2021 = vadd.s32 %v2020, %v2018
        %vm2022 = vcmp.lt.s32.totalorder %v1850, %v1851
        %v2023 = vsel %vm2022, %v1850, %v1851
        %v2024 = vand.u32 %v2023, 65535
        %v2025 = vshra.s32 %v2023, 16
        %v2026 = vcvt.s32.f32 %v2024
        %v2027 = vcvt.s32.f32 %v2025
        %2028 = vmin.xlane.f32.xlu0 %v2027
        %v2029 = vpop.xlane.xlu0 %2028
        %vm2030 = vcmp.eq.f32.partialorder %v2027, %v2029
        %v2031 = vsel %vm2030, %v2026, inf
        %2032 = vmin.xlane.f32.xlu0 %v2031
        %v2033 = vpop.xlane.xlu0 %2032
        %v2034 = vcvt.f32.s32 %v2033
        %v2035 = vcvt.f32.s32 %v2029
        %v2036 = vshll.u32 %v2035, 16
        %v2037 = vadd.s32 %v2036, %v2034
        %vm2038 = vcmp.lt.s32.totalorder %v1852, %v1853
        %v2039 = vsel %vm2038, %v1852, %v1853
        %v2040 = vand.u32 %v2039, 65535
        %v2041 = vshra.s32 %v2039, 16
        %v2042 = vcvt.s32.f32 %v2040
        %v2043 = vcvt.s32.f32 %v2041
        %2044 = vmin.xlane.f32.xlu0 %v2043
        %v2045 = vpop.xlane.xlu0 %2044
        %vm2046 = vcmp.eq.f32.partialorder %v2043, %v2045
        %v2047 = vsel %vm2046, %v2042, inf
        %2048 = vmin.xlane.f32.xlu0 %v2047
        %v2049 = vpop.xlane.xlu0 %2048
        %v2050 = vcvt.f32.s32 %v2049
        %v2051 = vcvt.f32.s32 %v2045
        %v2052 = vshll.u32 %v2051, 16
        %v2053 = vadd.s32 %v2052, %v2050
        %vm2054 = vcmp.lt.s32.totalorder %v1854, %v1855
        %v2055 = vsel %vm2054, %v1854, %v1855
        %v2056 = vand.u32 %v2055, 65535
        %v2057 = vshra.s32 %v2055, 16
        %v2058 = vcvt.s32.f32 %v2056
        %v2059 = vcvt.s32.f32 %v2057
        %2060 = vmin.xlane.f32.xlu0 %v2059
        %v2061 = vpop.xlane.xlu0 %2060
        %vm2062 = vcmp.eq.f32.partialorder %v2059, %v2061
        %v2063 = vsel %vm2062, %v2058, inf
        %2064 = vmin.xlane.f32.xlu0 %v2063
        %v2065 = vpop.xlane.xlu0 %2064
        %v2066 = vcvt.f32.s32 %v2065
        %v2067 = vcvt.f32.s32 %v2061
        %v2068 = vshll.u32 %v2067, 16
        %v2069 = vadd.s32 %v2068, %v2066
        %vm2070 = vcmp.lt.s32.totalorder %v1856, %v1857
        %v2071 = vsel %vm2070, %v1856, %v1857
        %v2072 = vand.u32 %v2071, 65535
        %v2073 = vshra.s32 %v2071, 16
        %v2074 = vcvt.s32.f32 %v2072
        %v2075 = vcvt.s32.f32 %v2073
        %2076 = vmin.xlane.f32.xlu0 %v2075
        %v2077 = vpop.xlane.xlu0 %2076
        %vm2078 = vcmp.eq.f32.partialorder %v2075, %v2077
        %v2079 = vsel %vm2078, %v2074, inf
        %2080 = vmin.xlane.f32.xlu0 %v2079
        %v2081 = vpop.xlane.xlu0 %2080
        %v2082 = vcvt.f32.s32 %v2081
        %v2083 = vcvt.f32.s32 %v2077
        %v2084 = vshll.u32 %v2083, 16
        %v2085 = vadd.s32 %v2084, %v2082
        %vm2086 = vcmp.lt.s32.totalorder %v1858, %v1859
        %v2087 = vsel %vm2086, %v1858, %v1859
        %v2088 = vand.u32 %v2087, 65535
        %v2089 = vshra.s32 %v2087, 16
        %v2090 = vcvt.s32.f32 %v2088
        %v2091 = vcvt.s32.f32 %v2089
        %2092 = vmin.xlane.f32.xlu0 %v2091
        %v2093 = vpop.xlane.xlu0 %2092
        %vm2094 = vcmp.eq.f32.partialorder %v2091, %v2093
        %v2095 = vsel %vm2094, %v2090, inf
        %2096 = vmin.xlane.f32.xlu0 %v2095
        %v2097 = vpop.xlane.xlu0 %2096
        %v2098 = vcvt.f32.s32 %v2097
        %v2099 = vcvt.f32.s32 %v2093
        %v2100 = vshll.u32 %v2099, 16
        %v2101 = vadd.s32 %v2100, %v2098
        %vm2102 = vcmp.lt.s32.totalorder %v1860, %v1861
        %v2103 = vsel %vm2102, %v1860, %v1861
        %v2104 = vand.u32 %v2103, 65535
        %v2105 = vshra.s32 %v2103, 16
        %v2106 = vcvt.s32.f32 %v2104
        %v2107 = vcvt.s32.f32 %v2105
        %2108 = vmin.xlane.f32.xlu0 %v2107
        %v2109 = vpop.xlane.xlu0 %2108
        %vm2110 = vcmp.eq.f32.partialorder %v2107, %v2109
        %v2111 = vsel %vm2110, %v2106, inf
        %2112 = vmin.xlane.f32.xlu0 %v2111
        %v2113 = vpop.xlane.xlu0 %2112
        %v2114 = vcvt.f32.s32 %v2113
        %v2115 = vcvt.f32.s32 %v2109
        %v2116 = vshll.u32 %v2115, 16
        %v2117 = vadd.s32 %v2116, %v2114
        %vm2118 = vcmp.eq.s32.totalorder %v786, %v1877
        %vm2119 = vcmp.eq.s32.totalorder %v787, %v1877
        %vm2120 = vcmp.eq.s32.totalorder %v786, %v1893
        %vm2121 = vcmp.eq.s32.totalorder %v787, %v1893
        %vm2122 = vcmp.eq.s32.totalorder %v786, %v1909
        %vm2123 = vcmp.eq.s32.totalorder %v787, %v1909
        %vm2124 = vcmp.eq.s32.totalorder %v786, %v1925
        %vm2125 = vcmp.eq.s32.totalorder %v787, %v1925
        %vm2126 = vcmp.eq.s32.totalorder %v786, %v1941
        %vm2127 = vcmp.eq.s32.totalorder %v787, %v1941
        %vm2128 = vcmp.eq.s32.totalorder %v786, %v1957
        %vm2129 = vcmp.eq.s32.totalorder %v787, %v1957
        %vm2130 = vcmp.eq.s32.totalorder %v786, %v1973
        %vm2131 = vcmp.eq.s32.totalorder %v787, %v1973
        %vm2132 = vcmp.eq.s32.totalorder %v786, %v1989
        %vm2133 = vcmp.eq.s32.totalorder %v787, %v1989
        %vm2134 = vcmp.eq.s32.totalorder %v786, %v2005
        %vm2135 = vcmp.eq.s32.totalorder %v787, %v2005
        %vm2136 = vcmp.eq.s32.totalorder %v786, %v2021
        %vm2137 = vcmp.eq.s32.totalorder %v787, %v2021
        %vm2138 = vcmp.eq.s32.totalorder %v786, %v2037
        %vm2139 = vcmp.eq.s32.totalorder %v787, %v2037
        %vm2140 = vcmp.eq.s32.totalorder %v786, %v2053
        %vm2141 = vcmp.eq.s32.totalorder %v787, %v2053
        %vm2142 = vcmp.eq.s32.totalorder %v786, %v2069
        %vm2143 = vcmp.eq.s32.totalorder %v787, %v2069
        %vm2144 = vcmp.eq.s32.totalorder %v786, %v2085
        %vm2145 = vcmp.eq.s32.totalorder %v787, %v2085
        %vm2146 = vcmp.eq.s32.totalorder %v786, %v2101
        %vm2147 = vcmp.eq.s32.totalorder %v787, %v2101
        %vm2148 = vcmp.eq.s32.totalorder %v786, %v2117
        %vm2149 = vcmp.eq.s32.totalorder %v787, %v2117
        %v2150 = vsel %vm2118, %v753, %v1686
        %v2151 = vsel %vm2119, %v754, %v1687
        %v2152 = vsel %vm2120, %v755, %v1688
        %v2153 = vsel %vm2121, %v756, %v1689
        %v2154 = vsel %vm2122, %v757, %v1690
        %v2155 = vsel %vm2123, %v758, %v1691
        %v2156 = vsel %vm2124, %v759, %v1692
        %v2157 = vsel %vm2125, %v760, %v1693
        %v2158 = vsel %vm2126, %v761, %v1694
        %v2159 = vsel %vm2127, %v762, %v1695
        %v2160 = vsel %vm2128, %v763, %v1696
        %v2161 = vsel %vm2129, %v764, %v1697
        %v2162 = vsel %vm2130, %v765, %v1698
        %v2163 = vsel %vm2131, %v766, %v1699
        %v2164 = vsel %vm2132, %v767, %v1700
        %v2165 = vsel %vm2133, %v768, %v1701
        %v2166 = vsel %vm2134, %v769, %v1702
        %v2167 = vsel %vm2135, %v770, %v1703
        %v2168 = vsel %vm2136, %v771, %v1704
        %v2169 = vsel %vm2137, %v772, %v1705
        %v2170 = vsel %vm2138, %v773, %v1706
        %v2171 = vsel %vm2139, %v774, %v1707
        %v2172 = vsel %vm2140, %v775, %v1708
        %v2173 = vsel %vm2141, %v776, %v1709
        %v2174 = vsel %vm2142, %v777, %v1710
        %v2175 = vsel %vm2143, %v778, %v1711
        %v2176 = vsel %vm2144, %v779, %v1712
        %v2177 = vsel %vm2145, %v780, %v1713
        %v2178 = vsel %vm2146, %v781, %v1714
        %v2179 = vsel %vm2147, %v782, %v1715
        %v2180 = vsel %vm2148, %v783, %v1716
        %v2181 = vsel %vm2149, %v784, %v1717
        %v2182 = vsel %vm2118, -inf, %v1718
        %v2183 = vsel %vm2119, -inf, %v1719
        %v2184 = vsel %vm2120, -inf, %v1720
        %v2185 = vsel %vm2121, -inf, %v1721
        %v2186 = vsel %vm2122, -inf, %v1722
        %v2187 = vsel %vm2123, -inf, %v1723
        %v2188 = vsel %vm2124, -inf, %v1724
        %v2189 = vsel %vm2125, -inf, %v1725
        %v2190 = vsel %vm2126, -inf, %v1726
        %v2191 = vsel %vm2127, -inf, %v1727
        %v2192 = vsel %vm2128, -inf, %v1728
        %v2193 = vsel %vm2129, -inf, %v1729
        %v2194 = vsel %vm2130, -inf, %v1730
        %v2195 = vsel %vm2131, -inf, %v1731
        %v2196 = vsel %vm2132, -inf, %v1732
        %v2197 = vsel %vm2133, -inf, %v1733
        %v2198 = vsel %vm2134, -inf, %v1734
        %v2199 = vsel %vm2135, -inf, %v1735
        %v2200 = vsel %vm2136, -inf, %v1736
        %v2201 = vsel %vm2137, -inf, %v1737
        %v2202 = vsel %vm2138, -inf, %v1738
        %v2203 = vsel %vm2139, -inf, %v1739
        %v2204 = vsel %vm2140, -inf, %v1740
        %v2205 = vsel %vm2141, -inf, %v1741
        %v2206 = vsel %vm2142, -inf, %v1742
        %v2207 = vsel %vm2143, -inf, %v1743
        %v2208 = vsel %vm2144, -inf, %v1744
        %v2209 = vsel %vm2145, -inf, %v1745
        %v2210 = vsel %vm2146, -inf, %v1746
        %v2211 = vsel %vm2147, -inf, %v1747
        %v2212 = vsel %vm2148, -inf, %v1748
        %v2213 = vsel %vm2149, -inf, %v1749
        %v2214 = vmax.f32 %v2182, %v2183
        %2215 = vmax.xlane.f32.xlu0 %v2214
        %v2216 = vpop.xlane.xlu0 %2215
        %v2217 = vmax.f32 %v2184, %v2185
        %2218 = vmax.xlane.f32.xlu0 %v2217
        %v2219 = vpop.xlane.xlu0 %2218
        %v2220 = vmax.f32 %v2186, %v2187
        %2221 = vmax.xlane.f32.xlu0 %v2220
        %v2222 = vpop.xlane.xlu0 %2221
        %v2223 = vmax.f32 %v2188, %v2189
        %2224 = vmax.xlane.f32.xlu0 %v2223
        %v2225 = vpop.xlane.xlu0 %2224
        %v2226 = vmax.f32 %v2190, %v2191
        %2227 = vmax.xlane.f32.xlu0 %v2226
        %v2228 = vpop.xlane.xlu0 %2227
        %v2229 = vmax.f32 %v2192, %v2193
        %2230 = vmax.xlane.f32.xlu0 %v2229
        %v2231 = vpop.xlane.xlu0 %2230
        %v2232 = vmax.f32 %v2194, %v2195
        %2233 = vmax.xlane.f32.xlu0 %v2232
        %v2234 = vpop.xlane.xlu0 %2233
        %v2235 = vmax.f32 %v2196, %v2197
        %2236 = vmax.xlane.f32.xlu0 %v2235
        %v2237 = vpop.xlane.xlu0 %2236
        %v2238 = vmax.f32 %v2198, %v2199
        %2239 = vmax.xlane.f32.xlu0 %v2238
        %v2240 = vpop.xlane.xlu0 %2239
        %v2241 = vmax.f32 %v2200, %v2201
        %2242 = vmax.xlane.f32.xlu0 %v2241
        %v2243 = vpop.xlane.xlu0 %2242
        %v2244 = vmax.f32 %v2202, %v2203
        %2245 = vmax.xlane.f32.xlu0 %v2244
        %v2246 = vpop.xlane.xlu0 %2245
        %v2247 = vmax.f32 %v2204, %v2205
        %2248 = vmax.xlane.f32.xlu0 %v2247
        %v2249 = vpop.xlane.xlu0 %2248
        %v2250 = vmax.f32 %v2206, %v2207
        %2251 = vmax.xlane.f32.xlu0 %v2250
        %v2252 = vpop.xlane.xlu0 %2251
        %v2253 = vmax.f32 %v2208, %v2209
        %2254 = vmax.xlane.f32.xlu0 %v2253
        %v2255 = vpop.xlane.xlu0 %2254
        %v2256 = vmax.f32 %v2210, %v2211
        %2257 = vmax.xlane.f32.xlu0 %v2256
        %v2258 = vpop.xlane.xlu0 %2257
        %v2259 = vmax.f32 %v2212, %v2213
        %2260 = vmax.xlane.f32.xlu0 %v2259
        %v2261 = vpop.xlane.xlu0 %2260
        %vm2262 = vcmp.ge.f32.partialorder %v2182, %v2216
        %vm2263 = vcmp.ge.f32.partialorder %v2183, %v2216
        %vm2264 = vcmp.ge.f32.partialorder %v2184, %v2219
        %vm2265 = vcmp.ge.f32.partialorder %v2185, %v2219
        %vm2266 = vcmp.ge.f32.partialorder %v2186, %v2222
        %vm2267 = vcmp.ge.f32.partialorder %v2187, %v2222
        %vm2268 = vcmp.ge.f32.partialorder %v2188, %v2225
        %vm2269 = vcmp.ge.f32.partialorder %v2189, %v2225
        %vm2270 = vcmp.ge.f32.partialorder %v2190, %v2228
        %vm2271 = vcmp.ge.f32.partialorder %v2191, %v2228
        %vm2272 = vcmp.ge.f32.partialorder %v2192, %v2231
        %vm2273 = vcmp.ge.f32.partialorder %v2193, %v2231
        %vm2274 = vcmp.ge.f32.partialorder %v2194, %v2234
        %vm2275 = vcmp.ge.f32.partialorder %v2195, %v2234
        %vm2276 = vcmp.ge.f32.partialorder %v2196, %v2237
        %vm2277 = vcmp.ge.f32.partialorder %v2197, %v2237
        %vm2278 = vcmp.ge.f32.partialorder %v2198, %v2240
        %vm2279 = vcmp.ge.f32.partialorder %v2199, %v2240
        %vm2280 = vcmp.ge.f32.partialorder %v2200, %v2243
        %vm2281 = vcmp.ge.f32.partialorder %v2201, %v2243
        %vm2282 = vcmp.ge.f32.partialorder %v2202, %v2246
        %vm2283 = vcmp.ge.f32.partialorder %v2203, %v2246
        %vm2284 = vcmp.ge.f32.partialorder %v2204, %v2249
        %vm2285 = vcmp.ge.f32.partialorder %v2205, %v2249
        %vm2286 = vcmp.ge.f32.partialorder %v2206, %v2252
        %vm2287 = vcmp.ge.f32.partialorder %v2207, %v2252
        %vm2288 = vcmp.ge.f32.partialorder %v2208, %v2255
        %vm2289 = vcmp.ge.f32.partialorder %v2209, %v2255
        %vm2290 = vcmp.ge.f32.partialorder %v2210, %v2258
        %vm2291 = vcmp.ge.f32.partialorder %v2211, %v2258
        %vm2292 = vcmp.ge.f32.partialorder %v2212, %v2261
        %vm2293 = vcmp.ge.f32.partialorder %v2213, %v2261
        %v2294 = vsel %vm2262, %v786, 256
        %v2295 = vsel %vm2263, %v787, 256
        %v2296 = vsel %vm2264, %v786, 256
        %v2297 = vsel %vm2265, %v787, 256
        %v2298 = vsel %vm2266, %v786, 256
        %v2299 = vsel %vm2267, %v787, 256
        %v2300 = vsel %vm2268, %v786, 256
        %v2301 = vsel %vm2269, %v787, 256
        %v2302 = vsel %vm2270, %v786, 256
        %v2303 = vsel %vm2271, %v787, 256
        %v2304 = vsel %vm2272, %v786, 256
        %v2305 = vsel %vm2273, %v787, 256
        %v2306 = vsel %vm2274, %v786, 256
        %v2307 = vsel %vm2275, %v787, 256
        %v2308 = vsel %vm2276, %v786, 256
        %v2309 = vsel %vm2277, %v787, 256
        %v2310 = vsel %vm2278, %v786, 256
        %v2311 = vsel %vm2279, %v787, 256
        %v2312 = vsel %vm2280, %v786, 256
        %v2313 = vsel %vm2281, %v787, 256
        %v2314 = vsel %vm2282, %v786, 256
        %v2315 = vsel %vm2283, %v787, 256
        %v2316 = vsel %vm2284, %v786, 256
        %v2317 = vsel %vm2285, %v787, 256
        %v2318 = vsel %vm2286, %v786, 256
        %v2319 = vsel %vm2287, %v787, 256
        %v2320 = vsel %vm2288, %v786, 256
        %v2321 = vsel %vm2289, %v787, 256
        %v2322 = vsel %vm2290, %v786, 256
        %v2323 = vsel %vm2291, %v787, 256
        %v2324 = vsel %vm2292, %v786, 256
        %v2325 = vsel %vm2293, %v787, 256
        %vm2326 = vcmp.lt.s32.totalorder %v2294, %v2295
        %v2327 = vsel %vm2326, %v2294, %v2295
        %v2328 = vand.u32 %v2327, 65535
        %v2329 = vshra.s32 %v2327, 16
        %v2330 = vcvt.s32.f32 %v2328
        %v2331 = vcvt.s32.f32 %v2329
        %2332 = vmin.xlane.f32.xlu0 %v2331
        %v2333 = vpop.xlane.xlu0 %2332
        %vm2334 = vcmp.eq.f32.partialorder %v2331, %v2333
        %v2335 = vsel %vm2334, %v2330, inf
        %2336 = vmin.xlane.f32.xlu0 %v2335
        %v2337 = vpop.xlane.xlu0 %2336
        %v2338 = vcvt.f32.s32 %v2337
        %v2339 = vcvt.f32.s32 %v2333
        %v2340 = vshll.u32 %v2339, 16
        %v2341 = vadd.s32 %v2340, %v2338
        %vm2342 = vcmp.lt.s32.totalorder %v2296, %v2297
        %v2343 = vsel %vm2342, %v2296, %v2297
        %v2344 = vand.u32 %v2343, 65535
        %v2345 = vshra.s32 %v2343, 16
        %v2346 = vcvt.s32.f32 %v2344
        %v2347 = vcvt.s32.f32 %v2345
        %2348 = vmin.xlane.f32.xlu0 %v2347
        %v2349 = vpop.xlane.xlu0 %2348
        %vm2350 = vcmp.eq.f32.partialorder %v2347, %v2349
        %v2351 = vsel %vm2350, %v2346, inf
        %2352 = vmin.xlane.f32.xlu0 %v2351
        %v2353 = vpop.xlane.xlu0 %2352
        %v2354 = vcvt.f32.s32 %v2353
        %v2355 = vcvt.f32.s32 %v2349
        %v2356 = vshll.u32 %v2355, 16
        %v2357 = vadd.s32 %v2356, %v2354
        %vm2358 = vcmp.lt.s32.totalorder %v2298, %v2299
        %v2359 = vsel %vm2358, %v2298, %v2299
        %v2360 = vand.u32 %v2359, 65535
        %v2361 = vshra.s32 %v2359, 16
        %v2362 = vcvt.s32.f32 %v2360
        %v2363 = vcvt.s32.f32 %v2361
        %2364 = vmin.xlane.f32.xlu0 %v2363
        %v2365 = vpop.xlane.xlu0 %2364
        %vm2366 = vcmp.eq.f32.partialorder %v2363, %v2365
        %v2367 = vsel %vm2366, %v2362, inf
        %2368 = vmin.xlane.f32.xlu0 %v2367
        %v2369 = vpop.xlane.xlu0 %2368
        %v2370 = vcvt.f32.s32 %v2369
        %v2371 = vcvt.f32.s32 %v2365
        %v2372 = vshll.u32 %v2371, 16
        %v2373 = vadd.s32 %v2372, %v2370
        %vm2374 = vcmp.lt.s32.totalorder %v2300, %v2301
        %v2375 = vsel %vm2374, %v2300, %v2301
        %v2376 = vand.u32 %v2375, 65535
        %v2377 = vshra.s32 %v2375, 16
        %v2378 = vcvt.s32.f32 %v2376
        %v2379 = vcvt.s32.f32 %v2377
        %2380 = vmin.xlane.f32.xlu0 %v2379
        %v2381 = vpop.xlane.xlu0 %2380
        %vm2382 = vcmp.eq.f32.partialorder %v2379, %v2381
        %v2383 = vsel %vm2382, %v2378, inf
        %2384 = vmin.xlane.f32.xlu0 %v2383
        %v2385 = vpop.xlane.xlu0 %2384
        %v2386 = vcvt.f32.s32 %v2385
        %v2387 = vcvt.f32.s32 %v2381
        %v2388 = vshll.u32 %v2387, 16
        %v2389 = vadd.s32 %v2388, %v2386
        %vm2390 = vcmp.lt.s32.totalorder %v2302, %v2303
        %v2391 = vsel %vm2390, %v2302, %v2303
        %v2392 = vand.u32 %v2391, 65535
        %v2393 = vshra.s32 %v2391, 16
        %v2394 = vcvt.s32.f32 %v2392
        %v2395 = vcvt.s32.f32 %v2393
        %2396 = vmin.xlane.f32.xlu0 %v2395
        %v2397 = vpop.xlane.xlu0 %2396
        %vm2398 = vcmp.eq.f32.partialorder %v2395, %v2397
        %v2399 = vsel %vm2398, %v2394, inf
        %2400 = vmin.xlane.f32.xlu0 %v2399
        %v2401 = vpop.xlane.xlu0 %2400
        %v2402 = vcvt.f32.s32 %v2401
        %v2403 = vcvt.f32.s32 %v2397
        %v2404 = vshll.u32 %v2403, 16
        %v2405 = vadd.s32 %v2404, %v2402
        %vm2406 = vcmp.lt.s32.totalorder %v2304, %v2305
        %v2407 = vsel %vm2406, %v2304, %v2305
        %v2408 = vand.u32 %v2407, 65535
        %v2409 = vshra.s32 %v2407, 16
        %v2410 = vcvt.s32.f32 %v2408
        %v2411 = vcvt.s32.f32 %v2409
        %2412 = vmin.xlane.f32.xlu0 %v2411
        %v2413 = vpop.xlane.xlu0 %2412
        %vm2414 = vcmp.eq.f32.partialorder %v2411, %v2413
        %v2415 = vsel %vm2414, %v2410, inf
        %2416 = vmin.xlane.f32.xlu0 %v2415
        %v2417 = vpop.xlane.xlu0 %2416
        %v2418 = vcvt.f32.s32 %v2417
        %v2419 = vcvt.f32.s32 %v2413
        %v2420 = vshll.u32 %v2419, 16
        %v2421 = vadd.s32 %v2420, %v2418
        %vm2422 = vcmp.lt.s32.totalorder %v2306, %v2307
        %v2423 = vsel %vm2422, %v2306, %v2307
        %v2424 = vand.u32 %v2423, 65535
        %v2425 = vshra.s32 %v2423, 16
        %v2426 = vcvt.s32.f32 %v2424
        %v2427 = vcvt.s32.f32 %v2425
        %2428 = vmin.xlane.f32.xlu0 %v2427
        %v2429 = vpop.xlane.xlu0 %2428
        %vm2430 = vcmp.eq.f32.partialorder %v2427, %v2429
        %v2431 = vsel %vm2430, %v2426, inf
        %2432 = vmin.xlane.f32.xlu0 %v2431
        %v2433 = vpop.xlane.xlu0 %2432
        %v2434 = vcvt.f32.s32 %v2433
        %v2435 = vcvt.f32.s32 %v2429
        %v2436 = vshll.u32 %v2435, 16
        %v2437 = vadd.s32 %v2436, %v2434
        %vm2438 = vcmp.lt.s32.totalorder %v2308, %v2309
        %v2439 = vsel %vm2438, %v2308, %v2309
        %v2440 = vand.u32 %v2439, 65535
        %v2441 = vshra.s32 %v2439, 16
        %v2442 = vcvt.s32.f32 %v2440
        %v2443 = vcvt.s32.f32 %v2441
        %2444 = vmin.xlane.f32.xlu0 %v2443
        %v2445 = vpop.xlane.xlu0 %2444
        %vm2446 = vcmp.eq.f32.partialorder %v2443, %v2445
        %v2447 = vsel %vm2446, %v2442, inf
        %2448 = vmin.xlane.f32.xlu0 %v2447
        %v2449 = vpop.xlane.xlu0 %2448
        %v2450 = vcvt.f32.s32 %v2449
        %v2451 = vcvt.f32.s32 %v2445
        %v2452 = vshll.u32 %v2451, 16
        %v2453 = vadd.s32 %v2452, %v2450
        %vm2454 = vcmp.lt.s32.totalorder %v2310, %v2311
        %v2455 = vsel %vm2454, %v2310, %v2311
        %v2456 = vand.u32 %v2455, 65535
        %v2457 = vshra.s32 %v2455, 16
        %v2458 = vcvt.s32.f32 %v2456
        %v2459 = vcvt.s32.f32 %v2457
        %2460 = vmin.xlane.f32.xlu0 %v2459
        %v2461 = vpop.xlane.xlu0 %2460
        %vm2462 = vcmp.eq.f32.partialorder %v2459, %v2461
        %v2463 = vsel %vm2462, %v2458, inf
        %2464 = vmin.xlane.f32.xlu0 %v2463
        %v2465 = vpop.xlane.xlu0 %2464
        %v2466 = vcvt.f32.s32 %v2465
        %v2467 = vcvt.f32.s32 %v2461
        %v2468 = vshll.u32 %v2467, 16
        %v2469 = vadd.s32 %v2468, %v2466
        %vm2470 = vcmp.lt.s32.totalorder %v2312, %v2313
        %v2471 = vsel %vm2470, %v2312, %v2313
        %v2472 = vand.u32 %v2471, 65535
        %v2473 = vshra.s32 %v2471, 16
        %v2474 = vcvt.s32.f32 %v2472
        %v2475 = vcvt.s32.f32 %v2473
        %2476 = vmin.xlane.f32.xlu0 %v2475
        %v2477 = vpop.xlane.xlu0 %2476
        %vm2478 = vcmp.eq.f32.partialorder %v2475, %v2477
        %v2479 = vsel %vm2478, %v2474, inf
        %2480 = vmin.xlane.f32.xlu0 %v2479
        %v2481 = vpop.xlane.xlu0 %2480
        %v2482 = vcvt.f32.s32 %v2481
        %v2483 = vcvt.f32.s32 %v2477
        %v2484 = vshll.u32 %v2483, 16
        %v2485 = vadd.s32 %v2484, %v2482
        %vm2486 = vcmp.lt.s32.totalorder %v2314, %v2315
        %v2487 = vsel %vm2486, %v2314, %v2315
        %v2488 = vand.u32 %v2487, 65535
        %v2489 = vshra.s32 %v2487, 16
        %v2490 = vcvt.s32.f32 %v2488
        %v2491 = vcvt.s32.f32 %v2489
        %2492 = vmin.xlane.f32.xlu0 %v2491
        %v2493 = vpop.xlane.xlu0 %2492
        %vm2494 = vcmp.eq.f32.partialorder %v2491, %v2493
        %v2495 = vsel %vm2494, %v2490, inf
        %2496 = vmin.xlane.f32.xlu0 %v2495
        %v2497 = vpop.xlane.xlu0 %2496
        %v2498 = vcvt.f32.s32 %v2497
        %v2499 = vcvt.f32.s32 %v2493
        %v2500 = vshll.u32 %v2499, 16
        %v2501 = vadd.s32 %v2500, %v2498
        %vm2502 = vcmp.lt.s32.totalorder %v2316, %v2317
        %v2503 = vsel %vm2502, %v2316, %v2317
        %v2504 = vand.u32 %v2503, 65535
        %v2505 = vshra.s32 %v2503, 16
        %v2506 = vcvt.s32.f32 %v2504
        %v2507 = vcvt.s32.f32 %v2505
        %2508 = vmin.xlane.f32.xlu0 %v2507
        %v2509 = vpop.xlane.xlu0 %2508
        %vm2510 = vcmp.eq.f32.partialorder %v2507, %v2509
        %v2511 = vsel %vm2510, %v2506, inf
        %2512 = vmin.xlane.f32.xlu0 %v2511
        %v2513 = vpop.xlane.xlu0 %2512
        %v2514 = vcvt.f32.s32 %v2513
        %v2515 = vcvt.f32.s32 %v2509
        %v2516 = vshll.u32 %v2515, 16
        %v2517 = vadd.s32 %v2516, %v2514
        %vm2518 = vcmp.lt.s32.totalorder %v2318, %v2319
        %v2519 = vsel %vm2518, %v2318, %v2319
        %v2520 = vand.u32 %v2519, 65535
        %v2521 = vshra.s32 %v2519, 16
        %v2522 = vcvt.s32.f32 %v2520
        %v2523 = vcvt.s32.f32 %v2521
        %2524 = vmin.xlane.f32.xlu0 %v2523
        %v2525 = vpop.xlane.xlu0 %2524
        %vm2526 = vcmp.eq.f32.partialorder %v2523, %v2525
        %v2527 = vsel %vm2526, %v2522, inf
        %2528 = vmin.xlane.f32.xlu0 %v2527
        %v2529 = vpop.xlane.xlu0 %2528
        %v2530 = vcvt.f32.s32 %v2529
        %v2531 = vcvt.f32.s32 %v2525
        %v2532 = vshll.u32 %v2531, 16
        %v2533 = vadd.s32 %v2532, %v2530
        %vm2534 = vcmp.lt.s32.totalorder %v2320, %v2321
        %v2535 = vsel %vm2534, %v2320, %v2321
        %v2536 = vand.u32 %v2535, 65535
        %v2537 = vshra.s32 %v2535, 16
        %v2538 = vcvt.s32.f32 %v2536
        %v2539 = vcvt.s32.f32 %v2537
        %2540 = vmin.xlane.f32.xlu0 %v2539
        %v2541 = vpop.xlane.xlu0 %2540
        %vm2542 = vcmp.eq.f32.partialorder %v2539, %v2541
        %v2543 = vsel %vm2542, %v2538, inf
        %2544 = vmin.xlane.f32.xlu0 %v2543
        %v2545 = vpop.xlane.xlu0 %2544
        %v2546 = vcvt.f32.s32 %v2545
        %v2547 = vcvt.f32.s32 %v2541
        %v2548 = vshll.u32 %v2547, 16
        %v2549 = vadd.s32 %v2548, %v2546
        %vm2550 = vcmp.lt.s32.totalorder %v2322, %v2323
        %v2551 = vsel %vm2550, %v2322, %v2323
        %v2552 = vand.u32 %v2551, 65535
        %v2553 = vshra.s32 %v2551, 16
        %v2554 = vcvt.s32.f32 %v2552
        %v2555 = vcvt.s32.f32 %v2553
        %2556 = vmin.xlane.f32.xlu0 %v2555
        %v2557 = vpop.xlane.xlu0 %2556
        %vm2558 = vcmp.eq.f32.partialorder %v2555, %v2557
        %v2559 = vsel %vm2558, %v2554, inf
        %2560 = vmin.xlane.f32.xlu0 %v2559
        %v2561 = vpop.xlane.xlu0 %2560
        %v2562 = vcvt.f32.s32 %v2561
        %v2563 = vcvt.f32.s32 %v2557
        %v2564 = vshll.u32 %v2563, 16
        %v2565 = vadd.s32 %v2564, %v2562
        %vm2566 = vcmp.lt.s32.totalorder %v2324, %v2325
        %v2567 = vsel %vm2566, %v2324, %v2325
        %v2568 = vand.u32 %v2567, 65535
        %v2569 = vshra.s32 %v2567, 16
        %v2570 = vcvt.s32.f32 %v2568
        %v2571 = vcvt.s32.f32 %v2569
        %2572 = vmin.xlane.f32.xlu0 %v2571
        %v2573 = vpop.xlane.xlu0 %2572
        %vm2574 = vcmp.eq.f32.partialorder %v2571, %v2573
        %v2575 = vsel %vm2574, %v2570, inf
        %2576 = vmin.xlane.f32.xlu0 %v2575
        %v2577 = vpop.xlane.xlu0 %2576
        %v2578 = vcvt.f32.s32 %v2577
        %v2579 = vcvt.f32.s32 %v2573
        %v2580 = vshll.u32 %v2579, 16
        %v2581 = vadd.s32 %v2580, %v2578
        %vm2582 = vcmp.eq.s32.totalorder %v786, %v2341
        %vm2583 = vcmp.eq.s32.totalorder %v787, %v2341
        %vm2584 = vcmp.eq.s32.totalorder %v786, %v2357
        %vm2585 = vcmp.eq.s32.totalorder %v787, %v2357
        %vm2586 = vcmp.eq.s32.totalorder %v786, %v2373
        %vm2587 = vcmp.eq.s32.totalorder %v787, %v2373
        %vm2588 = vcmp.eq.s32.totalorder %v786, %v2389
        %vm2589 = vcmp.eq.s32.totalorder %v787, %v2389
        %vm2590 = vcmp.eq.s32.totalorder %v786, %v2405
        %vm2591 = vcmp.eq.s32.totalorder %v787, %v2405
        %vm2592 = vcmp.eq.s32.totalorder %v786, %v2421
        %vm2593 = vcmp.eq.s32.totalorder %v787, %v2421
        %vm2594 = vcmp.eq.s32.totalorder %v786, %v2437
        %vm2595 = vcmp.eq.s32.totalorder %v787, %v2437
        %vm2596 = vcmp.eq.s32.totalorder %v786, %v2453
        %vm2597 = vcmp.eq.s32.totalorder %v787, %v2453
        %vm2598 = vcmp.eq.s32.totalorder %v786, %v2469
        %vm2599 = vcmp.eq.s32.totalorder %v787, %v2469
        %vm2600 = vcmp.eq.s32.totalorder %v786, %v2485
        %vm2601 = vcmp.eq.s32.totalorder %v787, %v2485
        %vm2602 = vcmp.eq.s32.totalorder %v786, %v2501
        %vm2603 = vcmp.eq.s32.totalorder %v787, %v2501
        %vm2604 = vcmp.eq.s32.totalorder %v786, %v2517
        %vm2605 = vcmp.eq.s32.totalorder %v787, %v2517
        %vm2606 = vcmp.eq.s32.totalorder %v786, %v2533
        %vm2607 = vcmp.eq.s32.totalorder %v787, %v2533
        %vm2608 = vcmp.eq.s32.totalorder %v786, %v2549
        %vm2609 = vcmp.eq.s32.totalorder %v787, %v2549
        %vm2610 = vcmp.eq.s32.totalorder %v786, %v2565
        %vm2611 = vcmp.eq.s32.totalorder %v787, %v2565
        %vm2612 = vcmp.eq.s32.totalorder %v786, %v2581
        %vm2613 = vcmp.eq.s32.totalorder %v787, %v2581
        %v2614 = vsel %vm2582, %v753, %v2150
        %v2615 = vsel %vm2583, %v754, %v2151
        %v2616 = vsel %vm2584, %v755, %v2152
        %v2617 = vsel %vm2585, %v756, %v2153
        %v2618 = vsel %vm2586, %v757, %v2154
        %v2619 = vsel %vm2587, %v758, %v2155
        %v2620 = vsel %vm2588, %v759, %v2156
        %v2621 = vsel %vm2589, %v760, %v2157
        %v2622 = vsel %vm2590, %v761, %v2158
        %v2623 = vsel %vm2591, %v762, %v2159
        %v2624 = vsel %vm2592, %v763, %v2160
        %v2625 = vsel %vm2593, %v764, %v2161
        %v2626 = vsel %vm2594, %v765, %v2162
        %v2627 = vsel %vm2595, %v766, %v2163
        %v2628 = vsel %vm2596, %v767, %v2164
        %v2629 = vsel %vm2597, %v768, %v2165
        %v2630 = vsel %vm2598, %v769, %v2166
        %v2631 = vsel %vm2599, %v770, %v2167
        %v2632 = vsel %vm2600, %v771, %v2168
        %v2633 = vsel %vm2601, %v772, %v2169
        %v2634 = vsel %vm2602, %v773, %v2170
        %v2635 = vsel %vm2603, %v774, %v2171
        %v2636 = vsel %vm2604, %v775, %v2172
        %v2637 = vsel %vm2605, %v776, %v2173
        %v2638 = vsel %vm2606, %v777, %v2174
        %v2639 = vsel %vm2607, %v778, %v2175
        %v2640 = vsel %vm2608, %v779, %v2176
        %v2641 = vsel %vm2609, %v780, %v2177
        %v2642 = vsel %vm2610, %v781, %v2178
        %v2643 = vsel %vm2611, %v782, %v2179
        %v2644 = vsel %vm2612, %v783, %v2180
        %v2645 = vsel %vm2613, %v784, %v2181
        %v2646 = vsel %vm2582, -inf, %v2182
        %v2647 = vsel %vm2583, -inf, %v2183
        %v2648 = vsel %vm2584, -inf, %v2184
        %v2649 = vsel %vm2585, -inf, %v2185
        %v2650 = vsel %vm2586, -inf, %v2186
        %v2651 = vsel %vm2587, -inf, %v2187
        %v2652 = vsel %vm2588, -inf, %v2188
        %v2653 = vsel %vm2589, -inf, %v2189
        %v2654 = vsel %vm2590, -inf, %v2190
        %v2655 = vsel %vm2591, -inf, %v2191
        %v2656 = vsel %vm2592, -inf, %v2192
        %v2657 = vsel %vm2593, -inf, %v2193
        %v2658 = vsel %vm2594, -inf, %v2194
        %v2659 = vsel %vm2595, -inf, %v2195
        %v2660 = vsel %vm2596, -inf, %v2196
        %v2661 = vsel %vm2597, -inf, %v2197
        %v2662 = vsel %vm2598, -inf, %v2198
        %v2663 = vsel %vm2599, -inf, %v2199
        %v2664 = vsel %vm2600, -inf, %v2200
        %v2665 = vsel %vm2601, -inf, %v2201
        %v2666 = vsel %vm2602, -inf, %v2202
        %v2667 = vsel %vm2603, -inf, %v2203
        %v2668 = vsel %vm2604, -inf, %v2204
        %v2669 = vsel %vm2605, -inf, %v2205
        %v2670 = vsel %vm2606, -inf, %v2206
        %v2671 = vsel %vm2607, -inf, %v2207
        %v2672 = vsel %vm2608, -inf, %v2208
        %v2673 = vsel %vm2609, -inf, %v2209
        %v2674 = vsel %vm2610, -inf, %v2210
        %v2675 = vsel %vm2611, -inf, %v2211
        %v2676 = vsel %vm2612, -inf, %v2212
        %v2677 = vsel %vm2613, -inf, %v2213
        %v2678 = vmax.f32 %v2646, %v2647
        %2679 = vmax.xlane.f32.xlu0 %v2678
        %v2680 = vpop.xlane.xlu0 %2679
        %v2681 = vmax.f32 %v2648, %v2649
        %2682 = vmax.xlane.f32.xlu0 %v2681
        %v2683 = vpop.xlane.xlu0 %2682
        %v2684 = vmax.f32 %v2650, %v2651
        %2685 = vmax.xlane.f32.xlu0 %v2684
        %v2686 = vpop.xlane.xlu0 %2685
        %v2687 = vmax.f32 %v2652, %v2653
        %2688 = vmax.xlane.f32.xlu0 %v2687
        %v2689 = vpop.xlane.xlu0 %2688
        %v2690 = vmax.f32 %v2654, %v2655
        %2691 = vmax.xlane.f32.xlu0 %v2690
        %v2692 = vpop.xlane.xlu0 %2691
        %v2693 = vmax.f32 %v2656, %v2657
        %2694 = vmax.xlane.f32.xlu0 %v2693
        %v2695 = vpop.xlane.xlu0 %2694
        %v2696 = vmax.f32 %v2658, %v2659
        %2697 = vmax.xlane.f32.xlu0 %v2696
        %v2698 = vpop.xlane.xlu0 %2697
        %v2699 = vmax.f32 %v2660, %v2661
        %2700 = vmax.xlane.f32.xlu0 %v2699
        %v2701 = vpop.xlane.xlu0 %2700
        %v2702 = vmax.f32 %v2662, %v2663
        %2703 = vmax.xlane.f32.xlu0 %v2702
        %v2704 = vpop.xlane.xlu0 %2703
        %v2705 = vmax.f32 %v2664, %v2665
        %2706 = vmax.xlane.f32.xlu0 %v2705
        %v2707 = vpop.xlane.xlu0 %2706
        %v2708 = vmax.f32 %v2666, %v2667
        %2709 = vmax.xlane.f32.xlu0 %v2708
        %v2710 = vpop.xlane.xlu0 %2709
        %v2711 = vmax.f32 %v2668, %v2669
        %2712 = vmax.xlane.f32.xlu0 %v2711
        %v2713 = vpop.xlane.xlu0 %2712
        %v2714 = vmax.f32 %v2670, %v2671
        %2715 = vmax.xlane.f32.xlu0 %v2714
        %v2716 = vpop.xlane.xlu0 %2715
        %v2717 = vmax.f32 %v2672, %v2673
        %2718 = vmax.xlane.f32.xlu0 %v2717
        %v2719 = vpop.xlane.xlu0 %2718
        %v2720 = vmax.f32 %v2674, %v2675
        %2721 = vmax.xlane.f32.xlu0 %v2720
        %v2722 = vpop.xlane.xlu0 %2721
        %v2723 = vmax.f32 %v2676, %v2677
        %2724 = vmax.xlane.f32.xlu0 %v2723
        %v2725 = vpop.xlane.xlu0 %2724
        %vm2726 = vcmp.ge.f32.partialorder %v2646, %v2680
        %vm2727 = vcmp.ge.f32.partialorder %v2647, %v2680
        %vm2728 = vcmp.ge.f32.partialorder %v2648, %v2683
        %vm2729 = vcmp.ge.f32.partialorder %v2649, %v2683
        %vm2730 = vcmp.ge.f32.partialorder %v2650, %v2686
        %vm2731 = vcmp.ge.f32.partialorder %v2651, %v2686
        %vm2732 = vcmp.ge.f32.partialorder %v2652, %v2689
        %vm2733 = vcmp.ge.f32.partialorder %v2653, %v2689
        %vm2734 = vcmp.ge.f32.partialorder %v2654, %v2692
        %vm2735 = vcmp.ge.f32.partialorder %v2655, %v2692
        %vm2736 = vcmp.ge.f32.partialorder %v2656, %v2695
        %vm2737 = vcmp.ge.f32.partialorder %v2657, %v2695
        %vm2738 = vcmp.ge.f32.partialorder %v2658, %v2698
        %vm2739 = vcmp.ge.f32.partialorder %v2659, %v2698
        %vm2740 = vcmp.ge.f32.partialorder %v2660, %v2701
        %vm2741 = vcmp.ge.f32.partialorder %v2661, %v2701
        %vm2742 = vcmp.ge.f32.partialorder %v2662, %v2704
        %vm2743 = vcmp.ge.f32.partialorder %v2663, %v2704
        %vm2744 = vcmp.ge.f32.partialorder %v2664, %v2707
        %vm2745 = vcmp.ge.f32.partialorder %v2665, %v2707
        %vm2746 = vcmp.ge.f32.partialorder %v2666, %v2710
        %vm2747 = vcmp.ge.f32.partialorder %v2667, %v2710
        %vm2748 = vcmp.ge.f32.partialorder %v2668, %v2713
        %vm2749 = vcmp.ge.f32.partialorder %v2669, %v2713
        %vm2750 = vcmp.ge.f32.partialorder %v2670, %v2716
        %vm2751 = vcmp.ge.f32.partialorder %v2671, %v2716
        %vm2752 = vcmp.ge.f32.partialorder %v2672, %v2719
        %vm2753 = vcmp.ge.f32.partialorder %v2673, %v2719
        %vm2754 = vcmp.ge.f32.partialorder %v2674, %v2722
        %vm2755 = vcmp.ge.f32.partialorder %v2675, %v2722
        %vm2756 = vcmp.ge.f32.partialorder %v2676, %v2725
        %vm2757 = vcmp.ge.f32.partialorder %v2677, %v2725
        %v2758 = vsel %vm2726, %v786, 256
        %v2759 = vsel %vm2727, %v787, 256
        %v2760 = vsel %vm2728, %v786, 256
        %v2761 = vsel %vm2729, %v787, 256
        %v2762 = vsel %vm2730, %v786, 256
        %v2763 = vsel %vm2731, %v787, 256
        %v2764 = vsel %vm2732, %v786, 256
        %v2765 = vsel %vm2733, %v787, 256
        %v2766 = vsel %vm2734, %v786, 256
        %v2767 = vsel %vm2735, %v787, 256
        %v2768 = vsel %vm2736, %v786, 256
        %v2769 = vsel %vm2737, %v787, 256
        %v2770 = vsel %vm2738, %v786, 256
        %v2771 = vsel %vm2739, %v787, 256
        %v2772 = vsel %vm2740, %v786, 256
        %v2773 = vsel %vm2741, %v787, 256
        %v2774 = vsel %vm2742, %v786, 256
        %v2775 = vsel %vm2743, %v787, 256
        %v2776 = vsel %vm2744, %v786, 256
        %v2777 = vsel %vm2745, %v787, 256
        %v2778 = vsel %vm2746, %v786, 256
        %v2779 = vsel %vm2747, %v787, 256
        %v2780 = vsel %vm2748, %v786, 256
        %v2781 = vsel %vm2749, %v787, 256
        %v2782 = vsel %vm2750, %v786, 256
        %v2783 = vsel %vm2751, %v787, 256
        %v2784 = vsel %vm2752, %v786, 256
        %v2785 = vsel %vm2753, %v787, 256
        %v2786 = vsel %vm2754, %v786, 256
        %v2787 = vsel %vm2755, %v787, 256
        %v2788 = vsel %vm2756, %v786, 256
        %v2789 = vsel %vm2757, %v787, 256
        %vm2790 = vcmp.lt.s32.totalorder %v2758, %v2759
        %v2791 = vsel %vm2790, %v2758, %v2759
        %v2792 = vand.u32 %v2791, 65535
        %v2793 = vshra.s32 %v2791, 16
        %v2794 = vcvt.s32.f32 %v2792
        %v2795 = vcvt.s32.f32 %v2793
        %2796 = vmin.xlane.f32.xlu0 %v2795
        %v2797 = vpop.xlane.xlu0 %2796
        %vm2798 = vcmp.eq.f32.partialorder %v2795, %v2797
        %v2799 = vsel %vm2798, %v2794, inf
        %2800 = vmin.xlane.f32.xlu0 %v2799
        %v2801 = vpop.xlane.xlu0 %2800
        %v2802 = vcvt.f32.s32 %v2801
        %v2803 = vcvt.f32.s32 %v2797
        %v2804 = vshll.u32 %v2803, 16
        %v2805 = vadd.s32 %v2804, %v2802
        %vm2806 = vcmp.lt.s32.totalorder %v2760, %v2761
        %v2807 = vsel %vm2806, %v2760, %v2761
        %v2808 = vand.u32 %v2807, 65535
        %v2809 = vshra.s32 %v2807, 16
        %v2810 = vcvt.s32.f32 %v2808
        %v2811 = vcvt.s32.f32 %v2809
        %2812 = vmin.xlane.f32.xlu0 %v2811
        %v2813 = vpop.xlane.xlu0 %2812
        %vm2814 = vcmp.eq.f32.partialorder %v2811, %v2813
        %v2815 = vsel %vm2814, %v2810, inf
        %2816 = vmin.xlane.f32.xlu0 %v2815
        %v2817 = vpop.xlane.xlu0 %2816
        %v2818 = vcvt.f32.s32 %v2817
        %v2819 = vcvt.f32.s32 %v2813
        %v2820 = vshll.u32 %v2819, 16
        %v2821 = vadd.s32 %v2820, %v2818
        %vm2822 = vcmp.lt.s32.totalorder %v2762, %v2763
        %v2823 = vsel %vm2822, %v2762, %v2763
        %v2824 = vand.u32 %v2823, 65535
        %v2825 = vshra.s32 %v2823, 16
        %v2826 = vcvt.s32.f32 %v2824
        %v2827 = vcvt.s32.f32 %v2825
        %2828 = vmin.xlane.f32.xlu0 %v2827
        %v2829 = vpop.xlane.xlu0 %2828
        %vm2830 = vcmp.eq.f32.partialorder %v2827, %v2829
        %v2831 = vsel %vm2830, %v2826, inf
        %2832 = vmin.xlane.f32.xlu0 %v2831
        %v2833 = vpop.xlane.xlu0 %2832
        %v2834 = vcvt.f32.s32 %v2833
        %v2835 = vcvt.f32.s32 %v2829
        %v2836 = vshll.u32 %v2835, 16
        %v2837 = vadd.s32 %v2836, %v2834
        %vm2838 = vcmp.lt.s32.totalorder %v2764, %v2765
        %v2839 = vsel %vm2838, %v2764, %v2765
        %v2840 = vand.u32 %v2839, 65535
        %v2841 = vshra.s32 %v2839, 16
        %v2842 = vcvt.s32.f32 %v2840
        %v2843 = vcvt.s32.f32 %v2841
        %2844 = vmin.xlane.f32.xlu0 %v2843
        %v2845 = vpop.xlane.xlu0 %2844
        %vm2846 = vcmp.eq.f32.partialorder %v2843, %v2845
        %v2847 = vsel %vm2846, %v2842, inf
        %2848 = vmin.xlane.f32.xlu0 %v2847
        %v2849 = vpop.xlane.xlu0 %2848
        %v2850 = vcvt.f32.s32 %v2849
        %v2851 = vcvt.f32.s32 %v2845
        %v2852 = vshll.u32 %v2851, 16
        %v2853 = vadd.s32 %v2852, %v2850
        %vm2854 = vcmp.lt.s32.totalorder %v2766, %v2767
        %v2855 = vsel %vm2854, %v2766, %v2767
        %v2856 = vand.u32 %v2855, 65535
        %v2857 = vshra.s32 %v2855, 16
        %v2858 = vcvt.s32.f32 %v2856
        %v2859 = vcvt.s32.f32 %v2857
        %2860 = vmin.xlane.f32.xlu0 %v2859
        %v2861 = vpop.xlane.xlu0 %2860
        %vm2862 = vcmp.eq.f32.partialorder %v2859, %v2861
        %v2863 = vsel %vm2862, %v2858, inf
        %2864 = vmin.xlane.f32.xlu0 %v2863
        %v2865 = vpop.xlane.xlu0 %2864
        %v2866 = vcvt.f32.s32 %v2865
        %v2867 = vcvt.f32.s32 %v2861
        %v2868 = vshll.u32 %v2867, 16
        %v2869 = vadd.s32 %v2868, %v2866
        %vm2870 = vcmp.lt.s32.totalorder %v2768, %v2769
        %v2871 = vsel %vm2870, %v2768, %v2769
        %v2872 = vand.u32 %v2871, 65535
        %v2873 = vshra.s32 %v2871, 16
        %v2874 = vcvt.s32.f32 %v2872
        %v2875 = vcvt.s32.f32 %v2873
        %2876 = vmin.xlane.f32.xlu0 %v2875
        %v2877 = vpop.xlane.xlu0 %2876
        %vm2878 = vcmp.eq.f32.partialorder %v2875, %v2877
        %v2879 = vsel %vm2878, %v2874, inf
        %2880 = vmin.xlane.f32.xlu0 %v2879
        %v2881 = vpop.xlane.xlu0 %2880
        %v2882 = vcvt.f32.s32 %v2881
        %v2883 = vcvt.f32.s32 %v2877
        %v2884 = vshll.u32 %v2883, 16
        %v2885 = vadd.s32 %v2884, %v2882
        %vm2886 = vcmp.lt.s32.totalorder %v2770, %v2771
        %v2887 = vsel %vm2886, %v2770, %v2771
        %v2888 = vand.u32 %v2887, 65535
        %v2889 = vshra.s32 %v2887, 16
        %v2890 = vcvt.s32.f32 %v2888
        %v2891 = vcvt.s32.f32 %v2889
        %2892 = vmin.xlane.f32.xlu0 %v2891
        %v2893 = vpop.xlane.xlu0 %2892
        %vm2894 = vcmp.eq.f32.partialorder %v2891, %v2893
        %v2895 = vsel %vm2894, %v2890, inf
        %2896 = vmin.xlane.f32.xlu0 %v2895
        %v2897 = vpop.xlane.xlu0 %2896
        %v2898 = vcvt.f32.s32 %v2897
        %v2899 = vcvt.f32.s32 %v2893
        %v2900 = vshll.u32 %v2899, 16
        %v2901 = vadd.s32 %v2900, %v2898
        %vm2902 = vcmp.lt.s32.totalorder %v2772, %v2773
        %v2903 = vsel %vm2902, %v2772, %v2773
        %v2904 = vand.u32 %v2903, 65535
        %v2905 = vshra.s32 %v2903, 16
        %v2906 = vcvt.s32.f32 %v2904
        %v2907 = vcvt.s32.f32 %v2905
        %2908 = vmin.xlane.f32.xlu0 %v2907
        %v2909 = vpop.xlane.xlu0 %2908
        %vm2910 = vcmp.eq.f32.partialorder %v2907, %v2909
        %v2911 = vsel %vm2910, %v2906, inf
        %2912 = vmin.xlane.f32.xlu0 %v2911
        %v2913 = vpop.xlane.xlu0 %2912
        %v2914 = vcvt.f32.s32 %v2913
        %v2915 = vcvt.f32.s32 %v2909
        %v2916 = vshll.u32 %v2915, 16
        %v2917 = vadd.s32 %v2916, %v2914
        %vm2918 = vcmp.lt.s32.totalorder %v2774, %v2775
        %v2919 = vsel %vm2918, %v2774, %v2775
        %v2920 = vand.u32 %v2919, 65535
        %v2921 = vshra.s32 %v2919, 16
        %v2922 = vcvt.s32.f32 %v2920
        %v2923 = vcvt.s32.f32 %v2921
        %2924 = vmin.xlane.f32.xlu0 %v2923
        %v2925 = vpop.xlane.xlu0 %2924
        %vm2926 = vcmp.eq.f32.partialorder %v2923, %v2925
        %v2927 = vsel %vm2926, %v2922, inf
        %2928 = vmin.xlane.f32.xlu0 %v2927
        %v2929 = vpop.xlane.xlu0 %2928
        %v2930 = vcvt.f32.s32 %v2929
        %v2931 = vcvt.f32.s32 %v2925
        %v2932 = vshll.u32 %v2931, 16
        %v2933 = vadd.s32 %v2932, %v2930
        %vm2934 = vcmp.lt.s32.totalorder %v2776, %v2777
        %v2935 = vsel %vm2934, %v2776, %v2777
        %v2936 = vand.u32 %v2935, 65535
        %v2937 = vshra.s32 %v2935, 16
        %v2938 = vcvt.s32.f32 %v2936
        %v2939 = vcvt.s32.f32 %v2937
        %2940 = vmin.xlane.f32.xlu0 %v2939
        %v2941 = vpop.xlane.xlu0 %2940
        %vm2942 = vcmp.eq.f32.partialorder %v2939, %v2941
        %v2943 = vsel %vm2942, %v2938, inf
        %2944 = vmin.xlane.f32.xlu0 %v2943
        %v2945 = vpop.xlane.xlu0 %2944
        %v2946 = vcvt.f32.s32 %v2945
        %v2947 = vcvt.f32.s32 %v2941
        %v2948 = vshll.u32 %v2947, 16
        %v2949 = vadd.s32 %v2948, %v2946
        %vm2950 = vcmp.lt.s32.totalorder %v2778, %v2779
        %v2951 = vsel %vm2950, %v2778, %v2779
        %v2952 = vand.u32 %v2951, 65535
        %v2953 = vshra.s32 %v2951, 16
        %v2954 = vcvt.s32.f32 %v2952
        %v2955 = vcvt.s32.f32 %v2953
        %2956 = vmin.xlane.f32.xlu0 %v2955
        %v2957 = vpop.xlane.xlu0 %2956
        %vm2958 = vcmp.eq.f32.partialorder %v2955, %v2957
        %v2959 = vsel %vm2958, %v2954, inf
        %2960 = vmin.xlane.f32.xlu0 %v2959
        %v2961 = vpop.xlane.xlu0 %2960
        %v2962 = vcvt.f32.s32 %v2961
        %v2963 = vcvt.f32.s32 %v2957
        %v2964 = vshll.u32 %v2963, 16
        %v2965 = vadd.s32 %v2964, %v2962
        %vm2966 = vcmp.lt.s32.totalorder %v2780, %v2781
        %v2967 = vsel %vm2966, %v2780, %v2781
        %v2968 = vand.u32 %v2967, 65535
        %v2969 = vshra.s32 %v2967, 16
        %v2970 = vcvt.s32.f32 %v2968
        %v2971 = vcvt.s32.f32 %v2969
        %2972 = vmin.xlane.f32.xlu0 %v2971
        %v2973 = vpop.xlane.xlu0 %2972
        %vm2974 = vcmp.eq.f32.partialorder %v2971, %v2973
        %v2975 = vsel %vm2974, %v2970, inf
        %2976 = vmin.xlane.f32.xlu0 %v2975
        %v2977 = vpop.xlane.xlu0 %2976
        %v2978 = vcvt.f32.s32 %v2977
        %v2979 = vcvt.f32.s32 %v2973
        %v2980 = vshll.u32 %v2979, 16
        %v2981 = vadd.s32 %v2980, %v2978
        %vm2982 = vcmp.lt.s32.totalorder %v2782, %v2783
        %v2983 = vsel %vm2982, %v2782, %v2783
        %v2984 = vand.u32 %v2983, 65535
        %v2985 = vshra.s32 %v2983, 16
        %v2986 = vcvt.s32.f32 %v2984
        %v2987 = vcvt.s32.f32 %v2985
        %2988 = vmin.xlane.f32.xlu0 %v2987
        %v2989 = vpop.xlane.xlu0 %2988
        %vm2990 = vcmp.eq.f32.partialorder %v2987, %v2989
        %v2991 = vsel %vm2990, %v2986, inf
        %2992 = vmin.xlane.f32.xlu0 %v2991
        %v2993 = vpop.xlane.xlu0 %2992
        %v2994 = vcvt.f32.s32 %v2993
        %v2995 = vcvt.f32.s32 %v2989
        %v2996 = vshll.u32 %v2995, 16
        %v2997 = vadd.s32 %v2996, %v2994
        %vm2998 = vcmp.lt.s32.totalorder %v2784, %v2785
        %v2999 = vsel %vm2998, %v2784, %v2785
        %v3000 = vand.u32 %v2999, 65535
        %v3001 = vshra.s32 %v2999, 16
        %v3002 = vcvt.s32.f32 %v3000
        %v3003 = vcvt.s32.f32 %v3001
        %3004 = vmin.xlane.f32.xlu0 %v3003
        %v3005 = vpop.xlane.xlu0 %3004
        %vm3006 = vcmp.eq.f32.partialorder %v3003, %v3005
        %v3007 = vsel %vm3006, %v3002, inf
        %3008 = vmin.xlane.f32.xlu0 %v3007
        %v3009 = vpop.xlane.xlu0 %3008
        %v3010 = vcvt.f32.s32 %v3009
        %v3011 = vcvt.f32.s32 %v3005
        %v3012 = vshll.u32 %v3011, 16
        %v3013 = vadd.s32 %v3012, %v3010
        %vm3014 = vcmp.lt.s32.totalorder %v2786, %v2787
        %v3015 = vsel %vm3014, %v2786, %v2787
        %v3016 = vand.u32 %v3015, 65535
        %v3017 = vshra.s32 %v3015, 16
        %v3018 = vcvt.s32.f32 %v3016
        %v3019 = vcvt.s32.f32 %v3017
        %3020 = vmin.xlane.f32.xlu0 %v3019
        %v3021 = vpop.xlane.xlu0 %3020
        %vm3022 = vcmp.eq.f32.partialorder %v3019, %v3021
        %v3023 = vsel %vm3022, %v3018, inf
        %3024 = vmin.xlane.f32.xlu0 %v3023
        %v3025 = vpop.xlane.xlu0 %3024
        %v3026 = vcvt.f32.s32 %v3025
        %v3027 = vcvt.f32.s32 %v3021
        %v3028 = vshll.u32 %v3027, 16
        %v3029 = vadd.s32 %v3028, %v3026
        %vm3030 = vcmp.lt.s32.totalorder %v2788, %v2789
        %v3031 = vsel %vm3030, %v2788, %v2789
        %v3032 = vand.u32 %v3031, 65535
        %v3033 = vshra.s32 %v3031, 16
        %v3034 = vcvt.s32.f32 %v3032
        %v3035 = vcvt.s32.f32 %v3033
        %3036 = vmin.xlane.f32.xlu0 %v3035
        %v3037 = vpop.xlane.xlu0 %3036
        %vm3038 = vcmp.eq.f32.partialorder %v3035, %v3037
        %v3039 = vsel %vm3038, %v3034, inf
        %3040 = vmin.xlane.f32.xlu0 %v3039
        %v3041 = vpop.xlane.xlu0 %3040
        %v3042 = vcvt.f32.s32 %v3041
        %v3043 = vcvt.f32.s32 %v3037
        %v3044 = vshll.u32 %v3043, 16
        %v3045 = vadd.s32 %v3044, %v3042
        %vm3046 = vcmp.eq.s32.totalorder %v786, %v2805
        %vm3047 = vcmp.eq.s32.totalorder %v787, %v2805
        %vm3048 = vcmp.eq.s32.totalorder %v786, %v2821
        %vm3049 = vcmp.eq.s32.totalorder %v787, %v2821
        %vm3050 = vcmp.eq.s32.totalorder %v786, %v2837
        %vm3051 = vcmp.eq.s32.totalorder %v787, %v2837
        %vm3052 = vcmp.eq.s32.totalorder %v786, %v2853
        %vm3053 = vcmp.eq.s32.totalorder %v787, %v2853
        %vm3054 = vcmp.eq.s32.totalorder %v786, %v2869
        %vm3055 = vcmp.eq.s32.totalorder %v787, %v2869
        %vm3056 = vcmp.eq.s32.totalorder %v786, %v2885
        %vm3057 = vcmp.eq.s32.totalorder %v787, %v2885
        %vm3058 = vcmp.eq.s32.totalorder %v786, %v2901
        %vm3059 = vcmp.eq.s32.totalorder %v787, %v2901
        %vm3060 = vcmp.eq.s32.totalorder %v786, %v2917
        %vm3061 = vcmp.eq.s32.totalorder %v787, %v2917
        %vm3062 = vcmp.eq.s32.totalorder %v786, %v2933
        %vm3063 = vcmp.eq.s32.totalorder %v787, %v2933
        %vm3064 = vcmp.eq.s32.totalorder %v786, %v2949
        %vm3065 = vcmp.eq.s32.totalorder %v787, %v2949
        %vm3066 = vcmp.eq.s32.totalorder %v786, %v2965
        %vm3067 = vcmp.eq.s32.totalorder %v787, %v2965
        %vm3068 = vcmp.eq.s32.totalorder %v786, %v2981
        %vm3069 = vcmp.eq.s32.totalorder %v787, %v2981
        %vm3070 = vcmp.eq.s32.totalorder %v786, %v2997
        %vm3071 = vcmp.eq.s32.totalorder %v787, %v2997
        %vm3072 = vcmp.eq.s32.totalorder %v786, %v3013
        %vm3073 = vcmp.eq.s32.totalorder %v787, %v3013
        %vm3074 = vcmp.eq.s32.totalorder %v786, %v3029
        %vm3075 = vcmp.eq.s32.totalorder %v787, %v3029
        %vm3076 = vcmp.eq.s32.totalorder %v786, %v3045
        %vm3077 = vcmp.eq.s32.totalorder %v787, %v3045
        %v3078 = vsel %vm3046, %v753, %v2614
        %v3079 = vsel %vm3047, %v754, %v2615
        %v3080 = vsel %vm3048, %v755, %v2616
        %v3081 = vsel %vm3049, %v756, %v2617
        %v3082 = vsel %vm3050, %v757, %v2618
        %v3083 = vsel %vm3051, %v758, %v2619
        %v3084 = vsel %vm3052, %v759, %v2620
        %v3085 = vsel %vm3053, %v760, %v2621
        %v3086 = vsel %vm3054, %v761, %v2622
        %v3087 = vsel %vm3055, %v762, %v2623
        %v3088 = vsel %vm3056, %v763, %v2624
        %v3089 = vsel %vm3057, %v764, %v2625
        %v3090 = vsel %vm3058, %v765, %v2626
        %v3091 = vsel %vm3059, %v766, %v2627
        %v3092 = vsel %vm3060, %v767, %v2628
        %v3093 = vsel %vm3061, %v768, %v2629
        %v3094 = vsel %vm3062, %v769, %v2630
        %v3095 = vsel %vm3063, %v770, %v2631
        %v3096 = vsel %vm3064, %v771, %v2632
        %v3097 = vsel %vm3065, %v772, %v2633
        %v3098 = vsel %vm3066, %v773, %v2634
        %v3099 = vsel %vm3067, %v774, %v2635
        %v3100 = vsel %vm3068, %v775, %v2636
        %v3101 = vsel %vm3069, %v776, %v2637
        %v3102 = vsel %vm3070, %v777, %v2638
        %v3103 = vsel %vm3071, %v778, %v2639
        %v3104 = vsel %vm3072, %v779, %v2640
        %v3105 = vsel %vm3073, %v780, %v2641
        %v3106 = vsel %vm3074, %v781, %v2642
        %v3107 = vsel %vm3075, %v782, %v2643
        %v3108 = vsel %vm3076, %v783, %v2644
        %v3109 = vsel %vm3077, %v784, %v2645
        %v3110 = vsel %vm3046, -inf, %v2646
        %v3111 = vsel %vm3047, -inf, %v2647
        %v3112 = vsel %vm3048, -inf, %v2648
        %v3113 = vsel %vm3049, -inf, %v2649
        %v3114 = vsel %vm3050, -inf, %v2650
        %v3115 = vsel %vm3051, -inf, %v2651
        %v3116 = vsel %vm3052, -inf, %v2652
        %v3117 = vsel %vm3053, -inf, %v2653
        %v3118 = vsel %vm3054, -inf, %v2654
        %v3119 = vsel %vm3055, -inf, %v2655
        %v3120 = vsel %vm3056, -inf, %v2656
        %v3121 = vsel %vm3057, -inf, %v2657
        %v3122 = vsel %vm3058, -inf, %v2658
        %v3123 = vsel %vm3059, -inf, %v2659
        %v3124 = vsel %vm3060, -inf, %v2660
        %v3125 = vsel %vm3061, -inf, %v2661
        %v3126 = vsel %vm3062, -inf, %v2662
        %v3127 = vsel %vm3063, -inf, %v2663
        %v3128 = vsel %vm3064, -inf, %v2664
        %v3129 = vsel %vm3065, -inf, %v2665
        %v3130 = vsel %vm3066, -inf, %v2666
        %v3131 = vsel %vm3067, -inf, %v2667
        %v3132 = vsel %vm3068, -inf, %v2668
        %v3133 = vsel %vm3069, -inf, %v2669
        %v3134 = vsel %vm3070, -inf, %v2670
        %v3135 = vsel %vm3071, -inf, %v2671
        %v3136 = vsel %vm3072, -inf, %v2672
        %v3137 = vsel %vm3073, -inf, %v2673
        %v3138 = vsel %vm3074, -inf, %v2674
        %v3139 = vsel %vm3075, -inf, %v2675
        %v3140 = vsel %vm3076, -inf, %v2676
        %v3141 = vsel %vm3077, -inf, %v2677
        %v3142 = vmax.f32 %v3110, %v3111
        %3143 = vmax.xlane.f32.xlu0 %v3142
        %v3144 = vpop.xlane.xlu0 %3143
        %v3145 = vmax.f32 %v3112, %v3113
        %3146 = vmax.xlane.f32.xlu0 %v3145
        %v3147 = vpop.xlane.xlu0 %3146
        %v3148 = vmax.f32 %v3114, %v3115
        %3149 = vmax.xlane.f32.xlu0 %v3148
        %v3150 = vpop.xlane.xlu0 %3149
        %v3151 = vmax.f32 %v3116, %v3117
        %3152 = vmax.xlane.f32.xlu0 %v3151
        %v3153 = vpop.xlane.xlu0 %3152
        %v3154 = vmax.f32 %v3118, %v3119
        %3155 = vmax.xlane.f32.xlu0 %v3154
        %v3156 = vpop.xlane.xlu0 %3155
        %v3157 = vmax.f32 %v3120, %v3121
        %3158 = vmax.xlane.f32.xlu0 %v3157
        %v3159 = vpop.xlane.xlu0 %3158
        %v3160 = vmax.f32 %v3122, %v3123
        %3161 = vmax.xlane.f32.xlu0 %v3160
        %v3162 = vpop.xlane.xlu0 %3161
        %v3163 = vmax.f32 %v3124, %v3125
        %3164 = vmax.xlane.f32.xlu0 %v3163
        %v3165 = vpop.xlane.xlu0 %3164
        %v3166 = vmax.f32 %v3126, %v3127
        %3167 = vmax.xlane.f32.xlu0 %v3166
        %v3168 = vpop.xlane.xlu0 %3167
        %v3169 = vmax.f32 %v3128, %v3129
        %3170 = vmax.xlane.f32.xlu0 %v3169
        %v3171 = vpop.xlane.xlu0 %3170
        %v3172 = vmax.f32 %v3130, %v3131
        %3173 = vmax.xlane.f32.xlu0 %v3172
        %v3174 = vpop.xlane.xlu0 %3173
        %v3175 = vmax.f32 %v3132, %v3133
        %3176 = vmax.xlane.f32.xlu0 %v3175
        %v3177 = vpop.xlane.xlu0 %3176
        %v3178 = vmax.f32 %v3134, %v3135
        %3179 = vmax.xlane.f32.xlu0 %v3178
        %v3180 = vpop.xlane.xlu0 %3179
        %v3181 = vmax.f32 %v3136, %v3137
        %3182 = vmax.xlane.f32.xlu0 %v3181
        %v3183 = vpop.xlane.xlu0 %3182
        %v3184 = vmax.f32 %v3138, %v3139
        %3185 = vmax.xlane.f32.xlu0 %v3184
        %v3186 = vpop.xlane.xlu0 %3185
        %v3187 = vmax.f32 %v3140, %v3141
        %3188 = vmax.xlane.f32.xlu0 %v3187
        %v3189 = vpop.xlane.xlu0 %3188
        %vm3190 = vcmp.ge.f32.partialorder %v3110, %v3144
        %vm3191 = vcmp.ge.f32.partialorder %v3111, %v3144
        %vm3192 = vcmp.ge.f32.partialorder %v3112, %v3147
        %vm3193 = vcmp.ge.f32.partialorder %v3113, %v3147
        %vm3194 = vcmp.ge.f32.partialorder %v3114, %v3150
        %vm3195 = vcmp.ge.f32.partialorder %v3115, %v3150
        %vm3196 = vcmp.ge.f32.partialorder %v3116, %v3153
        %vm3197 = vcmp.ge.f32.partialorder %v3117, %v3153
        %vm3198 = vcmp.ge.f32.partialorder %v3118, %v3156
        %vm3199 = vcmp.ge.f32.partialorder %v3119, %v3156
        %vm3200 = vcmp.ge.f32.partialorder %v3120, %v3159
        %vm3201 = vcmp.ge.f32.partialorder %v3121, %v3159
        %vm3202 = vcmp.ge.f32.partialorder %v3122, %v3162
        %vm3203 = vcmp.ge.f32.partialorder %v3123, %v3162
        %vm3204 = vcmp.ge.f32.partialorder %v3124, %v3165
        %vm3205 = vcmp.ge.f32.partialorder %v3125, %v3165
        %vm3206 = vcmp.ge.f32.partialorder %v3126, %v3168
        %vm3207 = vcmp.ge.f32.partialorder %v3127, %v3168
        %vm3208 = vcmp.ge.f32.partialorder %v3128, %v3171
        %vm3209 = vcmp.ge.f32.partialorder %v3129, %v3171
        %vm3210 = vcmp.ge.f32.partialorder %v3130, %v3174
        %vm3211 = vcmp.ge.f32.partialorder %v3131, %v3174
        %vm3212 = vcmp.ge.f32.partialorder %v3132, %v3177
        %vm3213 = vcmp.ge.f32.partialorder %v3133, %v3177
        %vm3214 = vcmp.ge.f32.partialorder %v3134, %v3180
        %vm3215 = vcmp.ge.f32.partialorder %v3135, %v3180
        %vm3216 = vcmp.ge.f32.partialorder %v3136, %v3183
        %vm3217 = vcmp.ge.f32.partialorder %v3137, %v3183
        %vm3218 = vcmp.ge.f32.partialorder %v3138, %v3186
        %vm3219 = vcmp.ge.f32.partialorder %v3139, %v3186
        %vm3220 = vcmp.ge.f32.partialorder %v3140, %v3189
        %vm3221 = vcmp.ge.f32.partialorder %v3141, %v3189
        %v3222 = vsel %vm3190, %v786, 256
        %v3223 = vsel %vm3191, %v787, 256
        %v3224 = vsel %vm3192, %v786, 256
        %v3225 = vsel %vm3193, %v787, 256
        %v3226 = vsel %vm3194, %v786, 256
        %v3227 = vsel %vm3195, %v787, 256
        %v3228 = vsel %vm3196, %v786, 256
        %v3229 = vsel %vm3197, %v787, 256
        %v3230 = vsel %vm3198, %v786, 256
        %v3231 = vsel %vm3199, %v787, 256
        %v3232 = vsel %vm3200, %v786, 256
        %v3233 = vsel %vm3201, %v787, 256
        %v3234 = vsel %vm3202, %v786, 256
        %v3235 = vsel %vm3203, %v787, 256
        %v3236 = vsel %vm3204, %v786, 256
        %v3237 = vsel %vm3205, %v787, 256
        %v3238 = vsel %vm3206, %v786, 256
        %v3239 = vsel %vm3207, %v787, 256
        %v3240 = vsel %vm3208, %v786, 256
        %v3241 = vsel %vm3209, %v787, 256
        %v3242 = vsel %vm3210, %v786, 256
        %v3243 = vsel %vm3211, %v787, 256
        %v3244 = vsel %vm3212, %v786, 256
        %v3245 = vsel %vm3213, %v787, 256
        %v3246 = vsel %vm3214, %v786, 256
        %v3247 = vsel %vm3215, %v787, 256
        %v3248 = vsel %vm3216, %v786, 256
        %v3249 = vsel %vm3217, %v787, 256
        %v3250 = vsel %vm3218, %v786, 256
        %v3251 = vsel %vm3219, %v787, 256
        %v3252 = vsel %vm3220, %v786, 256
        %v3253 = vsel %vm3221, %v787, 256
        %vm3254 = vcmp.lt.s32.totalorder %v3222, %v3223
        %v3255 = vsel %vm3254, %v3222, %v3223
        %v3256 = vand.u32 %v3255, 65535
        %v3257 = vshra.s32 %v3255, 16
        %v3258 = vcvt.s32.f32 %v3256
        %v3259 = vcvt.s32.f32 %v3257
        %3260 = vmin.xlane.f32.xlu0 %v3259
        %v3261 = vpop.xlane.xlu0 %3260
        %vm3262 = vcmp.eq.f32.partialorder %v3259, %v3261
        %v3263 = vsel %vm3262, %v3258, inf
        %3264 = vmin.xlane.f32.xlu0 %v3263
        %v3265 = vpop.xlane.xlu0 %3264
        %v3266 = vcvt.f32.s32 %v3265
        %v3267 = vcvt.f32.s32 %v3261
        %v3268 = vshll.u32 %v3267, 16
        %v3269 = vadd.s32 %v3268, %v3266
        %vm3270 = vcmp.lt.s32.totalorder %v3224, %v3225
        %v3271 = vsel %vm3270, %v3224, %v3225
        %v3272 = vand.u32 %v3271, 65535
        %v3273 = vshra.s32 %v3271, 16
        %v3274 = vcvt.s32.f32 %v3272
        %v3275 = vcvt.s32.f32 %v3273
        %3276 = vmin.xlane.f32.xlu0 %v3275
        %v3277 = vpop.xlane.xlu0 %3276
        %vm3278 = vcmp.eq.f32.partialorder %v3275, %v3277
        %v3279 = vsel %vm3278, %v3274, inf
        %3280 = vmin.xlane.f32.xlu0 %v3279
        %v3281 = vpop.xlane.xlu0 %3280
        %v3282 = vcvt.f32.s32 %v3281
        %v3283 = vcvt.f32.s32 %v3277
        %v3284 = vshll.u32 %v3283, 16
        %v3285 = vadd.s32 %v3284, %v3282
        %vm3286 = vcmp.lt.s32.totalorder %v3226, %v3227
        %v3287 = vsel %vm3286, %v3226, %v3227
        %v3288 = vand.u32 %v3287, 65535
        %v3289 = vshra.s32 %v3287, 16
        %v3290 = vcvt.s32.f32 %v3288
        %v3291 = vcvt.s32.f32 %v3289
        %3292 = vmin.xlane.f32.xlu0 %v3291
        %v3293 = vpop.xlane.xlu0 %3292
        %vm3294 = vcmp.eq.f32.partialorder %v3291, %v3293
        %v3295 = vsel %vm3294, %v3290, inf
        %3296 = vmin.xlane.f32.xlu0 %v3295
        %v3297 = vpop.xlane.xlu0 %3296
        %v3298 = vcvt.f32.s32 %v3297
        %v3299 = vcvt.f32.s32 %v3293
        %v3300 = vshll.u32 %v3299, 16
        %v3301 = vadd.s32 %v3300, %v3298
        %vm3302 = vcmp.lt.s32.totalorder %v3228, %v3229
        %v3303 = vsel %vm3302, %v3228, %v3229
        %v3304 = vand.u32 %v3303, 65535
        %v3305 = vshra.s32 %v3303, 16
        %v3306 = vcvt.s32.f32 %v3304
        %v3307 = vcvt.s32.f32 %v3305
        %3308 = vmin.xlane.f32.xlu0 %v3307
        %v3309 = vpop.xlane.xlu0 %3308
        %vm3310 = vcmp.eq.f32.partialorder %v3307, %v3309
        %v3311 = vsel %vm3310, %v3306, inf
        %3312 = vmin.xlane.f32.xlu0 %v3311
        %v3313 = vpop.xlane.xlu0 %3312
        %v3314 = vcvt.f32.s32 %v3313
        %v3315 = vcvt.f32.s32 %v3309
        %v3316 = vshll.u32 %v3315, 16
        %v3317 = vadd.s32 %v3316, %v3314
        %vm3318 = vcmp.lt.s32.totalorder %v3230, %v3231
        %v3319 = vsel %vm3318, %v3230, %v3231
        %v3320 = vand.u32 %v3319, 65535
        %v3321 = vshra.s32 %v3319, 16
        %v3322 = vcvt.s32.f32 %v3320
        %v3323 = vcvt.s32.f32 %v3321
        %3324 = vmin.xlane.f32.xlu0 %v3323
        %v3325 = vpop.xlane.xlu0 %3324
        %vm3326 = vcmp.eq.f32.partialorder %v3323, %v3325
        %v3327 = vsel %vm3326, %v3322, inf
        %3328 = vmin.xlane.f32.xlu0 %v3327
        %v3329 = vpop.xlane.xlu0 %3328
        %v3330 = vcvt.f32.s32 %v3329
        %v3331 = vcvt.f32.s32 %v3325
        %v3332 = vshll.u32 %v3331, 16
        %v3333 = vadd.s32 %v3332, %v3330
        %vm3334 = vcmp.lt.s32.totalorder %v3232, %v3233
        %v3335 = vsel %vm3334, %v3232, %v3233
        %v3336 = vand.u32 %v3335, 65535
        %v3337 = vshra.s32 %v3335, 16
        %v3338 = vcvt.s32.f32 %v3336
        %v3339 = vcvt.s32.f32 %v3337
        %3340 = vmin.xlane.f32.xlu0 %v3339
        %v3341 = vpop.xlane.xlu0 %3340
        %vm3342 = vcmp.eq.f32.partialorder %v3339, %v3341
        %v3343 = vsel %vm3342, %v3338, inf
        %3344 = vmin.xlane.f32.xlu0 %v3343
        %v3345 = vpop.xlane.xlu0 %3344
        %v3346 = vcvt.f32.s32 %v3345
        %v3347 = vcvt.f32.s32 %v3341
        %v3348 = vshll.u32 %v3347, 16
        %v3349 = vadd.s32 %v3348, %v3346
        %vm3350 = vcmp.lt.s32.totalorder %v3234, %v3235
        %v3351 = vsel %vm3350, %v3234, %v3235
        %v3352 = vand.u32 %v3351, 65535
        %v3353 = vshra.s32 %v3351, 16
        %v3354 = vcvt.s32.f32 %v3352
        %v3355 = vcvt.s32.f32 %v3353
        %3356 = vmin.xlane.f32.xlu0 %v3355
        %v3357 = vpop.xlane.xlu0 %3356
        %vm3358 = vcmp.eq.f32.partialorder %v3355, %v3357
        %v3359 = vsel %vm3358, %v3354, inf
        %3360 = vmin.xlane.f32.xlu0 %v3359
        %v3361 = vpop.xlane.xlu0 %3360
        %v3362 = vcvt.f32.s32 %v3361
        %v3363 = vcvt.f32.s32 %v3357
        %v3364 = vshll.u32 %v3363, 16
        %v3365 = vadd.s32 %v3364, %v3362
        %vm3366 = vcmp.lt.s32.totalorder %v3236, %v3237
        %v3367 = vsel %vm3366, %v3236, %v3237
        %v3368 = vand.u32 %v3367, 65535
        %v3369 = vshra.s32 %v3367, 16
        %v3370 = vcvt.s32.f32 %v3368
        %v3371 = vcvt.s32.f32 %v3369
        %3372 = vmin.xlane.f32.xlu0 %v3371
        %v3373 = vpop.xlane.xlu0 %3372
        %vm3374 = vcmp.eq.f32.partialorder %v3371, %v3373
        %v3375 = vsel %vm3374, %v3370, inf
        %3376 = vmin.xlane.f32.xlu0 %v3375
        %v3377 = vpop.xlane.xlu0 %3376
        %v3378 = vcvt.f32.s32 %v3377
        %v3379 = vcvt.f32.s32 %v3373
        %v3380 = vshll.u32 %v3379, 16
        %v3381 = vadd.s32 %v3380, %v3378
        %vm3382 = vcmp.lt.s32.totalorder %v3238, %v3239
        %v3383 = vsel %vm3382, %v3238, %v3239
        %v3384 = vand.u32 %v3383, 65535
        %v3385 = vshra.s32 %v3383, 16
        %v3386 = vcvt.s32.f32 %v3384
        %v3387 = vcvt.s32.f32 %v3385
        %3388 = vmin.xlane.f32.xlu0 %v3387
        %v3389 = vpop.xlane.xlu0 %3388
        %vm3390 = vcmp.eq.f32.partialorder %v3387, %v3389
        %v3391 = vsel %vm3390, %v3386, inf
        %3392 = vmin.xlane.f32.xlu0 %v3391
        %v3393 = vpop.xlane.xlu0 %3392
        %v3394 = vcvt.f32.s32 %v3393
        %v3395 = vcvt.f32.s32 %v3389
        %v3396 = vshll.u32 %v3395, 16
        %v3397 = vadd.s32 %v3396, %v3394
        %vm3398 = vcmp.lt.s32.totalorder %v3240, %v3241
        %v3399 = vsel %vm3398, %v3240, %v3241
        %v3400 = vand.u32 %v3399, 65535
        %v3401 = vshra.s32 %v3399, 16
        %v3402 = vcvt.s32.f32 %v3400
        %v3403 = vcvt.s32.f32 %v3401
        %3404 = vmin.xlane.f32.xlu0 %v3403
        %v3405 = vpop.xlane.xlu0 %3404
        %vm3406 = vcmp.eq.f32.partialorder %v3403, %v3405
        %v3407 = vsel %vm3406, %v3402, inf
        %3408 = vmin.xlane.f32.xlu0 %v3407
        %v3409 = vpop.xlane.xlu0 %3408
        %v3410 = vcvt.f32.s32 %v3409
        %v3411 = vcvt.f32.s32 %v3405
        %v3412 = vshll.u32 %v3411, 16
        %v3413 = vadd.s32 %v3412, %v3410
        %vm3414 = vcmp.lt.s32.totalorder %v3242, %v3243
        %v3415 = vsel %vm3414, %v3242, %v3243
        %v3416 = vand.u32 %v3415, 65535
        %v3417 = vshra.s32 %v3415, 16
        %v3418 = vcvt.s32.f32 %v3416
        %v3419 = vcvt.s32.f32 %v3417
        %3420 = vmin.xlane.f32.xlu0 %v3419
        %v3421 = vpop.xlane.xlu0 %3420
        %vm3422 = vcmp.eq.f32.partialorder %v3419, %v3421
        %v3423 = vsel %vm3422, %v3418, inf
        %3424 = vmin.xlane.f32.xlu0 %v3423
        %v3425 = vpop.xlane.xlu0 %3424
        %v3426 = vcvt.f32.s32 %v3425
        %v3427 = vcvt.f32.s32 %v3421
        %v3428 = vshll.u32 %v3427, 16
        %v3429 = vadd.s32 %v3428, %v3426
        %vm3430 = vcmp.lt.s32.totalorder %v3244, %v3245
        %v3431 = vsel %vm3430, %v3244, %v3245
        %v3432 = vand.u32 %v3431, 65535
        %v3433 = vshra.s32 %v3431, 16
        %v3434 = vcvt.s32.f32 %v3432
        %v3435 = vcvt.s32.f32 %v3433
        %3436 = vmin.xlane.f32.xlu0 %v3435
        %v3437 = vpop.xlane.xlu0 %3436
        %vm3438 = vcmp.eq.f32.partialorder %v3435, %v3437
        %v3439 = vsel %vm3438, %v3434, inf
        %3440 = vmin.xlane.f32.xlu0 %v3439
        %v3441 = vpop.xlane.xlu0 %3440
        %v3442 = vcvt.f32.s32 %v3441
        %v3443 = vcvt.f32.s32 %v3437
        %v3444 = vshll.u32 %v3443, 16
        %v3445 = vadd.s32 %v3444, %v3442
        %vm3446 = vcmp.lt.s32.totalorder %v3246, %v3247
        %v3447 = vsel %vm3446, %v3246, %v3247
        %v3448 = vand.u32 %v3447, 65535
        %v3449 = vshra.s32 %v3447, 16
        %v3450 = vcvt.s32.f32 %v3448
        %v3451 = vcvt.s32.f32 %v3449
        %3452 = vmin.xlane.f32.xlu0 %v3451
        %v3453 = vpop.xlane.xlu0 %3452
        %vm3454 = vcmp.eq.f32.partialorder %v3451, %v3453
        %v3455 = vsel %vm3454, %v3450, inf
        %3456 = vmin.xlane.f32.xlu0 %v3455
        %v3457 = vpop.xlane.xlu0 %3456
        %v3458 = vcvt.f32.s32 %v3457
        %v3459 = vcvt.f32.s32 %v3453
        %v3460 = vshll.u32 %v3459, 16
        %v3461 = vadd.s32 %v3460, %v3458
        %vm3462 = vcmp.lt.s32.totalorder %v3248, %v3249
        %v3463 = vsel %vm3462, %v3248, %v3249
        %v3464 = vand.u32 %v3463, 65535
        %v3465 = vshra.s32 %v3463, 16
        %v3466 = vcvt.s32.f32 %v3464
        %v3467 = vcvt.s32.f32 %v3465
        %3468 = vmin.xlane.f32.xlu0 %v3467
        %v3469 = vpop.xlane.xlu0 %3468
        %vm3470 = vcmp.eq.f32.partialorder %v3467, %v3469
        %v3471 = vsel %vm3470, %v3466, inf
        %3472 = vmin.xlane.f32.xlu0 %v3471
        %v3473 = vpop.xlane.xlu0 %3472
        %v3474 = vcvt.f32.s32 %v3473
        %v3475 = vcvt.f32.s32 %v3469
        %v3476 = vshll.u32 %v3475, 16
        %v3477 = vadd.s32 %v3476, %v3474
        %vm3478 = vcmp.lt.s32.totalorder %v3250, %v3251
        %v3479 = vsel %vm3478, %v3250, %v3251
        %v3480 = vand.u32 %v3479, 65535
        %v3481 = vshra.s32 %v3479, 16
        %v3482 = vcvt.s32.f32 %v3480
        %v3483 = vcvt.s32.f32 %v3481
        %3484 = vmin.xlane.f32.xlu0 %v3483
        %v3485 = vpop.xlane.xlu0 %3484
        %vm3486 = vcmp.eq.f32.partialorder %v3483, %v3485
        %v3487 = vsel %vm3486, %v3482, inf
        %3488 = vmin.xlane.f32.xlu0 %v3487
        %v3489 = vpop.xlane.xlu0 %3488
        %v3490 = vcvt.f32.s32 %v3489
        %v3491 = vcvt.f32.s32 %v3485
        %v3492 = vshll.u32 %v3491, 16
        %v3493 = vadd.s32 %v3492, %v3490
        %vm3494 = vcmp.lt.s32.totalorder %v3252, %v3253
        %v3495 = vsel %vm3494, %v3252, %v3253
        %v3496 = vand.u32 %v3495, 65535
        %v3497 = vshra.s32 %v3495, 16
        %v3498 = vcvt.s32.f32 %v3496
        %v3499 = vcvt.s32.f32 %v3497
        %3500 = vmin.xlane.f32.xlu0 %v3499
        %v3501 = vpop.xlane.xlu0 %3500
        %vm3502 = vcmp.eq.f32.partialorder %v3499, %v3501
        %v3503 = vsel %vm3502, %v3498, inf
        %3504 = vmin.xlane.f32.xlu0 %v3503
        %v3505 = vpop.xlane.xlu0 %3504
        %v3506 = vcvt.f32.s32 %v3505
        %v3507 = vcvt.f32.s32 %v3501
        %v3508 = vshll.u32 %v3507, 16
        %v3509 = vadd.s32 %v3508, %v3506
        %vm3510 = vcmp.eq.s32.totalorder %v786, %v3269
        %vm3511 = vcmp.eq.s32.totalorder %v787, %v3269
        %vm3512 = vcmp.eq.s32.totalorder %v786, %v3285
        %vm3513 = vcmp.eq.s32.totalorder %v787, %v3285
        %vm3514 = vcmp.eq.s32.totalorder %v786, %v3301
        %vm3515 = vcmp.eq.s32.totalorder %v787, %v3301
        %vm3516 = vcmp.eq.s32.totalorder %v786, %v3317
        %vm3517 = vcmp.eq.s32.totalorder %v787, %v3317
        %vm3518 = vcmp.eq.s32.totalorder %v786, %v3333
        %vm3519 = vcmp.eq.s32.totalorder %v787, %v3333
        %vm3520 = vcmp.eq.s32.totalorder %v786, %v3349
        %vm3521 = vcmp.eq.s32.totalorder %v787, %v3349
        %vm3522 = vcmp.eq.s32.totalorder %v786, %v3365
        %vm3523 = vcmp.eq.s32.totalorder %v787, %v3365
        %vm3524 = vcmp.eq.s32.totalorder %v786, %v3381
        %vm3525 = vcmp.eq.s32.totalorder %v787, %v3381
        %vm3526 = vcmp.eq.s32.totalorder %v786, %v3397
        %vm3527 = vcmp.eq.s32.totalorder %v787, %v3397
        %vm3528 = vcmp.eq.s32.totalorder %v786, %v3413
        %vm3529 = vcmp.eq.s32.totalorder %v787, %v3413
        %vm3530 = vcmp.eq.s32.totalorder %v786, %v3429
        %vm3531 = vcmp.eq.s32.totalorder %v787, %v3429
        %vm3532 = vcmp.eq.s32.totalorder %v786, %v3445
        %vm3533 = vcmp.eq.s32.totalorder %v787, %v3445
        %vm3534 = vcmp.eq.s32.totalorder %v786, %v3461
        %vm3535 = vcmp.eq.s32.totalorder %v787, %v3461
        %vm3536 = vcmp.eq.s32.totalorder %v786, %v3477
        %vm3537 = vcmp.eq.s32.totalorder %v787, %v3477
        %vm3538 = vcmp.eq.s32.totalorder %v786, %v3493
        %vm3539 = vcmp.eq.s32.totalorder %v787, %v3493
        %vm3540 = vcmp.eq.s32.totalorder %v786, %v3509
        %vm3541 = vcmp.eq.s32.totalorder %v787, %v3509
        %v3542 = vsel %vm3510, %v753, %v3078
        %v3543 = vsel %vm3511, %v754, %v3079
        %v3544 = vsel %vm3512, %v755, %v3080
        %v3545 = vsel %vm3513, %v756, %v3081
        %v3546 = vsel %vm3514, %v757, %v3082
        %v3547 = vsel %vm3515, %v758, %v3083
        %v3548 = vsel %vm3516, %v759, %v3084
        %v3549 = vsel %vm3517, %v760, %v3085
        %v3550 = vsel %vm3518, %v761, %v3086
        %v3551 = vsel %vm3519, %v762, %v3087
        %v3552 = vsel %vm3520, %v763, %v3088
        %v3553 = vsel %vm3521, %v764, %v3089
        %v3554 = vsel %vm3522, %v765, %v3090
        %v3555 = vsel %vm3523, %v766, %v3091
        %v3556 = vsel %vm3524, %v767, %v3092
        %v3557 = vsel %vm3525, %v768, %v3093
        %v3558 = vsel %vm3526, %v769, %v3094
        %v3559 = vsel %vm3527, %v770, %v3095
        %v3560 = vsel %vm3528, %v771, %v3096
        %v3561 = vsel %vm3529, %v772, %v3097
        %v3562 = vsel %vm3530, %v773, %v3098
        %v3563 = vsel %vm3531, %v774, %v3099
        %v3564 = vsel %vm3532, %v775, %v3100
        %v3565 = vsel %vm3533, %v776, %v3101
        %v3566 = vsel %vm3534, %v777, %v3102
        %v3567 = vsel %vm3535, %v778, %v3103
        %v3568 = vsel %vm3536, %v779, %v3104
        %v3569 = vsel %vm3537, %v780, %v3105
        %v3570 = vsel %vm3538, %v781, %v3106
        %v3571 = vsel %vm3539, %v782, %v3107
        %v3572 = vsel %vm3540, %v783, %v3108
        %v3573 = vsel %vm3541, %v784, %v3109
        %v3574 = vsel %vm3510, -inf, %v3110
        %v3575 = vsel %vm3511, -inf, %v3111
        %v3576 = vsel %vm3512, -inf, %v3112
        %v3577 = vsel %vm3513, -inf, %v3113
        %v3578 = vsel %vm3514, -inf, %v3114
        %v3579 = vsel %vm3515, -inf, %v3115
        %v3580 = vsel %vm3516, -inf, %v3116
        %v3581 = vsel %vm3517, -inf, %v3117
        %v3582 = vsel %vm3518, -inf, %v3118
        %v3583 = vsel %vm3519, -inf, %v3119
        %v3584 = vsel %vm3520, -inf, %v3120
        %v3585 = vsel %vm3521, -inf, %v3121
        %v3586 = vsel %vm3522, -inf, %v3122
        %v3587 = vsel %vm3523, -inf, %v3123
        %v3588 = vsel %vm3524, -inf, %v3124
        %v3589 = vsel %vm3525, -inf, %v3125
        %v3590 = vsel %vm3526, -inf, %v3126
        %v3591 = vsel %vm3527, -inf, %v3127
        %v3592 = vsel %vm3528, -inf, %v3128
        %v3593 = vsel %vm3529, -inf, %v3129
        %v3594 = vsel %vm3530, -inf, %v3130
        %v3595 = vsel %vm3531, -inf, %v3131
        %v3596 = vsel %vm3532, -inf, %v3132
        %v3597 = vsel %vm3533, -inf, %v3133
        %v3598 = vsel %vm3534, -inf, %v3134
        %v3599 = vsel %vm3535, -inf, %v3135
        %v3600 = vsel %vm3536, -inf, %v3136
        %v3601 = vsel %vm3537, -inf, %v3137
        %v3602 = vsel %vm3538, -inf, %v3138
        %v3603 = vsel %vm3539, -inf, %v3139
        %v3604 = vsel %vm3540, -inf, %v3140
        %v3605 = vsel %vm3541, -inf, %v3141
        %v3606 = vmax.f32 %v3574, %v3575
        %3607 = vmax.xlane.f32.xlu0 %v3606
        %v3608 = vpop.xlane.xlu0 %3607
        %v3609 = vmax.f32 %v3576, %v3577
        %3610 = vmax.xlane.f32.xlu0 %v3609
        %v3611 = vpop.xlane.xlu0 %3610
        %v3612 = vmax.f32 %v3578, %v3579
        %3613 = vmax.xlane.f32.xlu0 %v3612
        %v3614 = vpop.xlane.xlu0 %3613
        %v3615 = vmax.f32 %v3580, %v3581
        %3616 = vmax.xlane.f32.xlu0 %v3615
        %v3617 = vpop.xlane.xlu0 %3616
        %v3618 = vmax.f32 %v3582, %v3583
        %3619 = vmax.xlane.f32.xlu0 %v3618
        %v3620 = vpop.xlane.xlu0 %3619
        %v3621 = vmax.f32 %v3584, %v3585
        %3622 = vmax.xlane.f32.xlu0 %v3621
        %v3623 = vpop.xlane.xlu0 %3622
        %v3624 = vmax.f32 %v3586, %v3587
        %3625 = vmax.xlane.f32.xlu0 %v3624
        %v3626 = vpop.xlane.xlu0 %3625
        %v3627 = vmax.f32 %v3588, %v3589
        %3628 = vmax.xlane.f32.xlu0 %v3627
        %v3629 = vpop.xlane.xlu0 %3628
        %v3630 = vmax.f32 %v3590, %v3591
        %3631 = vmax.xlane.f32.xlu0 %v3630
        %v3632 = vpop.xlane.xlu0 %3631
        %v3633 = vmax.f32 %v3592, %v3593
        %3634 = vmax.xlane.f32.xlu0 %v3633
        %v3635 = vpop.xlane.xlu0 %3634
        %v3636 = vmax.f32 %v3594, %v3595
        %3637 = vmax.xlane.f32.xlu0 %v3636
        %v3638 = vpop.xlane.xlu0 %3637
        %v3639 = vmax.f32 %v3596, %v3597
        %3640 = vmax.xlane.f32.xlu0 %v3639
        %v3641 = vpop.xlane.xlu0 %3640
        %v3642 = vmax.f32 %v3598, %v3599
        %3643 = vmax.xlane.f32.xlu0 %v3642
        %v3644 = vpop.xlane.xlu0 %3643
        %v3645 = vmax.f32 %v3600, %v3601
        %3646 = vmax.xlane.f32.xlu0 %v3645
        %v3647 = vpop.xlane.xlu0 %3646
        %v3648 = vmax.f32 %v3602, %v3603
        %3649 = vmax.xlane.f32.xlu0 %v3648
        %v3650 = vpop.xlane.xlu0 %3649
        %v3651 = vmax.f32 %v3604, %v3605
        %3652 = vmax.xlane.f32.xlu0 %v3651
        %v3653 = vpop.xlane.xlu0 %3652
        %vm3654 = vcmp.ge.f32.partialorder %v3574, %v3608
        %vm3655 = vcmp.ge.f32.partialorder %v3575, %v3608
        %vm3656 = vcmp.ge.f32.partialorder %v3576, %v3611
        %vm3657 = vcmp.ge.f32.partialorder %v3577, %v3611
        %vm3658 = vcmp.ge.f32.partialorder %v3578, %v3614
        %vm3659 = vcmp.ge.f32.partialorder %v3579, %v3614
        %vm3660 = vcmp.ge.f32.partialorder %v3580, %v3617
        %vm3661 = vcmp.ge.f32.partialorder %v3581, %v3617
        %vm3662 = vcmp.ge.f32.partialorder %v3582, %v3620
        %vm3663 = vcmp.ge.f32.partialorder %v3583, %v3620
        %vm3664 = vcmp.ge.f32.partialorder %v3584, %v3623
        %vm3665 = vcmp.ge.f32.partialorder %v3585, %v3623
        %vm3666 = vcmp.ge.f32.partialorder %v3586, %v3626
        %vm3667 = vcmp.ge.f32.partialorder %v3587, %v3626
        %vm3668 = vcmp.ge.f32.partialorder %v3588, %v3629
        %vm3669 = vcmp.ge.f32.partialorder %v3589, %v3629
        %vm3670 = vcmp.ge.f32.partialorder %v3590, %v3632
        %vm3671 = vcmp.ge.f32.partialorder %v3591, %v3632
        %vm3672 = vcmp.ge.f32.partialorder %v3592, %v3635
        %vm3673 = vcmp.ge.f32.partialorder %v3593, %v3635
        %vm3674 = vcmp.ge.f32.partialorder %v3594, %v3638
        %vm3675 = vcmp.ge.f32.partialorder %v3595, %v3638
        %vm3676 = vcmp.ge.f32.partialorder %v3596, %v3641
        %vm3677 = vcmp.ge.f32.partialorder %v3597, %v3641
        %vm3678 = vcmp.ge.f32.partialorder %v3598, %v3644
        %vm3679 = vcmp.ge.f32.partialorder %v3599, %v3644
        %vm3680 = vcmp.ge.f32.partialorder %v3600, %v3647
        %vm3681 = vcmp.ge.f32.partialorder %v3601, %v3647
        %vm3682 = vcmp.ge.f32.partialorder %v3602, %v3650
        %vm3683 = vcmp.ge.f32.partialorder %v3603, %v3650
        %vm3684 = vcmp.ge.f32.partialorder %v3604, %v3653
        %vm3685 = vcmp.ge.f32.partialorder %v3605, %v3653
        %v3686 = vsel %vm3654, %v786, 256
        %v3687 = vsel %vm3655, %v787, 256
        %v3688 = vsel %vm3656, %v786, 256
        %v3689 = vsel %vm3657, %v787, 256
        %v3690 = vsel %vm3658, %v786, 256
        %v3691 = vsel %vm3659, %v787, 256
        %v3692 = vsel %vm3660, %v786, 256
        %v3693 = vsel %vm3661, %v787, 256
        %v3694 = vsel %vm3662, %v786, 256
        %v3695 = vsel %vm3663, %v787, 256
        %v3696 = vsel %vm3664, %v786, 256
        %v3697 = vsel %vm3665, %v787, 256
        %v3698 = vsel %vm3666, %v786, 256
        %v3699 = vsel %vm3667, %v787, 256
        %v3700 = vsel %vm3668, %v786, 256
        %v3701 = vsel %vm3669, %v787, 256
        %v3702 = vsel %vm3670, %v786, 256
        %v3703 = vsel %vm3671, %v787, 256
        %v3704 = vsel %vm3672, %v786, 256
        %v3705 = vsel %vm3673, %v787, 256
        %v3706 = vsel %vm3674, %v786, 256
        %v3707 = vsel %vm3675, %v787, 256
        %v3708 = vsel %vm3676, %v786, 256
        %v3709 = vsel %vm3677, %v787, 256
        %v3710 = vsel %vm3678, %v786, 256
        %v3711 = vsel %vm3679, %v787, 256
        %v3712 = vsel %vm3680, %v786, 256
        %v3713 = vsel %vm3681, %v787, 256
        %v3714 = vsel %vm3682, %v786, 256
        %v3715 = vsel %vm3683, %v787, 256
        %v3716 = vsel %vm3684, %v786, 256
        %v3717 = vsel %vm3685, %v787, 256
        %vm3718 = vcmp.lt.s32.totalorder %v3686, %v3687
        %v3719 = vsel %vm3718, %v3686, %v3687
        %v3720 = vand.u32 %v3719, 65535
        %v3721 = vshra.s32 %v3719, 16
        %v3722 = vcvt.s32.f32 %v3720
        %v3723 = vcvt.s32.f32 %v3721
        %3724 = vmin.xlane.f32.xlu0 %v3723
        %v3725 = vpop.xlane.xlu0 %3724
        %vm3726 = vcmp.eq.f32.partialorder %v3723, %v3725
        %v3727 = vsel %vm3726, %v3722, inf
        %3728 = vmin.xlane.f32.xlu0 %v3727
        %v3729 = vpop.xlane.xlu0 %3728
        %v3730 = vcvt.f32.s32 %v3729
        %v3731 = vcvt.f32.s32 %v3725
        %v3732 = vshll.u32 %v3731, 16
        %v3733 = vadd.s32 %v3732, %v3730
        %vm3734 = vcmp.lt.s32.totalorder %v3688, %v3689
        %v3735 = vsel %vm3734, %v3688, %v3689
        %v3736 = vand.u32 %v3735, 65535
        %v3737 = vshra.s32 %v3735, 16
        %v3738 = vcvt.s32.f32 %v3736
        %v3739 = vcvt.s32.f32 %v3737
        %3740 = vmin.xlane.f32.xlu0 %v3739
        %v3741 = vpop.xlane.xlu0 %3740
        %vm3742 = vcmp.eq.f32.partialorder %v3739, %v3741
        %v3743 = vsel %vm3742, %v3738, inf
        %3744 = vmin.xlane.f32.xlu0 %v3743
        %v3745 = vpop.xlane.xlu0 %3744
        %v3746 = vcvt.f32.s32 %v3745
        %v3747 = vcvt.f32.s32 %v3741
        %v3748 = vshll.u32 %v3747, 16
        %v3749 = vadd.s32 %v3748, %v3746
        %vm3750 = vcmp.lt.s32.totalorder %v3690, %v3691
        %v3751 = vsel %vm3750, %v3690, %v3691
        %v3752 = vand.u32 %v3751, 65535
        %v3753 = vshra.s32 %v3751, 16
        %v3754 = vcvt.s32.f32 %v3752
        %v3755 = vcvt.s32.f32 %v3753
        %3756 = vmin.xlane.f32.xlu0 %v3755
        %v3757 = vpop.xlane.xlu0 %3756
        %vm3758 = vcmp.eq.f32.partialorder %v3755, %v3757
        %v3759 = vsel %vm3758, %v3754, inf
        %3760 = vmin.xlane.f32.xlu0 %v3759
        %v3761 = vpop.xlane.xlu0 %3760
        %v3762 = vcvt.f32.s32 %v3761
        %v3763 = vcvt.f32.s32 %v3757
        %v3764 = vshll.u32 %v3763, 16
        %v3765 = vadd.s32 %v3764, %v3762
        %vm3766 = vcmp.lt.s32.totalorder %v3692, %v3693
        %v3767 = vsel %vm3766, %v3692, %v3693
        %v3768 = vand.u32 %v3767, 65535
        %v3769 = vshra.s32 %v3767, 16
        %v3770 = vcvt.s32.f32 %v3768
        %v3771 = vcvt.s32.f32 %v3769
        %3772 = vmin.xlane.f32.xlu0 %v3771
        %v3773 = vpop.xlane.xlu0 %3772
        %vm3774 = vcmp.eq.f32.partialorder %v3771, %v3773
        %v3775 = vsel %vm3774, %v3770, inf
        %3776 = vmin.xlane.f32.xlu0 %v3775
        %v3777 = vpop.xlane.xlu0 %3776
        %v3778 = vcvt.f32.s32 %v3777
        %v3779 = vcvt.f32.s32 %v3773
        %v3780 = vshll.u32 %v3779, 16
        %v3781 = vadd.s32 %v3780, %v3778
        %vm3782 = vcmp.lt.s32.totalorder %v3694, %v3695
        %v3783 = vsel %vm3782, %v3694, %v3695
        %v3784 = vand.u32 %v3783, 65535
        %v3785 = vshra.s32 %v3783, 16
        %v3786 = vcvt.s32.f32 %v3784
        %v3787 = vcvt.s32.f32 %v3785
        %3788 = vmin.xlane.f32.xlu0 %v3787
        %v3789 = vpop.xlane.xlu0 %3788
        %vm3790 = vcmp.eq.f32.partialorder %v3787, %v3789
        %v3791 = vsel %vm3790, %v3786, inf
        %3792 = vmin.xlane.f32.xlu0 %v3791
        %v3793 = vpop.xlane.xlu0 %3792
        %v3794 = vcvt.f32.s32 %v3793
        %v3795 = vcvt.f32.s32 %v3789
        %v3796 = vshll.u32 %v3795, 16
        %v3797 = vadd.s32 %v3796, %v3794
        %vm3798 = vcmp.lt.s32.totalorder %v3696, %v3697
        %v3799 = vsel %vm3798, %v3696, %v3697
        %v3800 = vand.u32 %v3799, 65535
        %v3801 = vshra.s32 %v3799, 16
        %v3802 = vcvt.s32.f32 %v3800
        %v3803 = vcvt.s32.f32 %v3801
        %3804 = vmin.xlane.f32.xlu0 %v3803
        %v3805 = vpop.xlane.xlu0 %3804
        %vm3806 = vcmp.eq.f32.partialorder %v3803, %v3805
        %v3807 = vsel %vm3806, %v3802, inf
        %3808 = vmin.xlane.f32.xlu0 %v3807
        %v3809 = vpop.xlane.xlu0 %3808
        %v3810 = vcvt.f32.s32 %v3809
        %v3811 = vcvt.f32.s32 %v3805
        %v3812 = vshll.u32 %v3811, 16
        %v3813 = vadd.s32 %v3812, %v3810
        %vm3814 = vcmp.lt.s32.totalorder %v3698, %v3699
        %v3815 = vsel %vm3814, %v3698, %v3699
        %v3816 = vand.u32 %v3815, 65535
        %v3817 = vshra.s32 %v3815, 16
        %v3818 = vcvt.s32.f32 %v3816
        %v3819 = vcvt.s32.f32 %v3817
        %3820 = vmin.xlane.f32.xlu0 %v3819
        %v3821 = vpop.xlane.xlu0 %3820
        %vm3822 = vcmp.eq.f32.partialorder %v3819, %v3821
        %v3823 = vsel %vm3822, %v3818, inf
        %3824 = vmin.xlane.f32.xlu0 %v3823
        %v3825 = vpop.xlane.xlu0 %3824
        %v3826 = vcvt.f32.s32 %v3825
        %v3827 = vcvt.f32.s32 %v3821
        %v3828 = vshll.u32 %v3827, 16
        %v3829 = vadd.s32 %v3828, %v3826
        %vm3830 = vcmp.lt.s32.totalorder %v3700, %v3701
        %v3831 = vsel %vm3830, %v3700, %v3701
        %v3832 = vand.u32 %v3831, 65535
        %v3833 = vshra.s32 %v3831, 16
        %v3834 = vcvt.s32.f32 %v3832
        %v3835 = vcvt.s32.f32 %v3833
        %3836 = vmin.xlane.f32.xlu0 %v3835
        %v3837 = vpop.xlane.xlu0 %3836
        %vm3838 = vcmp.eq.f32.partialorder %v3835, %v3837
        %v3839 = vsel %vm3838, %v3834, inf
        %3840 = vmin.xlane.f32.xlu0 %v3839
        %v3841 = vpop.xlane.xlu0 %3840
        %v3842 = vcvt.f32.s32 %v3841
        %v3843 = vcvt.f32.s32 %v3837
        %v3844 = vshll.u32 %v3843, 16
        %v3845 = vadd.s32 %v3844, %v3842
        %vm3846 = vcmp.lt.s32.totalorder %v3702, %v3703
        %v3847 = vsel %vm3846, %v3702, %v3703
        %v3848 = vand.u32 %v3847, 65535
        %v3849 = vshra.s32 %v3847, 16
        %v3850 = vcvt.s32.f32 %v3848
        %v3851 = vcvt.s32.f32 %v3849
        %3852 = vmin.xlane.f32.xlu0 %v3851
        %v3853 = vpop.xlane.xlu0 %3852
        %vm3854 = vcmp.eq.f32.partialorder %v3851, %v3853
        %v3855 = vsel %vm3854, %v3850, inf
        %3856 = vmin.xlane.f32.xlu0 %v3855
        %v3857 = vpop.xlane.xlu0 %3856
        %v3858 = vcvt.f32.s32 %v3857
        %v3859 = vcvt.f32.s32 %v3853
        %v3860 = vshll.u32 %v3859, 16
        %v3861 = vadd.s32 %v3860, %v3858
        %vm3862 = vcmp.lt.s32.totalorder %v3704, %v3705
        %v3863 = vsel %vm3862, %v3704, %v3705
        %v3864 = vand.u32 %v3863, 65535
        %v3865 = vshra.s32 %v3863, 16
        %v3866 = vcvt.s32.f32 %v3864
        %v3867 = vcvt.s32.f32 %v3865
        %3868 = vmin.xlane.f32.xlu0 %v3867
        %v3869 = vpop.xlane.xlu0 %3868
        %vm3870 = vcmp.eq.f32.partialorder %v3867, %v3869
        %v3871 = vsel %vm3870, %v3866, inf
        %3872 = vmin.xlane.f32.xlu0 %v3871
        %v3873 = vpop.xlane.xlu0 %3872
        %v3874 = vcvt.f32.s32 %v3873
        %v3875 = vcvt.f32.s32 %v3869
        %v3876 = vshll.u32 %v3875, 16
        %v3877 = vadd.s32 %v3876, %v3874
        %vm3878 = vcmp.lt.s32.totalorder %v3706, %v3707
        %v3879 = vsel %vm3878, %v3706, %v3707
        %v3880 = vand.u32 %v3879, 65535
        %v3881 = vshra.s32 %v3879, 16
        %v3882 = vcvt.s32.f32 %v3880
        %v3883 = vcvt.s32.f32 %v3881
        %3884 = vmin.xlane.f32.xlu0 %v3883
        %v3885 = vpop.xlane.xlu0 %3884
        %vm3886 = vcmp.eq.f32.partialorder %v3883, %v3885
        %v3887 = vsel %vm3886, %v3882, inf
        %3888 = vmin.xlane.f32.xlu0 %v3887
        %v3889 = vpop.xlane.xlu0 %3888
        %v3890 = vcvt.f32.s32 %v3889
        %v3891 = vcvt.f32.s32 %v3885
        %v3892 = vshll.u32 %v3891, 16
        %v3893 = vadd.s32 %v3892, %v3890
        %vm3894 = vcmp.lt.s32.totalorder %v3708, %v3709
        %v3895 = vsel %vm3894, %v3708, %v3709
        %v3896 = vand.u32 %v3895, 65535
        %v3897 = vshra.s32 %v3895, 16
        %v3898 = vcvt.s32.f32 %v3896
        %v3899 = vcvt.s32.f32 %v3897
        %3900 = vmin.xlane.f32.xlu0 %v3899
        %v3901 = vpop.xlane.xlu0 %3900
        %vm3902 = vcmp.eq.f32.partialorder %v3899, %v3901
        %v3903 = vsel %vm3902, %v3898, inf
        %3904 = vmin.xlane.f32.xlu0 %v3903
        %v3905 = vpop.xlane.xlu0 %3904
        %v3906 = vcvt.f32.s32 %v3905
        %v3907 = vcvt.f32.s32 %v3901
        %v3908 = vshll.u32 %v3907, 16
        %v3909 = vadd.s32 %v3908, %v3906
        %vm3910 = vcmp.lt.s32.totalorder %v3710, %v3711
        %v3911 = vsel %vm3910, %v3710, %v3711
        %v3912 = vand.u32 %v3911, 65535
        %v3913 = vshra.s32 %v3911, 16
        %v3914 = vcvt.s32.f32 %v3912
        %v3915 = vcvt.s32.f32 %v3913
        %3916 = vmin.xlane.f32.xlu0 %v3915
        %v3917 = vpop.xlane.xlu0 %3916
        %vm3918 = vcmp.eq.f32.partialorder %v3915, %v3917
        %v3919 = vsel %vm3918, %v3914, inf
        %3920 = vmin.xlane.f32.xlu0 %v3919
        %v3921 = vpop.xlane.xlu0 %3920
        %v3922 = vcvt.f32.s32 %v3921
        %v3923 = vcvt.f32.s32 %v3917
        %v3924 = vshll.u32 %v3923, 16
        %v3925 = vadd.s32 %v3924, %v3922
        %vm3926 = vcmp.lt.s32.totalorder %v3712, %v3713
        %v3927 = vsel %vm3926, %v3712, %v3713
        %v3928 = vand.u32 %v3927, 65535
        %v3929 = vshra.s32 %v3927, 16
        %v3930 = vcvt.s32.f32 %v3928
        %v3931 = vcvt.s32.f32 %v3929
        %3932 = vmin.xlane.f32.xlu0 %v3931
        %v3933 = vpop.xlane.xlu0 %3932
        %vm3934 = vcmp.eq.f32.partialorder %v3931, %v3933
        %v3935 = vsel %vm3934, %v3930, inf
        %3936 = vmin.xlane.f32.xlu0 %v3935
        %v3937 = vpop.xlane.xlu0 %3936
        %v3938 = vcvt.f32.s32 %v3937
        %v3939 = vcvt.f32.s32 %v3933
        %v3940 = vshll.u32 %v3939, 16
        %v3941 = vadd.s32 %v3940, %v3938
        %vm3942 = vcmp.lt.s32.totalorder %v3714, %v3715
        %v3943 = vsel %vm3942, %v3714, %v3715
        %v3944 = vand.u32 %v3943, 65535
        %v3945 = vshra.s32 %v3943, 16
        %v3946 = vcvt.s32.f32 %v3944
        %v3947 = vcvt.s32.f32 %v3945
        %3948 = vmin.xlane.f32.xlu0 %v3947
        %v3949 = vpop.xlane.xlu0 %3948
        %vm3950 = vcmp.eq.f32.partialorder %v3947, %v3949
        %v3951 = vsel %vm3950, %v3946, inf
        %3952 = vmin.xlane.f32.xlu0 %v3951
        %v3953 = vpop.xlane.xlu0 %3952
        %v3954 = vcvt.f32.s32 %v3953
        %v3955 = vcvt.f32.s32 %v3949
        %v3956 = vshll.u32 %v3955, 16
        %v3957 = vadd.s32 %v3956, %v3954
        %vm3958 = vcmp.lt.s32.totalorder %v3716, %v3717
        %v3959 = vsel %vm3958, %v3716, %v3717
        %v3960 = vand.u32 %v3959, 65535
        %v3961 = vshra.s32 %v3959, 16
        %v3962 = vcvt.s32.f32 %v3960
        %v3963 = vcvt.s32.f32 %v3961
        %3964 = vmin.xlane.f32.xlu0 %v3963
        %v3965 = vpop.xlane.xlu0 %3964
        %vm3966 = vcmp.eq.f32.partialorder %v3963, %v3965
        %v3967 = vsel %vm3966, %v3962, inf
        %3968 = vmin.xlane.f32.xlu0 %v3967
        %v3969 = vpop.xlane.xlu0 %3968
        %v3970 = vcvt.f32.s32 %v3969
        %v3971 = vcvt.f32.s32 %v3965
        %v3972 = vshll.u32 %v3971, 16
        %v3973 = vadd.s32 %v3972, %v3970
        %vm3974 = vcmp.eq.s32.totalorder %v786, %v3733
        %vm3975 = vcmp.eq.s32.totalorder %v787, %v3733
        %vm3976 = vcmp.eq.s32.totalorder %v786, %v3749
        %vm3977 = vcmp.eq.s32.totalorder %v787, %v3749
        %vm3978 = vcmp.eq.s32.totalorder %v786, %v3765
        %vm3979 = vcmp.eq.s32.totalorder %v787, %v3765
        %vm3980 = vcmp.eq.s32.totalorder %v786, %v3781
        %vm3981 = vcmp.eq.s32.totalorder %v787, %v3781
        %vm3982 = vcmp.eq.s32.totalorder %v786, %v3797
        %vm3983 = vcmp.eq.s32.totalorder %v787, %v3797
        %vm3984 = vcmp.eq.s32.totalorder %v786, %v3813
        %vm3985 = vcmp.eq.s32.totalorder %v787, %v3813
        %vm3986 = vcmp.eq.s32.totalorder %v786, %v3829
        %vm3987 = vcmp.eq.s32.totalorder %v787, %v3829
        %vm3988 = vcmp.eq.s32.totalorder %v786, %v3845
        %vm3989 = vcmp.eq.s32.totalorder %v787, %v3845
        %vm3990 = vcmp.eq.s32.totalorder %v786, %v3861
        %vm3991 = vcmp.eq.s32.totalorder %v787, %v3861
        %vm3992 = vcmp.eq.s32.totalorder %v786, %v3877
        %vm3993 = vcmp.eq.s32.totalorder %v787, %v3877
        %vm3994 = vcmp.eq.s32.totalorder %v786, %v3893
        %vm3995 = vcmp.eq.s32.totalorder %v787, %v3893
        %vm3996 = vcmp.eq.s32.totalorder %v786, %v3909
        %vm3997 = vcmp.eq.s32.totalorder %v787, %v3909
        %vm3998 = vcmp.eq.s32.totalorder %v786, %v3925
        %vm3999 = vcmp.eq.s32.totalorder %v787, %v3925
        %vm4000 = vcmp.eq.s32.totalorder %v786, %v3941
        %vm4001 = vcmp.eq.s32.totalorder %v787, %v3941
        %vm4002 = vcmp.eq.s32.totalorder %v786, %v3957
        %vm4003 = vcmp.eq.s32.totalorder %v787, %v3957
        %vm4004 = vcmp.eq.s32.totalorder %v786, %v3973
        %vm4005 = vcmp.eq.s32.totalorder %v787, %v3973
        %v4006 = vsel %vm3974, %v753, %v3542
        %v4007 = vsel %vm3975, %v754, %v3543
        %v4008 = vsel %vm3976, %v755, %v3544
        %v4009 = vsel %vm3977, %v756, %v3545
        %v4010 = vsel %vm3978, %v757, %v3546
        %v4011 = vsel %vm3979, %v758, %v3547
        %v4012 = vsel %vm3980, %v759, %v3548
        %v4013 = vsel %vm3981, %v760, %v3549
        %v4014 = vsel %vm3982, %v761, %v3550
        %v4015 = vsel %vm3983, %v762, %v3551
        %v4016 = vsel %vm3984, %v763, %v3552
        %v4017 = vsel %vm3985, %v764, %v3553
        %v4018 = vsel %vm3986, %v765, %v3554
        %v4019 = vsel %vm3987, %v766, %v3555
        %v4020 = vsel %vm3988, %v767, %v3556
        %v4021 = vsel %vm3989, %v768, %v3557
        %v4022 = vsel %vm3990, %v769, %v3558
        %v4023 = vsel %vm3991, %v770, %v3559
        %v4024 = vsel %vm3992, %v771, %v3560
        %v4025 = vsel %vm3993, %v772, %v3561
        %v4026 = vsel %vm3994, %v773, %v3562
        %v4027 = vsel %vm3995, %v774, %v3563
        %v4028 = vsel %vm3996, %v775, %v3564
        %v4029 = vsel %vm3997, %v776, %v3565
        %v4030 = vsel %vm3998, %v777, %v3566
        %v4031 = vsel %vm3999, %v778, %v3567
        %v4032 = vsel %vm4000, %v779, %v3568
        %v4033 = vsel %vm4001, %v780, %v3569
        %v4034 = vsel %vm4002, %v781, %v3570
        %v4035 = vsel %vm4003, %v782, %v3571
        %v4036 = vsel %vm4004, %v783, %v3572
        %v4037 = vsel %vm4005, %v784, %v3573
        %v4038 = vsel %vm3974, -inf, %v3574
        %v4039 = vsel %vm3975, -inf, %v3575
        %v4040 = vsel %vm3976, -inf, %v3576
        %v4041 = vsel %vm3977, -inf, %v3577
        %v4042 = vsel %vm3978, -inf, %v3578
        %v4043 = vsel %vm3979, -inf, %v3579
        %v4044 = vsel %vm3980, -inf, %v3580
        %v4045 = vsel %vm3981, -inf, %v3581
        %v4046 = vsel %vm3982, -inf, %v3582
        %v4047 = vsel %vm3983, -inf, %v3583
        %v4048 = vsel %vm3984, -inf, %v3584
        %v4049 = vsel %vm3985, -inf, %v3585
        %v4050 = vsel %vm3986, -inf, %v3586
        %v4051 = vsel %vm3987, -inf, %v3587
        %v4052 = vsel %vm3988, -inf, %v3588
        %v4053 = vsel %vm3989, -inf, %v3589
        %v4054 = vsel %vm3990, -inf, %v3590
        %v4055 = vsel %vm3991, -inf, %v3591
        %v4056 = vsel %vm3992, -inf, %v3592
        %v4057 = vsel %vm3993, -inf, %v3593
        %v4058 = vsel %vm3994, -inf, %v3594
        %v4059 = vsel %vm3995, -inf, %v3595
        %v4060 = vsel %vm3996, -inf, %v3596
        %v4061 = vsel %vm3997, -inf, %v3597
        %v4062 = vsel %vm3998, -inf, %v3598
        %v4063 = vsel %vm3999, -inf, %v3599
        %v4064 = vsel %vm4000, -inf, %v3600
        %v4065 = vsel %vm4001, -inf, %v3601
        %v4066 = vsel %vm4002, -inf, %v3602
        %v4067 = vsel %vm4003, -inf, %v3603
        %v4068 = vsel %vm4004, -inf, %v3604
        %v4069 = vsel %vm4005, -inf, %v3605
        %v4070 = vmax.f32 %v4038, %v4039
        %4071 = vmax.xlane.f32.xlu0 %v4070
        %v4072 = vpop.xlane.xlu0 %4071
        %v4073 = vmax.f32 %v4040, %v4041
        %4074 = vmax.xlane.f32.xlu0 %v4073
        %v4075 = vpop.xlane.xlu0 %4074
        %v4076 = vmax.f32 %v4042, %v4043
        %4077 = vmax.xlane.f32.xlu0 %v4076
        %v4078 = vpop.xlane.xlu0 %4077
        %v4079 = vmax.f32 %v4044, %v4045
        %4080 = vmax.xlane.f32.xlu0 %v4079
        %v4081 = vpop.xlane.xlu0 %4080
        %v4082 = vmax.f32 %v4046, %v4047
        %4083 = vmax.xlane.f32.xlu0 %v4082
        %v4084 = vpop.xlane.xlu0 %4083
        %v4085 = vmax.f32 %v4048, %v4049
        %4086 = vmax.xlane.f32.xlu0 %v4085
        %v4087 = vpop.xlane.xlu0 %4086
        %v4088 = vmax.f32 %v4050, %v4051
        %4089 = vmax.xlane.f32.xlu0 %v4088
        %v4090 = vpop.xlane.xlu0 %4089
        %v4091 = vmax.f32 %v4052, %v4053
        %4092 = vmax.xlane.f32.xlu0 %v4091
        %v4093 = vpop.xlane.xlu0 %4092
        %v4094 = vmax.f32 %v4054, %v4055
        %4095 = vmax.xlane.f32.xlu0 %v4094
        %v4096 = vpop.xlane.xlu0 %4095
        %v4097 = vmax.f32 %v4056, %v4057
        %4098 = vmax.xlane.f32.xlu0 %v4097
        %v4099 = vpop.xlane.xlu0 %4098
        %v4100 = vmax.f32 %v4058, %v4059
        %4101 = vmax.xlane.f32.xlu0 %v4100
        %v4102 = vpop.xlane.xlu0 %4101
        %v4103 = vmax.f32 %v4060, %v4061
        %4104 = vmax.xlane.f32.xlu0 %v4103
        %v4105 = vpop.xlane.xlu0 %4104
        %v4106 = vmax.f32 %v4062, %v4063
        %4107 = vmax.xlane.f32.xlu0 %v4106
        %v4108 = vpop.xlane.xlu0 %4107
        %v4109 = vmax.f32 %v4064, %v4065
        %4110 = vmax.xlane.f32.xlu0 %v4109
        %v4111 = vpop.xlane.xlu0 %4110
        %v4112 = vmax.f32 %v4066, %v4067
        %4113 = vmax.xlane.f32.xlu0 %v4112
        %v4114 = vpop.xlane.xlu0 %4113
        %v4115 = vmax.f32 %v4068, %v4069
        %4116 = vmax.xlane.f32.xlu0 %v4115
        %v4117 = vpop.xlane.xlu0 %4116
        %vm4118 = vcmp.ge.f32.partialorder %v4038, %v4072
        %vm4119 = vcmp.ge.f32.partialorder %v4039, %v4072
        %vm4120 = vcmp.ge.f32.partialorder %v4040, %v4075
        %vm4121 = vcmp.ge.f32.partialorder %v4041, %v4075
        %vm4122 = vcmp.ge.f32.partialorder %v4042, %v4078
        %vm4123 = vcmp.ge.f32.partialorder %v4043, %v4078
        %vm4124 = vcmp.ge.f32.partialorder %v4044, %v4081
        %vm4125 = vcmp.ge.f32.partialorder %v4045, %v4081
        %vm4126 = vcmp.ge.f32.partialorder %v4046, %v4084
        %vm4127 = vcmp.ge.f32.partialorder %v4047, %v4084
        %vm4128 = vcmp.ge.f32.partialorder %v4048, %v4087
        %vm4129 = vcmp.ge.f32.partialorder %v4049, %v4087
        %vm4130 = vcmp.ge.f32.partialorder %v4050, %v4090
        %vm4131 = vcmp.ge.f32.partialorder %v4051, %v4090
        %vm4132 = vcmp.ge.f32.partialorder %v4052, %v4093
        %vm4133 = vcmp.ge.f32.partialorder %v4053, %v4093
        %vm4134 = vcmp.ge.f32.partialorder %v4054, %v4096
        %vm4135 = vcmp.ge.f32.partialorder %v4055, %v4096
        %vm4136 = vcmp.ge.f32.partialorder %v4056, %v4099
        %vm4137 = vcmp.ge.f32.partialorder %v4057, %v4099
        %vm4138 = vcmp.ge.f32.partialorder %v4058, %v4102
        %vm4139 = vcmp.ge.f32.partialorder %v4059, %v4102
        %vm4140 = vcmp.ge.f32.partialorder %v4060, %v4105
        %vm4141 = vcmp.ge.f32.partialorder %v4061, %v4105
        %vm4142 = vcmp.ge.f32.partialorder %v4062, %v4108
        %vm4143 = vcmp.ge.f32.partialorder %v4063, %v4108
        %vm4144 = vcmp.ge.f32.partialorder %v4064, %v4111
        %vm4145 = vcmp.ge.f32.partialorder %v4065, %v4111
        %vm4146 = vcmp.ge.f32.partialorder %v4066, %v4114
        %vm4147 = vcmp.ge.f32.partialorder %v4067, %v4114
        %vm4148 = vcmp.ge.f32.partialorder %v4068, %v4117
        %vm4149 = vcmp.ge.f32.partialorder %v4069, %v4117
        %v4150 = vsel %vm4118, %v786, 256
        %v4151 = vsel %vm4119, %v787, 256
        %v4152 = vsel %vm4120, %v786, 256
        %v4153 = vsel %vm4121, %v787, 256
        %v4154 = vsel %vm4122, %v786, 256
        %v4155 = vsel %vm4123, %v787, 256
        %v4156 = vsel %vm4124, %v786, 256
        %v4157 = vsel %vm4125, %v787, 256
        %v4158 = vsel %vm4126, %v786, 256
        %v4159 = vsel %vm4127, %v787, 256
        %v4160 = vsel %vm4128, %v786, 256
        %v4161 = vsel %vm4129, %v787, 256
        %v4162 = vsel %vm4130, %v786, 256
        %v4163 = vsel %vm4131, %v787, 256
        %v4164 = vsel %vm4132, %v786, 256
        %v4165 = vsel %vm4133, %v787, 256
        %v4166 = vsel %vm4134, %v786, 256
        %v4167 = vsel %vm4135, %v787, 256
        %v4168 = vsel %vm4136, %v786, 256
        %v4169 = vsel %vm4137, %v787, 256
        %v4170 = vsel %vm4138, %v786, 256
        %v4171 = vsel %vm4139, %v787, 256
        %v4172 = vsel %vm4140, %v786, 256
        %v4173 = vsel %vm4141, %v787, 256
        %v4174 = vsel %vm4142, %v786, 256
        %v4175 = vsel %vm4143, %v787, 256
        %v4176 = vsel %vm4144, %v786, 256
        %v4177 = vsel %vm4145, %v787, 256
        %v4178 = vsel %vm4146, %v786, 256
        %v4179 = vsel %vm4147, %v787, 256
        %v4180 = vsel %vm4148, %v786, 256
        %v4181 = vsel %vm4149, %v787, 256
        %vm4182 = vcmp.lt.s32.totalorder %v4150, %v4151
        %v4183 = vsel %vm4182, %v4150, %v4151
        %v4184 = vand.u32 %v4183, 65535
        %v4185 = vshra.s32 %v4183, 16
        %v4186 = vcvt.s32.f32 %v4184
        %v4187 = vcvt.s32.f32 %v4185
        %4188 = vmin.xlane.f32.xlu0 %v4187
        %v4189 = vpop.xlane.xlu0 %4188
        %vm4190 = vcmp.eq.f32.partialorder %v4187, %v4189
        %v4191 = vsel %vm4190, %v4186, inf
        %4192 = vmin.xlane.f32.xlu0 %v4191
        %v4193 = vpop.xlane.xlu0 %4192
        %v4194 = vcvt.f32.s32 %v4193
        %v4195 = vcvt.f32.s32 %v4189
        %v4196 = vshll.u32 %v4195, 16
        %v4197 = vadd.s32 %v4196, %v4194
        %vm4198 = vcmp.lt.s32.totalorder %v4152, %v4153
        %v4199 = vsel %vm4198, %v4152, %v4153
        %v4200 = vand.u32 %v4199, 65535
        %v4201 = vshra.s32 %v4199, 16
        %v4202 = vcvt.s32.f32 %v4200
        %v4203 = vcvt.s32.f32 %v4201
        %4204 = vmin.xlane.f32.xlu0 %v4203
        %v4205 = vpop.xlane.xlu0 %4204
        %vm4206 = vcmp.eq.f32.partialorder %v4203, %v4205
        %v4207 = vsel %vm4206, %v4202, inf
        %4208 = vmin.xlane.f32.xlu0 %v4207
        %v4209 = vpop.xlane.xlu0 %4208
        %v4210 = vcvt.f32.s32 %v4209
        %v4211 = vcvt.f32.s32 %v4205
        %v4212 = vshll.u32 %v4211, 16
        %v4213 = vadd.s32 %v4212, %v4210
        %vm4214 = vcmp.lt.s32.totalorder %v4154, %v4155
        %v4215 = vsel %vm4214, %v4154, %v4155
        %v4216 = vand.u32 %v4215, 65535
        %v4217 = vshra.s32 %v4215, 16
        %v4218 = vcvt.s32.f32 %v4216
        %v4219 = vcvt.s32.f32 %v4217
        %4220 = vmin.xlane.f32.xlu0 %v4219
        %v4221 = vpop.xlane.xlu0 %4220
        %vm4222 = vcmp.eq.f32.partialorder %v4219, %v4221
        %v4223 = vsel %vm4222, %v4218, inf
        %4224 = vmin.xlane.f32.xlu0 %v4223
        %v4225 = vpop.xlane.xlu0 %4224
        %v4226 = vcvt.f32.s32 %v4225
        %v4227 = vcvt.f32.s32 %v4221
        %v4228 = vshll.u32 %v4227, 16
        %v4229 = vadd.s32 %v4228, %v4226
        %vm4230 = vcmp.lt.s32.totalorder %v4156, %v4157
        %v4231 = vsel %vm4230, %v4156, %v4157
        %v4232 = vand.u32 %v4231, 65535
        %v4233 = vshra.s32 %v4231, 16
        %v4234 = vcvt.s32.f32 %v4232
        %v4235 = vcvt.s32.f32 %v4233
        %4236 = vmin.xlane.f32.xlu0 %v4235
        %v4237 = vpop.xlane.xlu0 %4236
        %vm4238 = vcmp.eq.f32.partialorder %v4235, %v4237
        %v4239 = vsel %vm4238, %v4234, inf
        %4240 = vmin.xlane.f32.xlu0 %v4239
        %v4241 = vpop.xlane.xlu0 %4240
        %v4242 = vcvt.f32.s32 %v4241
        %v4243 = vcvt.f32.s32 %v4237
        %v4244 = vshll.u32 %v4243, 16
        %v4245 = vadd.s32 %v4244, %v4242
        %vm4246 = vcmp.lt.s32.totalorder %v4158, %v4159
        %v4247 = vsel %vm4246, %v4158, %v4159
        %v4248 = vand.u32 %v4247, 65535
        %v4249 = vshra.s32 %v4247, 16
        %v4250 = vcvt.s32.f32 %v4248
        %v4251 = vcvt.s32.f32 %v4249
        %4252 = vmin.xlane.f32.xlu0 %v4251
        %v4253 = vpop.xlane.xlu0 %4252
        %vm4254 = vcmp.eq.f32.partialorder %v4251, %v4253
        %v4255 = vsel %vm4254, %v4250, inf
        %4256 = vmin.xlane.f32.xlu0 %v4255
        %v4257 = vpop.xlane.xlu0 %4256
        %v4258 = vcvt.f32.s32 %v4257
        %v4259 = vcvt.f32.s32 %v4253
        %v4260 = vshll.u32 %v4259, 16
        %v4261 = vadd.s32 %v4260, %v4258
        %vm4262 = vcmp.lt.s32.totalorder %v4160, %v4161
        %v4263 = vsel %vm4262, %v4160, %v4161
        %v4264 = vand.u32 %v4263, 65535
        %v4265 = vshra.s32 %v4263, 16
        %v4266 = vcvt.s32.f32 %v4264
        %v4267 = vcvt.s32.f32 %v4265
        %4268 = vmin.xlane.f32.xlu0 %v4267
        %v4269 = vpop.xlane.xlu0 %4268
        %vm4270 = vcmp.eq.f32.partialorder %v4267, %v4269
        %v4271 = vsel %vm4270, %v4266, inf
        %4272 = vmin.xlane.f32.xlu0 %v4271
        %v4273 = vpop.xlane.xlu0 %4272
        %v4274 = vcvt.f32.s32 %v4273
        %v4275 = vcvt.f32.s32 %v4269
        %v4276 = vshll.u32 %v4275, 16
        %v4277 = vadd.s32 %v4276, %v4274
        %vm4278 = vcmp.lt.s32.totalorder %v4162, %v4163
        %v4279 = vsel %vm4278, %v4162, %v4163
        %v4280 = vand.u32 %v4279, 65535
        %v4281 = vshra.s32 %v4279, 16
        %v4282 = vcvt.s32.f32 %v4280
        %v4283 = vcvt.s32.f32 %v4281
        %4284 = vmin.xlane.f32.xlu0 %v4283
        %v4285 = vpop.xlane.xlu0 %4284
        %vm4286 = vcmp.eq.f32.partialorder %v4283, %v4285
        %v4287 = vsel %vm4286, %v4282, inf
        %4288 = vmin.xlane.f32.xlu0 %v4287
        %v4289 = vpop.xlane.xlu0 %4288
        %v4290 = vcvt.f32.s32 %v4289
        %v4291 = vcvt.f32.s32 %v4285
        %v4292 = vshll.u32 %v4291, 16
        %v4293 = vadd.s32 %v4292, %v4290
        %vm4294 = vcmp.lt.s32.totalorder %v4164, %v4165
        %v4295 = vsel %vm4294, %v4164, %v4165
        %v4296 = vand.u32 %v4295, 65535
        %v4297 = vshra.s32 %v4295, 16
        %v4298 = vcvt.s32.f32 %v4296
        %v4299 = vcvt.s32.f32 %v4297
        %4300 = vmin.xlane.f32.xlu0 %v4299
        %v4301 = vpop.xlane.xlu0 %4300
        %vm4302 = vcmp.eq.f32.partialorder %v4299, %v4301
        %v4303 = vsel %vm4302, %v4298, inf
        %4304 = vmin.xlane.f32.xlu0 %v4303
        %v4305 = vpop.xlane.xlu0 %4304
        %v4306 = vcvt.f32.s32 %v4305
        %v4307 = vcvt.f32.s32 %v4301
        %v4308 = vshll.u32 %v4307, 16
        %v4309 = vadd.s32 %v4308, %v4306
        %vm4310 = vcmp.lt.s32.totalorder %v4166, %v4167
        %v4311 = vsel %vm4310, %v4166, %v4167
        %v4312 = vand.u32 %v4311, 65535
        %v4313 = vshra.s32 %v4311, 16
        %v4314 = vcvt.s32.f32 %v4312
        %v4315 = vcvt.s32.f32 %v4313
        %4316 = vmin.xlane.f32.xlu0 %v4315
        %v4317 = vpop.xlane.xlu0 %4316
        %vm4318 = vcmp.eq.f32.partialorder %v4315, %v4317
        %v4319 = vsel %vm4318, %v4314, inf
        %4320 = vmin.xlane.f32.xlu0 %v4319
        %v4321 = vpop.xlane.xlu0 %4320
        %v4322 = vcvt.f32.s32 %v4321
        %v4323 = vcvt.f32.s32 %v4317
        %v4324 = vshll.u32 %v4323, 16
        %v4325 = vadd.s32 %v4324, %v4322
        %vm4326 = vcmp.lt.s32.totalorder %v4168, %v4169
        %v4327 = vsel %vm4326, %v4168, %v4169
        %v4328 = vand.u32 %v4327, 65535
        %v4329 = vshra.s32 %v4327, 16
        %v4330 = vcvt.s32.f32 %v4328
        %v4331 = vcvt.s32.f32 %v4329
        %4332 = vmin.xlane.f32.xlu0 %v4331
        %v4333 = vpop.xlane.xlu0 %4332
        %vm4334 = vcmp.eq.f32.partialorder %v4331, %v4333
        %v4335 = vsel %vm4334, %v4330, inf
        %4336 = vmin.xlane.f32.xlu0 %v4335
        %v4337 = vpop.xlane.xlu0 %4336
        %v4338 = vcvt.f32.s32 %v4337
        %v4339 = vcvt.f32.s32 %v4333
        %v4340 = vshll.u32 %v4339, 16
        %v4341 = vadd.s32 %v4340, %v4338
        %vm4342 = vcmp.lt.s32.totalorder %v4170, %v4171
        %v4343 = vsel %vm4342, %v4170, %v4171
        %v4344 = vand.u32 %v4343, 65535
        %v4345 = vshra.s32 %v4343, 16
        %v4346 = vcvt.s32.f32 %v4344
        %v4347 = vcvt.s32.f32 %v4345
        %4348 = vmin.xlane.f32.xlu0 %v4347
        %v4349 = vpop.xlane.xlu0 %4348
        %vm4350 = vcmp.eq.f32.partialorder %v4347, %v4349
        %v4351 = vsel %vm4350, %v4346, inf
        %4352 = vmin.xlane.f32.xlu0 %v4351
        %v4353 = vpop.xlane.xlu0 %4352
        %v4354 = vcvt.f32.s32 %v4353
        %v4355 = vcvt.f32.s32 %v4349
        %v4356 = vshll.u32 %v4355, 16
        %v4357 = vadd.s32 %v4356, %v4354
        %vm4358 = vcmp.lt.s32.totalorder %v4172, %v4173
        %v4359 = vsel %vm4358, %v4172, %v4173
        %v4360 = vand.u32 %v4359, 65535
        %v4361 = vshra.s32 %v4359, 16
        %v4362 = vcvt.s32.f32 %v4360
        %v4363 = vcvt.s32.f32 %v4361
        %4364 = vmin.xlane.f32.xlu0 %v4363
        %v4365 = vpop.xlane.xlu0 %4364
        %vm4366 = vcmp.eq.f32.partialorder %v4363, %v4365
        %v4367 = vsel %vm4366, %v4362, inf
        %4368 = vmin.xlane.f32.xlu0 %v4367
        %v4369 = vpop.xlane.xlu0 %4368
        %v4370 = vcvt.f32.s32 %v4369
        %v4371 = vcvt.f32.s32 %v4365
        %v4372 = vshll.u32 %v4371, 16
        %v4373 = vadd.s32 %v4372, %v4370
        %vm4374 = vcmp.lt.s32.totalorder %v4174, %v4175
        %v4375 = vsel %vm4374, %v4174, %v4175
        %v4376 = vand.u32 %v4375, 65535
        %v4377 = vshra.s32 %v4375, 16
        %v4378 = vcvt.s32.f32 %v4376
        %v4379 = vcvt.s32.f32 %v4377
        %4380 = vmin.xlane.f32.xlu0 %v4379
        %v4381 = vpop.xlane.xlu0 %4380
        %vm4382 = vcmp.eq.f32.partialorder %v4379, %v4381
        %v4383 = vsel %vm4382, %v4378, inf
        %4384 = vmin.xlane.f32.xlu0 %v4383
        %v4385 = vpop.xlane.xlu0 %4384
        %v4386 = vcvt.f32.s32 %v4385
        %v4387 = vcvt.f32.s32 %v4381
        %v4388 = vshll.u32 %v4387, 16
        %v4389 = vadd.s32 %v4388, %v4386
        %vm4390 = vcmp.lt.s32.totalorder %v4176, %v4177
        %v4391 = vsel %vm4390, %v4176, %v4177
        %v4392 = vand.u32 %v4391, 65535
        %v4393 = vshra.s32 %v4391, 16
        %v4394 = vcvt.s32.f32 %v4392
        %v4395 = vcvt.s32.f32 %v4393
        %4396 = vmin.xlane.f32.xlu0 %v4395
        %v4397 = vpop.xlane.xlu0 %4396
        %vm4398 = vcmp.eq.f32.partialorder %v4395, %v4397
        %v4399 = vsel %vm4398, %v4394, inf
        %4400 = vmin.xlane.f32.xlu0 %v4399
        %v4401 = vpop.xlane.xlu0 %4400
        %v4402 = vcvt.f32.s32 %v4401
        %v4403 = vcvt.f32.s32 %v4397
        %v4404 = vshll.u32 %v4403, 16
        %v4405 = vadd.s32 %v4404, %v4402
        %vm4406 = vcmp.lt.s32.totalorder %v4178, %v4179
        %v4407 = vsel %vm4406, %v4178, %v4179
        %v4408 = vand.u32 %v4407, 65535
        %v4409 = vshra.s32 %v4407, 16
        %v4410 = vcvt.s32.f32 %v4408
        %v4411 = vcvt.s32.f32 %v4409
        %4412 = vmin.xlane.f32.xlu0 %v4411
        %v4413 = vpop.xlane.xlu0 %4412
        %vm4414 = vcmp.eq.f32.partialorder %v4411, %v4413
        %v4415 = vsel %vm4414, %v4410, inf
        %4416 = vmin.xlane.f32.xlu0 %v4415
        %v4417 = vpop.xlane.xlu0 %4416
        %v4418 = vcvt.f32.s32 %v4417
        %v4419 = vcvt.f32.s32 %v4413
        %v4420 = vshll.u32 %v4419, 16
        %v4421 = vadd.s32 %v4420, %v4418
        %vm4422 = vcmp.lt.s32.totalorder %v4180, %v4181
        %v4423 = vsel %vm4422, %v4180, %v4181
        %v4424 = vand.u32 %v4423, 65535
        %v4425 = vshra.s32 %v4423, 16
        %v4426 = vcvt.s32.f32 %v4424
        %v4427 = vcvt.s32.f32 %v4425
        %4428 = vmin.xlane.f32.xlu0 %v4427
        %v4429 = vpop.xlane.xlu0 %4428
        %vm4430 = vcmp.eq.f32.partialorder %v4427, %v4429
        %v4431 = vsel %vm4430, %v4426, inf
        %4432 = vmin.xlane.f32.xlu0 %v4431
        %v4433 = vpop.xlane.xlu0 %4432
        %v4434 = vcvt.f32.s32 %v4433
        %v4435 = vcvt.f32.s32 %v4429
        %v4436 = vshll.u32 %v4435, 16
        %v4437 = vadd.s32 %v4436, %v4434
        %vm4438 = vcmp.eq.s32.totalorder %v786, %v4197
        %vm4439 = vcmp.eq.s32.totalorder %v787, %v4197
        %vm4440 = vcmp.eq.s32.totalorder %v786, %v4213
        %vm4441 = vcmp.eq.s32.totalorder %v787, %v4213
        %vm4442 = vcmp.eq.s32.totalorder %v786, %v4229
        %vm4443 = vcmp.eq.s32.totalorder %v787, %v4229
        %vm4444 = vcmp.eq.s32.totalorder %v786, %v4245
        %vm4445 = vcmp.eq.s32.totalorder %v787, %v4245
        %vm4446 = vcmp.eq.s32.totalorder %v786, %v4261
        %vm4447 = vcmp.eq.s32.totalorder %v787, %v4261
        %vm4448 = vcmp.eq.s32.totalorder %v786, %v4277
        %vm4449 = vcmp.eq.s32.totalorder %v787, %v4277
        %vm4450 = vcmp.eq.s32.totalorder %v786, %v4293
        %vm4451 = vcmp.eq.s32.totalorder %v787, %v4293
        %vm4452 = vcmp.eq.s32.totalorder %v786, %v4309
        %vm4453 = vcmp.eq.s32.totalorder %v787, %v4309
        %vm4454 = vcmp.eq.s32.totalorder %v786, %v4325
        %vm4455 = vcmp.eq.s32.totalorder %v787, %v4325
        %vm4456 = vcmp.eq.s32.totalorder %v786, %v4341
        %vm4457 = vcmp.eq.s32.totalorder %v787, %v4341
        %vm4458 = vcmp.eq.s32.totalorder %v786, %v4357
        %vm4459 = vcmp.eq.s32.totalorder %v787, %v4357
        %vm4460 = vcmp.eq.s32.totalorder %v786, %v4373
        %vm4461 = vcmp.eq.s32.totalorder %v787, %v4373
        %vm4462 = vcmp.eq.s32.totalorder %v786, %v4389
        %vm4463 = vcmp.eq.s32.totalorder %v787, %v4389
        %vm4464 = vcmp.eq.s32.totalorder %v786, %v4405
        %vm4465 = vcmp.eq.s32.totalorder %v787, %v4405
        %vm4466 = vcmp.eq.s32.totalorder %v786, %v4421
        %vm4467 = vcmp.eq.s32.totalorder %v787, %v4421
        %vm4468 = vcmp.eq.s32.totalorder %v786, %v4437
        %vm4469 = vcmp.eq.s32.totalorder %v787, %v4437
        %v4470 = vsel %vm4438, %v753, %v4006
        %v4471 = vsel %vm4439, %v754, %v4007
        %v4472 = vsel %vm4440, %v755, %v4008
        %v4473 = vsel %vm4441, %v756, %v4009
        %v4474 = vsel %vm4442, %v757, %v4010
        %v4475 = vsel %vm4443, %v758, %v4011
        %v4476 = vsel %vm4444, %v759, %v4012
        %v4477 = vsel %vm4445, %v760, %v4013
        %v4478 = vsel %vm4446, %v761, %v4014
        %v4479 = vsel %vm4447, %v762, %v4015
        %v4480 = vsel %vm4448, %v763, %v4016
        %v4481 = vsel %vm4449, %v764, %v4017
        %v4482 = vsel %vm4450, %v765, %v4018
        %v4483 = vsel %vm4451, %v766, %v4019
        %v4484 = vsel %vm4452, %v767, %v4020
        %v4485 = vsel %vm4453, %v768, %v4021
        %v4486 = vsel %vm4454, %v769, %v4022
        %v4487 = vsel %vm4455, %v770, %v4023
        %v4488 = vsel %vm4456, %v771, %v4024
        %v4489 = vsel %vm4457, %v772, %v4025
        %v4490 = vsel %vm4458, %v773, %v4026
        %v4491 = vsel %vm4459, %v774, %v4027
        %v4492 = vsel %vm4460, %v775, %v4028
        %v4493 = vsel %vm4461, %v776, %v4029
        %v4494 = vsel %vm4462, %v777, %v4030
        %v4495 = vsel %vm4463, %v778, %v4031
        %v4496 = vsel %vm4464, %v779, %v4032
        %v4497 = vsel %vm4465, %v780, %v4033
        %v4498 = vsel %vm4466, %v781, %v4034
        %v4499 = vsel %vm4467, %v782, %v4035
        %v4500 = vsel %vm4468, %v783, %v4036
        %v4501 = vsel %vm4469, %v784, %v4037
        %4502 = vst [vmem:[%s207] sm:$0xff] %v4470
        %4503 = vst [vmem:[%s207 + $0x8] sm:$0xff] %v4471
        %4504 = vst [vmem:[%s207 + $0x10] sm:$0xff] %v4472
        %4505 = vst [vmem:[%s207 + $0x18] sm:$0xff] %v4473
        %4506 = vst [vmem:[%s207 + $0x20] sm:$0xff] %v4474
        %4507 = vst [vmem:[%s207 + $0x28] sm:$0xff] %v4475
        %4508 = vst [vmem:[%s207 + $0x30] sm:$0xff] %v4476
        %4509 = vst [vmem:[%s207 + $0x38] sm:$0xff] %v4477
        %4510 = vst [vmem:[%s207 + $0x40] sm:$0xff] %v4478
        %4511 = vst [vmem:[%s207 + $0x48] sm:$0xff] %v4479
        %4512 = vst [vmem:[%s207 + $0x50] sm:$0xff] %v4480
        %4513 = vst [vmem:[%s207 + $0x58] sm:$0xff] %v4481
        %4514 = vst [vmem:[%s207 + $0x60] sm:$0xff] %v4482
        %4515 = vst [vmem:[%s207 + $0x68] sm:$0xff] %v4483
        %4516 = vst [vmem:[%s207 + $0x70] sm:$0xff] %v4484
        %4517 = vst [vmem:[%s207 + $0x78] sm:$0xff] %v4485
        %4518 = vst [vmem:[%s207 + $0x80] sm:$0xff] %v4486
        %4519 = vst [vmem:[%s207 + $0x88] sm:$0xff] %v4487
        %4520 = vst [vmem:[%s207 + $0x90] sm:$0xff] %v4488
        %4521 = vst [vmem:[%s207 + $0x98] sm:$0xff] %v4489
        %4522 = vst [vmem:[%s207 + $0xa0] sm:$0xff] %v4490
        %4523 = vst [vmem:[%s207 + $0xa8] sm:$0xff] %v4491
        %4524 = vst [vmem:[%s207 + $0xb0] sm:$0xff] %v4492
        %4525 = vst [vmem:[%s207 + $0xb8] sm:$0xff] %v4493
        %4526 = vst [vmem:[%s207 + $0xc0] sm:$0xff] %v4494
        %4527 = vst [vmem:[%s207 + $0xc8] sm:$0xff] %v4495
        %4528 = vst [vmem:[%s207 + $0xd0] sm:$0xff] %v4496
        %4529 = vst [vmem:[%s207 + $0xd8] sm:$0xff] %v4497
        %4530 = vst [vmem:[%s207 + $0xe0] sm:$0xff] %v4498
        %4531 = vst [vmem:[%s207 + $0xe8] sm:$0xff] %v4499
        %4532 = vst [vmem:[%s207 + $0xf0] sm:$0xff] %v4500
        %4533 = vst [vmem:[%s207 + $0xf8] sm:$0xff] %v4501
        %s4534 = sand.u32 %s120, 1
        %s4535 = scalar_lea.sflag [#allocation3], %s4534
        %s4536 = sand.u32 %s120, 1
        %s4537 = smul.addr %s4536, 256
        %s4538 = scalar_lea.vmem [#allocation2], %s4537
        // Predicated region
        $region37: #{tpu_custom_call.1} parent=35 // pred_check
          %p4539 = pneg %p130
        $region38: #{tpu_custom_call.1} parent=35 // pred_check_branch
          %4541 = sbr.rel (%p4539) target = $region40
        $region39: #{tpu_custom_call.1} parent=35 // pred_region
          %s4542 = smul.u32 16, %s18
          %s4544 = ssub.s32 4096, 4096
          %4545 = vsyncadd %s4535, %s4544
          %s4546 = smul.addr %s4542, 2
          %s4547 = smul.addr %s4546, 128
          %s4548 = scalar_lea.hbm %s4, %s4547
          %s4549 = sshll.u32 %s4538, 4
          %s4550 = int_to_ptr.vmem [resolvable:$true] %s4549
          %4555 = dma.vmem_to_hbm [thread:$0]  %s4550, 4096, %s4548, %s4535, 256, 256, 16
        $region40: #{tpu_custom_call.1} parent=35 // pred_fallthru
          _
      $region36: #{tpu_custom_call.1} parent=5 // pred_fallthru
        _
      %p4556 = scmp.le.s32.totalorder 2, %s13
      // Predicated region
      $region41: #{tpu_custom_call.1} parent=5 // pred_check
        %p4557 = pneg %p4556
      $region42: #{tpu_custom_call.1} parent=5 // pred_check_branch
        %4559 = sbr.rel (%p4557) target = $region44
      $region43: #{tpu_custom_call.1} parent=5 // pred_region
        %s4560 = ssub.s32 %s13, 2
        // Predicated region
        $region45: #{tpu_custom_call.1} parent=43 // pred_check
          %p4561 = pneg %p136
        $region46: #{tpu_custom_call.1} parent=43 // pred_check_branch
          %4563 = sbr.rel (%p4561) target = $region48
        $region47: #{tpu_custom_call.1} parent=43 // pred_region
          %s4564 = sand.u32 %s121, 1
          %s4565 = scalar_lea.sflag [#allocation3], %s4564
          %s4566 = sand.u32 %s121, 1
          %s4567 = smul.addr %s4566, 256
          %s4568 = scalar_lea.vmem [#allocation2], %s4567
          %4569 = dma.done %s4565, 4096
        $region48: #{tpu_custom_call.1} parent=43 // pred_fallthru
          _
      $region44: #{tpu_custom_call.1} parent=5 // pred_fallthru
        _
    $region6: #{tpu_custom_call.1} parent=1 // loop_footer
      %s17 = sadd.s32 1, %s13
    $region7: #{tpu_custom_call.1} parent=1 // loop_footer_branch
      %12 = sbr.rel target = $region3
    $region8: #{tpu_custom_call.1} parent=1 // loop_exit
      _
    %4570 = vsyncpa [#allocation3], 1
    %s4571 = scalar_lea.sflag [#allocation3], 1
    %4572 = vsyncpa %s4571, 1

</llo_original>
